<compile_context>
chip_gen: v5e
topology: v5e:2x2
jax: 0.10.0
libtpu: 0.0.40
codegen_flags: <defaults>
</compile_context>

<pallas_src>
import jax
import jax.numpy as jnp
from jax.experimental import pallas as pl
from jax.experimental.pallas import tpu as pltpu

_EPS = 1e-5
_LANE = 128


def _round_up(x, m):
    return (x + m - 1) // m * m


def _per_channel_bytes(H, W, pad, Ho, Wo):
    # f32 bytes that must be live per expanded channel within one grid step:
    # depthwise scratch (upper bound incl. W padding), h1, acc + ~2 live taps.
    return 4 * ((H + 2 * pad) * (W + 2 * pad) + H * W + 3 * Ho * max(W, Wo))


def _auto_channel_tile(H, W, Pp, pad, Ho, Wo, budget_bytes=20 << 20):
    per_ch = _per_channel_bytes(H, W, pad, Ho, Wo)
    for cand in range(Pp, _LANE - 1, -_LANE):
        if Pp % cand == 0 and cand * per_ch <= budget_bytes:
            return cand
    return _LANE


def _vmem_limit_bytes(H, W, Cin, Pt, Cp, k, pad, Ho, Wo):
    per_ch = _per_channel_bytes(H, W, pad, Ho, Wo)
    blocks = 2 * (H * W * Cin * 2) + 2 * (Ho * Wo * Cp * 4)    # double-buffered
    weights = 2 * (Cin * Pt * 2 + 2 * Pt * 4 + k * k * Pt * 4
                   + Pt * Cp * 2 + Cp * 4 + Cin * Cp * 2 + Cp * 4)
    est = int(1.3 * (Pt * per_ch + blocks + weights))
    return max(32 << 20, min(est, 64 << 20))


def _make_kernel(H, W, Pt, Cp, k, stride, pad, Ho, Wo, add_residual, n_ctiles,
                 fast_path):
    center = pad * k + pad          # tap index of (dy=pad, dx=pad)

    def kernel(*refs):
        if add_residual:
            (x_ref, we_ref, b1_ref, wdw_ref, b2_ref, w3_ref, b3_ref,
             wsc_ref, bsc_ref, o_ref, pad_ref) = refs
        else:
            (x_ref, we_ref, b1_ref, wdw_ref, b2_ref, w3_ref, b3_ref,
             o_ref, pad_ref) = refs
            wsc_ref = bsc_ref = None

        c = pl.program_id(1)
        xm = x_ref[0]                                     # (H*W, Cin) bf16

        # ---- expand 1x1 for this channel tile (bf16 MXU, f32 acc) ---------
        h1 = jnp.dot(xm, we_ref[...], preferred_element_type=jnp.float32)
        h1 = jnp.maximum(h1 + b1_ref[...], 0.0)           # BN1 scale pre-folded

        # ---- depthwise k x k conv (f32 VPU/XLU) ----------------------------
        if fast_path:
            # Scratch is padded along H only -> aligned interior store; only
            # the 2*pad border rows are re-zeroed each grid step.
            if pad > 0:
                zrow = jnp.zeros((pad, W, Pt), jnp.float32)
                pad_ref[0:pad] = zrow
                pad_ref[pad + H:pad + H + pad] = zrow
            pad_ref[pad:pad + H] = h1.reshape(H, W, Pt)

            # Tiny (1, W, 1) boundary index; masks broadcast inside the select.
            col = jax.lax.broadcasted_iota(jnp.int32, (1, W, 1), 1)

            # Initialize acc from the center tap (no full-size zeros pass).
            center_strip = pad_ref[pad:pad + Ho]
            acc = center_strip * wdw_ref[center:center + 1, :]
            for dy in range(k):
                strip = center_strip if dy == pad else pad_ref[dy:dy + Ho]
                for dx in range(k):
                    if dy == pad and dx == pad:
                        continue                           # already in acc
                    ox = dx - pad
                    if ox == 0:
                        tap = strip
                    else:
                        tap = pltpu.roll(strip, (-ox) % W, 1)     # XLU shift
                        tap = jnp.where((col >= -ox) & (col < W - ox),
                                        tap, 0.0)
                    t = dy * k + dx
                    acc = acc + tap * wdw_ref[t:t + 1, :]  # BN2 scale folded
        else:
            # Generic fallback (stride > 1 / even k / W <= pad): fully padded
            # scratch, but only the pad border frame is zeroed.
            # TODO(synk): strided-tap path is correct but unoptimized.
            if pad > 0:
                zr = jnp.zeros((pad, W + 2 * pad, Pt), jnp.float32)
                zc = jnp.zeros((H, pad, Pt), jnp.float32)
                pad_ref[0:pad] = zr
                pad_ref[pad + H:pad + H + pad] = zr
                pad_ref[pad:pad + H, 0:pad, :] = zc
                pad_ref[pad:pad + H, pad + W:pad + W + pad, :] = zc
            pad_ref[pad:pad + H, pad:pad + W, :] = h1.reshape(H, W, Pt)

            acc = None
            for dy in range(k):
                for dx in range(k):
                    if stride == 1:
                        tap = pad_ref[dy:dy + Ho, dx:dx + Wo, :]
                    else:
                        tap = pad_ref[pl.ds(dy, Ho, stride=stride),
                                      pl.ds(dx, Wo, stride=stride), :]
                    term = tap * wdw_ref[dy * k + dx:dy * k + dx + 1, :]
                    acc = term if acc is None else acc + term

        h2 = jnp.maximum(acc.reshape(Ho * Wo, Pt) + b2_ref[...], 0.0)

        # ---- project 1x1 partial sum (bf16 MXU, f32 acc, BN3 folded) -------
        part = jnp.dot(h2.astype(jnp.bfloat16), w3_ref[...],
                       preferred_element_type=jnp.float32)   # (Ho*Wo, Cp)

        @pl.when(c == 0)
        def _():
            o_ref[0] = part

        @pl.when(c > 0)
        def _():
            o_ref[0] = o_ref[0] + part

        @pl.when(c == n_ctiles - 1)
        def _():
            out = o_ref[0] + b3_ref[...]
            if add_residual:
                # Shortcut projection (BN-folded conv, or padded identity for
                # the in==out case): tiny-K bf16 MXU matmul, computed once.
                sc = jnp.dot(xm, wsc_ref[...],
                             preferred_element_type=jnp.float32)
                out = out + sc + bsc_ref[...]
            o_ref[0] = out

    return kernel


def inverted_res_block(x_nhwc, params, meta, *, stride, kernel_size,
                       channel_tile=None):
    """x_nhwc: (N, H, W, Cin) float32. Returns (N, Ho, Wo, Cout) float32."""
    N, H, W, Cin = x_nhwc.shape
    k = kernel_size
    pad = k // 2
    Ho = (H + 2 * pad - k) // stride + 1
    Wo = (W + 2 * pad - k) // stride + 1
    Pp, Cp, Cout = meta["Pp"], meta["Cp"], meta["Cout"]
    add_residual = meta["add_residual"]

    # bf16 input DMA; x keeps its true channel count (no lane padding).
    x_flat = x_nhwc.astype(jnp.bfloat16).reshape(N, H * W, Cin)

    if channel_tile is None:
        Pt = _auto_channel_tile(H, W, Pp, pad, Ho, Wo)
    else:
        assert Pp % channel_tile == 0 and channel_tile % _LANE == 0
        Pt = channel_tile
    n_ctiles = Pp // Pt
    vmem_bytes = _vmem_limit_bytes(H, W, Cin, Pt, Cp, k, pad, Ho, Wo)

    inputs = [x_flat, params["we"], params["b1"], params["wdw"], params["b2"],
              params["w3"], params["b3"]]
    in_specs = [
        pl.BlockSpec((1, H * W, Cin), lambda n, c: (n, 0, 0)),
        pl.BlockSpec((Cin, Pt), lambda n, c: (0, c)),
        pl.BlockSpec((1, Pt), lambda n, c: (0, c)),
        pl.BlockSpec((k * k, Pt), lambda n, c: (0, c)),
        pl.BlockSpec((1, Pt), lambda n, c: (0, c)),
        pl.BlockSpec((Pt, Cp), lambda n, c: (c, 0)),
        pl.BlockSpec((1, Cp), lambda n, c: (0, 0)),
    ]
    if add_residual:
        inputs += [params["wsc"], params["bsc"]]
        in_specs += [pl.BlockSpec((Cin, Cp), lambda n, c: (0, 0)),
                     pl.BlockSpec((1, Cp), lambda n, c: (0, 0))]

    fast_path = (stride == 1) and (k % 2 == 1) and (W > pad)
    if fast_path:
        scratch = pltpu.VMEM((H + 2 * pad, W, Pt), jnp.float32)
    else:
        scratch = pltpu.VMEM((H + 2 * pad, W + 2 * pad, Pt), jnp.float32)

    kernel_fn = _make_kernel(H, W, Pt, Cp, k, stride, pad, Ho, Wo,
                             add_residual, n_ctiles, fast_path)

    out_flat = pl.pallas_call(
        kernel_fn,
        out_shape=jax.ShapeDtypeStruct((N, Ho * Wo, Cp), jnp.float32),
        grid_spec=pltpu.PrefetchScalarGridSpec(
            num_scalar_prefetch=0,
            grid=(N, n_ctiles),
            in_specs=in_specs,
            out_specs=pl.BlockSpec((1, Ho * Wo, Cp), lambda n, c: (n, 0, 0)),
            scratch_shapes=[scratch],
        ),
        compiler_params=pltpu.CompilerParams(
            dimension_semantics=("parallel", "arbitrary"),
            vmem_limit_bytes=vmem_bytes),
    )(*inputs)

    return out_flat[:, :, :Cout].reshape(N, Ho, Wo, Cout)


# ----------------------------- parameter setup -----------------------------

def init_params(key, in_planes, out_planes, stride, kernel_size, expansion):
    """Deterministic synthetic parameters with PyTorch-equivalent shapes."""
    planes = int(round(expansion * in_planes * 1.0))
    keys = jax.random.split(key, 8)

    def bn_params(kk, c):
        kg, kb, km, kv = jax.random.split(kk, 4)
        gamma = jax.random.uniform(kg, (c,), jnp.float32, 0.5, 1.5)
        beta = jax.random.normal(kb, (c,), jnp.float32) * 0.1
        mean = jax.random.normal(km, (c,), jnp.float32) * 0.1
        var = jax.random.uniform(kv, (c,), jnp.float32, 0.5, 1.5)
        return (gamma, beta, mean, var)

    k = kernel_size
    raw = {
        "w1": jax.random.normal(keys[0], (planes, in_planes, 1, 1), jnp.float32) * 0.2,
        "w2": jax.random.normal(keys[1], (planes, 1, k, k), jnp.float32) * 0.2,
        "w3": jax.random.normal(keys[2], (out_planes, planes, 1, 1), jnp.float32) * 0.2,
        "bn1": bn_params(keys[3], planes),
        "bn2": bn_params(keys[4], planes),
        "bn3": bn_params(keys[5], out_planes),
    }
    if stride == 1 and in_planes != out_planes:
        raw["wsc"] = jax.random.normal(keys[6], (out_planes, in_planes, 1, 1),
                                       jnp.float32) * 0.2
        raw["bnsc"] = bn_params(keys[7], out_planes)
    return raw, planes


def prepare_params(raw, *, kernel_size, stride, lane_align=_LANE):
    """Fold eval-mode BN into conv weights, pad channels, cast MXU weights."""
    k = kernel_size
    w1 = raw["w1"][:, :, 0, 0].T                        # (Cin, P)
    w3 = raw["w3"][:, :, 0, 0].T                        # (P, Cout)
    Cin, P = w1.shape
    Cout = w3.shape[1]
    add_residual = (stride == 1)
    has_proj = add_residual and (Cin != Cout)

    def bn_fold(bn):
        g, b, m, v = bn
        s = g / jnp.sqrt(v + _EPS)
        return s, b - m * s

    s1, b1 = bn_fold(raw["bn1"])
    s2, b2 = bn_fold(raw["bn2"])
    s3, b3 = bn_fold(raw["bn3"])

    w1 = w1 * s1[None, :]
    wdw = raw["w2"][:, 0, :, :].transpose(1, 2, 0).reshape(k * k, P) * s2[None, :]
    w3 = w3 * s3[None, :]

    Pp = _round_up(P, lane_align)
    Cp = _round_up(Cout, lane_align)

    def zpad(a, axis, new):
        widths = [(0, 0)] * a.ndim
        widths[axis] = (0, new - a.shape[axis])
        return jnp.pad(a, widths)

    params = {
        "we": zpad(w1, 1, Pp).astype(jnp.bfloat16),      # expand (Cin, Pp)
        "b1": zpad(b1, 0, Pp)[None, :],
        "wdw": zpad(wdw, 1, Pp),                         # f32 (VPU)
        "b2": zpad(b2, 0, Pp)[None, :],
        "w3": zpad(zpad(w3, 0, Pp), 1, Cp).astype(jnp.bfloat16),
        "b3": zpad(b3, 0, Cp)[None, :],
    }
    if add_residual:
        if has_proj:
            ssc, bsc = bn_fold(raw["bnsc"])
            wsc = raw["wsc"][:, :, 0, 0].T * ssc[None, :]          # (Cin, Cout)
            bsc_vec = bsc
        else:
            # Identity residual routed through a tiny-K bf16 MXU matmul so x
            # never needs channel padding and the residual is lane-dense.
            wsc = jnp.eye(Cin, Cout, dtype=jnp.float32)
            bsc_vec = jnp.zeros((Cout,), jnp.float32)
        params["wsc"] = zpad(wsc, 1, Cp).astype(jnp.bfloat16)
        params["bsc"] = zpad(bsc_vec, 0, Cp)[None, :]
    meta = dict(P=P, Pp=Pp, Cout=Cout, Cp=Cp, Cin=Cin,
                has_proj=has_proj, add_residual=add_residual)
    return params, meta


# ----------------------------- pure-JAX reference --------------------------

def reference_nhwc(x, raw, stride, kernel_size, has_proj, add_residual):
    def bn(y, prm):
        g, b, m, v = prm
        return (y - m) * (g / jnp.sqrt(v + _EPS)) + b

    k = kernel_size
    pad = k // 2
    P = raw["w1"].shape[0]
    y = jnp.einsum("nhwc,pc->nhwp", x, raw["w1"][:, :, 0, 0])
    y = jax.nn.relu(bn(y, raw["bn1"]))
    rhs = raw["w2"][:, 0, :, :].transpose(1, 2, 0)[:, :, None, :]   # (k,k,1,P)
    y = jax.lax.conv_general_dilated(
        y, rhs, (stride, stride), [(pad, pad), (pad, pad)],
        dimension_numbers=("NHWC", "HWIO", "NHWC"), feature_group_count=P)
    y = jax.nn.relu(bn(y, raw["bn2"]))
    y = jnp.einsum("nhwp,op->nhwo", y, raw["w3"][:, :, 0, 0])
    y = bn(y, raw["bn3"])
    if add_residual:
        if has_proj:
            sc = jnp.einsum("nhwc,oc->nhwo", x, raw["wsc"][:, :, 0, 0])
            sc = bn(sc, raw["bnsc"])
        else:
            sc = x
        y = y + sc
    return y


if __name__ == "__main__":
    N, H, W = 2, 16, 16
    configs = [
        # (in_planes, out_planes, stride, kernel_size, expansion, channel_tile)
        (4, 8, 1, 3, 6, None),     # projection shortcut, single channel tile
        (8, 8, 1, 3, 4, None),     # identity shortcut, single channel tile
        (24, 32, 1, 3, 6, 128),    # projection shortcut, Pp=256 -> 2 c-tiles
    ]

    key = jax.random.PRNGKey(0)
    for idx, (cin, cout, stride, ks, exp, ctile) in enumerate(configs):
        key, kx, kp = jax.random.split(key, 3)

        # PyTorch-convention input (NCHW), converted to NHWC for the kernel.
        x_nchw = jax.random.normal(kx, (N, cin, H, W), jnp.float32)
        x = jnp.transpose(x_nchw, (0, 2, 3, 1))

        raw, planes = init_params(kp, cin, cout, stride, ks, exp)
        params, meta = prepare_params(raw, kernel_size=ks, stride=stride)

        out = inverted_res_block(x, params, meta, stride=stride,
                                 kernel_size=ks, channel_tile=ctile)
        out = jax.block_until_ready(out)

        ref = reference_nhwc(x, raw, stride, ks, meta["has_proj"],
                             add_residual=(stride == 1))
        assert out.shape == ref.shape, (out.shape, ref.shape)
        max_err = float(jnp.max(jnp.abs(out - ref)))
        mean_err = float(jnp.mean(jnp.abs(out - ref)))
        # bf16 input / bf16 MXU matmuls (f32 accumulation) -> loose tolerance.
        assert max_err < 2e-1, f"cfg{idx}: max abs error {max_err}"
        assert mean_err < 4e-2, f"cfg{idx}: mean abs error {mean_err}"

    print("KERNEL_OK")
</pallas_src>

<mosaic_0001>
module attributes {stable_mosaic.version = 11 : i64} {
  func.func @kernel(%arg0: i32, %arg1: i32, %arg2: memref<1x256x4xbf16, #tpu.memory_space<vmem>>, %arg3: memref<4x128xbf16, #tpu.memory_space<vmem>>, %arg4: memref<1x128xf32, #tpu.memory_space<vmem>>, %arg5: memref<9x128xf32, #tpu.memory_space<vmem>>, %arg6: memref<1x128xf32, #tpu.memory_space<vmem>>, %arg7: memref<128x128xbf16, #tpu.memory_space<vmem>>, %arg8: memref<1x128xf32, #tpu.memory_space<vmem>>, %arg9: memref<4x128xbf16, #tpu.memory_space<vmem>>, %arg10: memref<1x128xf32, #tpu.memory_space<vmem>>, %arg11: memref<1x256x128xf32, #tpu.memory_space<vmem>>, %arg12: memref<18x16x128xf32, #tpu.memory_space<vmem>>) attributes {dimension_semantics = [#tpu.dimension_semantics<parallel>, #tpu.dimension_semantics<arbitrary>], iteration_bounds = array<i64: 2, 1>, scalar_prefetch = 0 : i64, scratch_operands = 1 : i64, tpu.core_type = #tpu.core_type<tc>, window_params = [{transform_indices = @transform_0, window_bounds = array<i64: 1, 256, 4>}, {transform_indices = @transform_1, window_bounds = array<i64: 4, 128>}, {transform_indices = @transform_2, window_bounds = array<i64: 1, 128>}, {transform_indices = @transform_3, window_bounds = array<i64: 9, 128>}, {transform_indices = @transform_4, window_bounds = array<i64: 1, 128>}, {transform_indices = @transform_5, window_bounds = array<i64: 128, 128>}, {pipeline_mode = #tpu.pipeline_mode<synchronous>, transform_indices = @transform_6, window_bounds = array<i64: 1, 128>}, {pipeline_mode = #tpu.pipeline_mode<synchronous>, transform_indices = @transform_7, window_bounds = array<i64: 4, 128>}, {pipeline_mode = #tpu.pipeline_mode<synchronous>, transform_indices = @transform_8, window_bounds = array<i64: 1, 128>}, {transform_indices = @transform_9, window_bounds = array<i64: 1, 256, 128>}]} {
    %c0 = arith.constant 0 : index
    %c0_0 = arith.constant 0 : index
    %c0_1 = arith.constant 0 : index
    %0 = vector.load %arg2[%c0, %c0_0, %c0_1] : memref<1x256x4xbf16, #tpu.memory_space<vmem>>, vector<1x256x4xbf16>
    %1 = vector.shape_cast %0 : vector<1x256x4xbf16> to vector<256x4xbf16>
    %c0_2 = arith.constant 0 : index
    %c0_3 = arith.constant 0 : index
    %2 = vector.load %arg3[%c0_2, %c0_3] : memref<4x128xbf16, #tpu.memory_space<vmem>>, vector<4x128xbf16>
    %cst = arith.constant dense<0.000000e+00> : vector<256x128xf32>
    %3 = tpu.matmul %1, %2, %cst {dimension_numbers = #tpu.dot_dimension_numbers<[1], [0], [0], [1], [0, 0, 1, 1], [], []>} : vector<256x4xbf16>, vector<4x128xbf16>, vector<256x128xf32> -> vector<256x128xf32>
    %c0_4 = arith.constant 0 : index
    %c0_5 = arith.constant 0 : index
    %4 = vector.load %arg4[%c0_4, %c0_5] : memref<1x128xf32, #tpu.memory_space<vmem>>, vector<1x128xf32>
    %5 = vector.broadcast %4 : vector<1x128xf32> to vector<256x128xf32>
    %6 = arith.addf %3, %5 : vector<256x128xf32>
    %cst_6 = arith.constant 0.000000e+00 : f32
    %7 = vector.broadcast %cst_6 : f32 to vector<256x128xf32>
    %8 = arith.maximumf %6, %7 : vector<256x128xf32>
    %cst_7 = arith.constant 0.000000e+00 : f32
    %9 = vector.broadcast %cst_7 : f32 to vector<1x16x128xf32>
    %c0_8 = arith.constant 0 : index
    %c0_9 = arith.constant 0 : index
    %c0_10 = arith.constant 0 : index
    %10 = vector.load %arg12[%c0_8, %c0_9, %c0_10] : memref<18x16x128xf32, #tpu.memory_space<vmem>>, vector<1x16x128xf32>
    tpu.vector_store %arg12[%c0_8, %c0_9, %c0_10], %9 {strides = array<i32>} : memref<18x16x128xf32, #tpu.memory_space<vmem>>, vector<1x16x128xf32>,
    %c17 = arith.constant 17 : index
    %c0_11 = arith.constant 0 : index
    %c0_12 = arith.constant 0 : index
    %11 = vector.load %arg12[%c17, %c0_11, %c0_12] : memref<18x16x128xf32, #tpu.memory_space<vmem>>, vector<1x16x128xf32>
    tpu.vector_store %arg12[%c17, %c0_11, %c0_12], %9 {strides = array<i32>} : memref<18x16x128xf32, #tpu.memory_space<vmem>>, vector<1x16x128xf32>,
    %12 = vector.shape_cast %8 : vector<256x128xf32> to vector<16x16x128xf32>
    %c1 = arith.constant 1 : index
    %c0_13 = arith.constant 0 : index
    %c0_14 = arith.constant 0 : index
    %13 = vector.load %arg12[%c1, %c0_13, %c0_14] : memref<18x16x128xf32, #tpu.memory_space<vmem>>, vector<16x16x128xf32>
    tpu.vector_store %arg12[%c1, %c0_13, %c0_14], %12 {strides = array<i32>} : memref<18x16x128xf32, #tpu.memory_space<vmem>>, vector<16x16x128xf32>,
    %14 = tpu.iota {dimensions = array<i32: 1>} : vector<1x16x1xi32>
    %c1_15 = arith.constant 1 : index
    %c0_16 = arith.constant 0 : index
    %c0_17 = arith.constant 0 : index
    %15 = vector.load %arg12[%c1_15, %c0_16, %c0_17] : memref<18x16x128xf32, #tpu.memory_space<vmem>>, vector<16x16x128xf32>
    %c4 = arith.constant 4 : index
    %c0_18 = arith.constant 0 : index
    %16 = vector.load %arg5[%c4, %c0_18] : memref<9x128xf32, #tpu.memory_space<vmem>>, vector<1x128xf32>
    %17 = vector.shape_cast %16 : vector<1x128xf32> to vector<1x1x128xf32>
    %18 = vector.broadcast %17 : vector<1x1x128xf32> to vector<16x16x128xf32>
    %19 = arith.mulf %15, %18 : vector<16x16x128xf32>
    %c0_19 = arith.constant 0 : index
    %c0_20 = arith.constant 0 : index
    %c0_21 = arith.constant 0 : index
    %20 = vector.load %arg12[%c0_19, %c0_20, %c0_21] : memref<18x16x128xf32, #tpu.memory_space<vmem>>, vector<16x16x128xf32>
    %c1_i32 = arith.constant 1 : i32
    %21 = tpu.dynamic_rotate %20 by %c1_i32 dim 1 : vector<16x16x128xf32>, i32 -> vector<16x16x128xf32>
    %c1_i32_22 = arith.constant 1 : i32
    %22 = vector.broadcast %c1_i32_22 : i32 to vector<1x16x1xi32>
    %23 = arith.cmpi sge, %14, %22 : vector<1x16x1xi32>
    %c17_i32 = arith.constant 17 : i32
    %24 = vector.broadcast %c17_i32 : i32 to vector<1x16x1xi32>
    %25 = arith.cmpi slt, %14, %24 : vector<1x16x1xi32>
    %26 = arith.andi %23, %25 : vector<1x16x1xi1>
    %cst_23 = arith.constant 0.000000e+00 : f32
    %27 = vector.shape_cast %26 : vector<1x16x1xi1> to vector<1x16x1xi1>
    %28 = vector.broadcast %27 : vector<1x16x1xi1> to vector<16x16x128xi1>
    %29 = vector.broadcast %cst_23 : f32 to vector<16x16x128xf32>
    %30 = arith.select %28, %21, %29 : vector<16x16x128xi1>, vector<16x16x128xf32>
    %c0_24 = arith.constant 0 : index
    %c0_25 = arith.constant 0 : index
    %31 = vector.load %arg5[%c0_24, %c0_25] : memref<9x128xf32, #tpu.memory_space<vmem>>, vector<1x128xf32>
    %32 = vector.shape_cast %31 : vector<1x128xf32> to vector<1x1x128xf32>
    %33 = vector.broadcast %32 : vector<1x1x128xf32> to vector<16x16x128xf32>
    %34 = arith.mulf %30, %33 : vector<16x16x128xf32>
    %35 = arith.addf %19, %34 : vector<16x16x128xf32>
    %c1_26 = arith.constant 1 : index
    %c0_27 = arith.constant 0 : index
    %36 = vector.load %arg5[%c1_26, %c0_27] : memref<9x128xf32, #tpu.memory_space<vmem>>, vector<1x128xf32>
    %37 = vector.shape_cast %36 : vector<1x128xf32> to vector<1x1x128xf32>
    %38 = vector.broadcast %37 : vector<1x1x128xf32> to vector<16x16x128xf32>
    %39 = arith.mulf %20, %38 : vector<16x16x128xf32>
    %40 = arith.addf %35, %39 : vector<16x16x128xf32>
    %c15_i32 = arith.constant 15 : i32
    %41 = tpu.dynamic_rotate %20 by %c15_i32 dim 1 : vector<16x16x128xf32>, i32 -> vector<16x16x128xf32>
    %c-1_i32 = arith.constant -1 : i32
    %42 = vector.broadcast %c-1_i32 : i32 to vector<1x16x1xi32>
    %43 = arith.cmpi sge, %14, %42 : vector<1x16x1xi32>
    %c15_i32_28 = arith.constant 15 : i32
    %44 = vector.broadcast %c15_i32_28 : i32 to vector<1x16x1xi32>
    %45 = arith.cmpi slt, %14, %44 : vector<1x16x1xi32>
    %46 = arith.andi %43, %45 : vector<1x16x1xi1>
    %cst_29 = arith.constant 0.000000e+00 : f32
    %47 = vector.shape_cast %46 : vector<1x16x1xi1> to vector<1x16x1xi1>
    %48 = vector.broadcast %47 : vector<1x16x1xi1> to vector<16x16x128xi1>
    %49 = vector.broadcast %cst_29 : f32 to vector<16x16x128xf32>
    %50 = arith.select %48, %41, %49 : vector<16x16x128xi1>, vector<16x16x128xf32>
    %c2 = arith.constant 2 : index
    %c0_30 = arith.constant 0 : index
    %51 = vector.load %arg5[%c2, %c0_30] : memref<9x128xf32, #tpu.memory_space<vmem>>, vector<1x128xf32>
    %52 = vector.shape_cast %51 : vector<1x128xf32> to vector<1x1x128xf32>
    %53 = vector.broadcast %52 : vector<1x1x128xf32> to vector<16x16x128xf32>
    %54 = arith.mulf %50, %53 : vector<16x16x128xf32>
    %55 = arith.addf %40, %54 : vector<16x16x128xf32>
    %c1_i32_31 = arith.constant 1 : i32
    %56 = tpu.dynamic_rotate %15 by %c1_i32_31 dim 1 : vector<16x16x128xf32>, i32 -> vector<16x16x128xf32>
    %c1_i32_32 = arith.constant 1 : i32
    %57 = vector.broadcast %c1_i32_32 : i32 to vector<1x16x1xi32>
    %58 = arith.cmpi sge, %14, %57 : vector<1x16x1xi32>
    %c17_i32_33 = arith.constant 17 : i32
    %59 = vector.broadcast %c17_i32_33 : i32 to vector<1x16x1xi32>
    %60 = arith.cmpi slt, %14, %59 : vector<1x16x1xi32>
    %61 = arith.andi %58, %60 : vector<1x16x1xi1>
    %cst_34 = arith.constant 0.000000e+00 : f32
    %62 = vector.shape_cast %61 : vector<1x16x1xi1> to vector<1x16x1xi1>
    %63 = vector.broadcast %62 : vector<1x16x1xi1> to vector<16x16x128xi1>
    %64 = vector.broadcast %cst_34 : f32 to vector<16x16x128xf32>
    %65 = arith.select %63, %56, %64 : vector<16x16x128xi1>, vector<16x16x128xf32>
    %c3 = arith.constant 3 : index
    %c0_35 = arith.constant 0 : index
    %66 = vector.load %arg5[%c3, %c0_35] : memref<9x128xf32, #tpu.memory_space<vmem>>, vector<1x128xf32>
    %67 = vector.shape_cast %66 : vector<1x128xf32> to vector<1x1x128xf32>
    %68 = vector.broadcast %67 : vector<1x1x128xf32> to vector<16x16x128xf32>
    %69 = arith.mulf %65, %68 : vector<16x16x128xf32>
    %70 = arith.addf %55, %69 : vector<16x16x128xf32>
    %c15_i32_36 = arith.constant 15 : i32
    %71 = tpu.dynamic_rotate %15 by %c15_i32_36 dim 1 : vector<16x16x128xf32>, i32 -> vector<16x16x128xf32>
    %c-1_i32_37 = arith.constant -1 : i32
    %72 = vector.broadcast %c-1_i32_37 : i32 to vector<1x16x1xi32>
    %73 = arith.cmpi sge, %14, %72 : vector<1x16x1xi32>
    %c15_i32_38 = arith.constant 15 : i32
    %74 = vector.broadcast %c15_i32_38 : i32 to vector<1x16x1xi32>
    %75 = arith.cmpi slt, %14, %74 : vector<1x16x1xi32>
    %76 = arith.andi %73, %75 : vector<1x16x1xi1>
    %cst_39 = arith.constant 0.000000e+00 : f32
    %77 = vector.shape_cast %76 : vector<1x16x1xi1> to vector<1x16x1xi1>
    %78 = vector.broadcast %77 : vector<1x16x1xi1> to vector<16x16x128xi1>
    %79 = vector.broadcast %cst_39 : f32 to vector<16x16x128xf32>
    %80 = arith.select %78, %71, %79 : vector<16x16x128xi1>, vector<16x16x128xf32>
    %c5 = arith.constant 5 : index
    %c0_40 = arith.constant 0 : index
    %81 = vector.load %arg5[%c5, %c0_40] : memref<9x128xf32, #tpu.memory_space<vmem>>, vector<1x128xf32>
    %82 = vector.shape_cast %81 : vector<1x128xf32> to vector<1x1x128xf32>
    %83 = vector.broadcast %82 : vector<1x1x128xf32> to vector<16x16x128xf32>
    %84 = arith.mulf %80, %83 : vector<16x16x128xf32>
    %85 = arith.addf %70, %84 : vector<16x16x128xf32>
    %c2_41 = arith.constant 2 : index
    %c0_42 = arith.constant 0 : index
    %c0_43 = arith.constant 0 : index
    %86 = vector.load %arg12[%c2_41, %c0_42, %c0_43] : memref<18x16x128xf32, #tpu.memory_space<vmem>>, vector<16x16x128xf32>
    %c1_i32_44 = arith.constant 1 : i32
    %87 = tpu.dynamic_rotate %86 by %c1_i32_44 dim 1 : vector<16x16x128xf32>, i32 -> vector<16x16x128xf32>
    %c1_i32_45 = arith.constant 1 : i32
    %88 = vector.broadcast %c1_i32_45 : i32 to vector<1x16x1xi32>
    %89 = arith.cmpi sge, %14, %88 : vector<1x16x1xi32>
    %c17_i32_46 = arith.constant 17 : i32
    %90 = vector.broadcast %c17_i32_46 : i32 to vector<1x16x1xi32>
    %91 = arith.cmpi slt, %14, %90 : vector<1x16x1xi32>
    %92 = arith.andi %89, %91 : vector<1x16x1xi1>
    %cst_47 = arith.constant 0.000000e+00 : f32
    %93 = vector.shape_cast %92 : vector<1x16x1xi1> to vector<1x16x1xi1>
    %94 = vector.broadcast %93 : vector<1x16x1xi1> to vector<16x16x128xi1>
    %95 = vector.broadcast %cst_47 : f32 to vector<16x16x128xf32>
    %96 = arith.select %94, %87, %95 : vector<16x16x128xi1>, vector<16x16x128xf32>
    %c6 = arith.constant 6 : index
    %c0_48 = arith.constant 0 : index
    %97 = vector.load %arg5[%c6, %c0_48] : memref<9x128xf32, #tpu.memory_space<vmem>>, vector<1x128xf32>
    %98 = vector.shape_cast %97 : vector<1x128xf32> to vector<1x1x128xf32>
    %99 = vector.broadcast %98 : vector<1x1x128xf32> to vector<16x16x128xf32>
    %100 = arith.mulf %96, %99 : vector<16x16x128xf32>
    %101 = arith.addf %85, %100 : vector<16x16x128xf32>
    %c7 = arith.constant 7 : index
    %c0_49 = arith.constant 0 : index
    %102 = vector.load %arg5[%c7, %c0_49] : memref<9x128xf32, #tpu.memory_space<vmem>>, vector<1x128xf32>
    %103 = vector.shape_cast %102 : vector<1x128xf32> to vector<1x1x128xf32>
    %104 = vector.broadcast %103 : vector<1x1x128xf32> to vector<16x16x128xf32>
    %105 = arith.mulf %86, %104 : vector<16x16x128xf32>
    %106 = arith.addf %101, %105 : vector<16x16x128xf32>
    %c15_i32_50 = arith.constant 15 : i32
    %107 = tpu.dynamic_rotate %86 by %c15_i32_50 dim 1 : vector<16x16x128xf32>, i32 -> vector<16x16x128xf32>
    %c-1_i32_51 = arith.constant -1 : i32
    %108 = vector.broadcast %c-1_i32_51 : i32 to vector<1x16x1xi32>
    %109 = arith.cmpi sge, %14, %108 : vector<1x16x1xi32>
    %c15_i32_52 = arith.constant 15 : i32
    %110 = vector.broadcast %c15_i32_52 : i32 to vector<1x16x1xi32>
    %111 = arith.cmpi slt, %14, %110 : vector<1x16x1xi32>
    %112 = arith.andi %109, %111 : vector<1x16x1xi1>
    %cst_53 = arith.constant 0.000000e+00 : f32
    %113 = vector.shape_cast %112 : vector<1x16x1xi1> to vector<1x16x1xi1>
    %114 = vector.broadcast %113 : vector<1x16x1xi1> to vector<16x16x128xi1>
    %115 = vector.broadcast %cst_53 : f32 to vector<16x16x128xf32>
    %116 = arith.select %114, %107, %115 : vector<16x16x128xi1>, vector<16x16x128xf32>
    %c8 = arith.constant 8 : index
    %c0_54 = arith.constant 0 : index
    %117 = vector.load %arg5[%c8, %c0_54] : memref<9x128xf32, #tpu.memory_space<vmem>>, vector<1x128xf32>
    %118 = vector.shape_cast %117 : vector<1x128xf32> to vector<1x1x128xf32>
    %119 = vector.broadcast %118 : vector<1x1x128xf32> to vector<16x16x128xf32>
    %120 = arith.mulf %116, %119 : vector<16x16x128xf32>
    %121 = arith.addf %106, %120 : vector<16x16x128xf32>
    %122 = vector.shape_cast %121 : vector<16x16x128xf32> to vector<256x128xf32>
    %c0_55 = arith.constant 0 : index
    %c0_56 = arith.constant 0 : index
    %123 = vector.load %arg6[%c0_55, %c0_56] : memref<1x128xf32, #tpu.memory_space<vmem>>, vector<1x128xf32>
    %124 = vector.broadcast %123 : vector<1x128xf32> to vector<256x128xf32>
    %125 = arith.addf %122, %124 : vector<256x128xf32>
    %cst_57 = arith.constant 0.000000e+00 : f32
    %126 = vector.broadcast %cst_57 : f32 to vector<256x128xf32>
    %127 = arith.maximumf %125, %126 : vector<256x128xf32>
    %128 = arith.truncf %127 : vector<256x128xf32> to vector<256x128xbf16>
    %c0_58 = arith.constant 0 : index
    %c0_59 = arith.constant 0 : index
    %129 = vector.load %arg7[%c0_58, %c0_59] : memref<128x128xbf16, #tpu.memory_space<vmem>>, vector<128x128xbf16>
    %cst_60 = arith.constant dense<0.000000e+00> : vector<256x128xf32>
    %130 = tpu.matmul %128, %129, %cst_60 {dimension_numbers = #tpu.dot_dimension_numbers<[1], [0], [0], [1], [0, 0, 1, 1], [], []>} : vector<256x128xbf16>, vector<128x128xbf16>, vector<256x128xf32> -> vector<256x128xf32>
    %c0_i32 = arith.constant 0 : i32
    %131 = arith.cmpi eq, %arg1, %c0_i32 : i32
    %132 = arith.extui %131 : i1 to i32
    %c0_i32_61 = arith.constant 0 : i32
    %133 = arith.cmpi ne, %132, %c0_i32_61 : i32
    scf.if %133 {
      %c0_66 = arith.constant 0 : index
      %c0_67 = arith.constant 0 : index
      %c0_68 = arith.constant 0 : index
      %140 = vector.load %arg11[%c0_66, %c0_67, %c0_68] : memref<1x256x128xf32, #tpu.memory_space<vmem>>, vector<1x256x128xf32>
      %141 = vector.shape_cast %140 : vector<1x256x128xf32> to vector<256x128xf32>
      %142 = vector.shape_cast %130 : vector<256x128xf32> to vector<1x256x128xf32>
      tpu.vector_store %arg11[%c0_66, %c0_67, %c0_68], %142 {strides = array<i32>} : memref<1x256x128xf32, #tpu.memory_space<vmem>>, vector<1x256x128xf32>,
    } else {
    }
    %c0_i32_62 = arith.constant 0 : i32
    %134 = arith.cmpi sgt, %arg1, %c0_i32_62 : i32
    %135 = arith.extui %134 : i1 to i32
    %c0_i32_63 = arith.constant 0 : i32
    %136 = arith.cmpi ne, %135, %c0_i32_63 : i32
    scf.if %136 {
      %c0_66 = arith.constant 0 : index
      %c0_67 = arith.constant 0 : index
      %c0_68 = arith.constant 0 : index
      %140 = vector.load %arg11[%c0_66, %c0_67, %c0_68] : memref<1x256x128xf32, #tpu.memory_space<vmem>>, vector<1x256x128xf32>
      %141 = vector.shape_cast %140 : vector<1x256x128xf32> to vector<256x128xf32>
      %142 = arith.addf %141, %130 : vector<256x128xf32>
      %c0_69 = arith.constant 0 : index
      %c0_70 = arith.constant 0 : index
      %c0_71 = arith.constant 0 : index
      %143 = vector.load %arg11[%c0_69, %c0_70, %c0_71] : memref<1x256x128xf32, #tpu.memory_space<vmem>>, vector<1x256x128xf32>
      %144 = vector.shape_cast %143 : vector<1x256x128xf32> to vector<256x128xf32>
      %145 = vector.shape_cast %142 : vector<256x128xf32> to vector<1x256x128xf32>
      tpu.vector_store %arg11[%c0_69, %c0_70, %c0_71], %145 {strides = array<i32>} : memref<1x256x128xf32, #tpu.memory_space<vmem>>, vector<1x256x128xf32>,
    } else {
    }
    %c0_i32_64 = arith.constant 0 : i32
    %137 = arith.cmpi eq, %arg1, %c0_i32_64 : i32
    %138 = arith.extui %137 : i1 to i32
    %c0_i32_65 = arith.constant 0 : i32
    %139 = arith.cmpi ne, %138, %c0_i32_65 : i32
    scf.if %139 {
      %c0_66 = arith.constant 0 : index
      %c0_67 = arith.constant 0 : index
      %c0_68 = arith.constant 0 : index
      %140 = vector.load %arg11[%c0_66, %c0_67, %c0_68] : memref<1x256x128xf32, #tpu.memory_space<vmem>>, vector<1x256x128xf32>
      %141 = vector.shape_cast %140 : vector<1x256x128xf32> to vector<256x128xf32>
      %c0_69 = arith.constant 0 : index
      %c0_70 = arith.constant 0 : index
      %142 = vector.load %arg8[%c0_69, %c0_70] : memref<1x128xf32, #tpu.memory_space<vmem>>, vector<1x128xf32>
      %143 = vector.broadcast %142 : vector<1x128xf32> to vector<256x128xf32>
      %144 = arith.addf %141, %143 : vector<256x128xf32>
      %c0_71 = arith.constant 0 : index
      %c0_72 = arith.constant 0 : index
      %145 = vector.load %arg9[%c0_71, %c0_72] : memref<4x128xbf16, #tpu.memory_space<vmem>>, vector<4x128xbf16>
      %cst_73 = arith.constant dense<0.000000e+00> : vector<256x128xf32>
      %146 = tpu.matmul %1, %145, %cst_73 {dimension_numbers = #tpu.dot_dimension_numbers<[1], [0], [0], [1], [0, 0, 1, 1], [], []>} : vector<256x4xbf16>, vector<4x128xbf16>, vector<256x128xf32> -> vector<256x128xf32>
      %147 = arith.addf %144, %146 : vector<256x128xf32>
      %c0_74 = arith.constant 0 : index
      %c0_75 = arith.constant 0 : index
      %148 = vector.load %arg10[%c0_74, %c0_75] : memref<1x128xf32, #tpu.memory_space<vmem>>, vector<1x128xf32>
      %149 = vector.broadcast %148 : vector<1x128xf32> to vector<256x128xf32>
      %150 = arith.addf %147, %149 : vector<256x128xf32>
      %c0_76 = arith.constant 0 : index
      %c0_77 = arith.constant 0 : index
      %c0_78 = arith.constant 0 : index
      %151 = vector.load %arg11[%c0_76, %c0_77, %c0_78] : memref<1x256x128xf32, #tpu.memory_space<vmem>>, vector<1x256x128xf32>
      %152 = vector.shape_cast %151 : vector<1x256x128xf32> to vector<256x128xf32>
      %153 = vector.shape_cast %150 : vector<256x128xf32> to vector<1x256x128xf32>
      tpu.vector_store %arg11[%c0_76, %c0_77, %c0_78], %153 {strides = array<i32>} : memref<1x256x128xf32, #tpu.memory_space<vmem>>, vector<1x256x128xf32>,
    } else {
    }
    return
  }
  func.func @transform_0(%arg0: i32, %arg1: i32) -> (i32, i32, i32) {
    %c0_i32 = arith.constant 0 : i32
    %c0_i32_0 = arith.constant 0 : i32
    %c0_i32_1 = arith.constant 0 : i32
    return %arg0, %c0_i32, %c0_i32_0 : i32, i32, i32
  }
  func.func @transform_1(%arg0: i32, %arg1: i32) -> (i32, i32) {
    %c0_i32 = arith.constant 0 : i32
    %c0_i32_0 = arith.constant 0 : i32
    return %c0_i32, %arg1 : i32, i32
  }
  func.func @transform_2(%arg0: i32, %arg1: i32) -> (i32, i32) {
    %c0_i32 = arith.constant 0 : i32
    %c0_i32_0 = arith.constant 0 : i32
    return %c0_i32, %arg1 : i32, i32
  }
  func.func @transform_3(%arg0: i32, %arg1: i32) -> (i32, i32) {
    %c0_i32 = arith.constant 0 : i32
    %c0_i32_0 = arith.constant 0 : i32
    return %c0_i32, %arg1 : i32, i32
  }
  func.func @transform_4(%arg0: i32, %arg1: i32) -> (i32, i32) {
    %c0_i32 = arith.constant 0 : i32
    %c0_i32_0 = arith.constant 0 : i32
    return %c0_i32, %arg1 : i32, i32
  }
  func.func @transform_5(%arg0: i32, %arg1: i32) -> (i32, i32) {
    %c0_i32 = arith.constant 0 : i32
    %c0_i32_0 = arith.constant 0 : i32
    return %arg1, %c0_i32 : i32, i32
  }
  func.func @transform_6(%arg0: i32, %arg1: i32) -> (i32, i32) {
    %c0_i32 = arith.constant 0 : i32
    %c0_i32_0 = arith.constant 0 : i32
    %c0_i32_1 = arith.constant 0 : i32
    return %c0_i32, %c0_i32_0 : i32, i32
  }
  func.func @transform_7(%arg0: i32, %arg1: i32) -> (i32, i32) {
    %c0_i32 = arith.constant 0 : i32
    %c0_i32_0 = arith.constant 0 : i32
    %c0_i32_1 = arith.constant 0 : i32
    return %c0_i32, %c0_i32_0 : i32, i32
  }
  func.func @transform_8(%arg0: i32, %arg1: i32) -> (i32, i32) {
    %c0_i32 = arith.constant 0 : i32
    %c0_i32_0 = arith.constant 0 : i32
    %c0_i32_1 = arith.constant 0 : i32
    return %c0_i32, %c0_i32_0 : i32, i32
  }
  func.func @transform_9(%arg0: i32, %arg1: i32) -> (i32, i32, i32) {
    %c0_i32 = arith.constant 0 : i32
    %c0_i32_0 = arith.constant 0 : i32
    %c0_i32_1 = arith.constant 0 : i32
    return %arg0, %c0_i32, %c0_i32_0 : i32, i32, i32
  }
}

</mosaic_0001>

<llo_original>
// kernel: tpu_custom_call.1
$region0: #{tpu_custom_call.1}
  #allocation0 [shape = 'u32[]', space=smem, size = 0x4, offset = 0x4, fixed_abs, tag = 'smem constant byte address 0x4 - core index']
  #allocation1 [shape = 'u32[72,128]{1,0:T(1,128)}', space=vmem, size = 0x9000, scoped, tag = 'internal scratch']
  #allocation2 [shape = 'f32[18,16,128]{2,1,0:T(8,128)}', space=vmem, size = 0x24000, scoped, tag = 'scratch operand']
  %s0 = inlined_call_operand.vmem [shape: bf16[2,256,4], index: 0, kind: input, shape index: {}]
  %s1 = inlined_call_operand.vmem [shape: bf16[4,128], index: 1, kind: input, shape index: {}]
  %s2 = inlined_call_operand.vmem [shape: f32[1,128], index: 2, kind: input, shape index: {}]
  %s3 = inlined_call_operand.vmem [shape: f32[9,128], index: 3, kind: input, shape index: {}]
  %s4 = inlined_call_operand.vmem [shape: f32[1,128], index: 4, kind: input, shape index: {}]
  %s5 = inlined_call_operand.vmem [shape: bf16[128,128], index: 5, kind: input, shape index: {}]
  %s6 = inlined_call_operand.vmem [shape: f32[1,128], index: 6, kind: input, shape index: {}]
  %s7 = inlined_call_operand.vmem [shape: bf16[4,128], index: 7, kind: input, shape index: {}]
  %s8 = inlined_call_operand.vmem [shape: f32[1,128], index: 8, kind: input, shape index: {}]
  %s9 = inlined_call_operand.hbm [shape: f32[2,256,128], index: 9, kind: output, shape index: {}]
  %s10 = sld [smem:[#allocation0]]
  $region81: #{tpu_custom_call.1} parent=0
    _
  %s12 = ssub.s32 1, %s10
  %s13 = scalar_select 0, %s12, %s10
  $region1: #{tpu_custom_call.1} parent=0
    #allocation3 [shape = 'u8[262144]{0}', space=vmem, size = 0x40000, scoped, tag = 'output window, operand 0']
    #allocation4 [shape = 's32[2]{0}', space=sflag, size = 0x8, scoped, tag = 'scoped memory for tpu_custom_call.1']
    %14 = vsyncpa [#allocation4], 0
    %s15 = scalar_lea.sflag [#allocation4], 1
    %16 = vsyncpa %s15, 0
    loop: start=0, step=1, limit=4
    $region2: #{tpu_custom_call.1} parent=1 // loop_pre_header
      _
    $region3: #{tpu_custom_call.1} parent=1 // loop_header
      %s18 = sphi 0, %s22
      %p19 = scmp.ge.s32.totalorder %s18, 4
      %s25 = sphi 0, %s37
      %s26 = sphi 0, %s33
      %s27 = sphi 0, %s25
      %s28 = sphi 0, %s26
      %s29 = sphi 0, %s27
      %s30 = sphi 0, %s28
      %s40 = sphi 0, %s42
      %s43 = sphi 0, %s40
      %s44 = sphi 0, %s43
      %s60 = sphi 0, %s44
      %s66 = sphi 0, %s68
      %s69 = sphi 0, %s66
      %s70 = sphi 0, %s69
      %s86 = sphi 0, %s70
      %s92 = sphi 0, %s94
      %s95 = sphi 0, %s92
      %s96 = sphi 0, %s95
      %s112 = sphi 0, %s96
      %s118 = sphi 0, %s120
      %s121 = sphi 0, %s118
      %s122 = sphi 0, %s121
      %s138 = sphi 0, %s122
      %s144 = sphi 0, %s146
      %s147 = sphi 0, %s144
      %s148 = sphi 0, %s147
      %s164 = sphi 0, %s148
      %s170 = sphi 0, %s172
      %s173 = sphi 0, %s170
      %s174 = sphi 0, %s173
      %s190 = sphi 0, %s174
      %s194 = sphi 0, %s194
      %s196 = sphi 0, %s194
      %s197 = sphi 0, %s196
      %s211 = sphi 0, %s197
      %s215 = sphi 0, %s215
      %s217 = sphi 0, %s215
      %s218 = sphi 0, %s217
      %s232 = sphi 0, %s218
      %s236 = sphi 0, %s236
      %s238 = sphi 0, %s236
      %s239 = sphi 0, %s238
      %s253 = sphi 0, %s239
      %s259 = sphi 0, %s261
      %s262 = sphi 0, %s259
      %s263 = sphi 0, %s262
      %s279 = sphi 0, %s263
    $region4: #{tpu_custom_call.1} parent=1 // loop_header_branch
      %21 = sbr.rel (%p19) target = $region8
    $region5: #{tpu_custom_call.1} parent=1 // loop_body
      %s23 = ssub.s32 %s18, 1
      %s24 = ssub.s32 %s18, 2
      %s31 = sadd.s32 1, %s26
      %p32 = scmp.ge.s32.totalorder %s31, 1
      %s33 = scalar_select %p32, 0, %s31
      %s34 = sadd.s32 1, %s25
      %s35 = scalar_select %p32, %s34, %s25
      %p36 = scmp.ge.s32.totalorder %s35, 2
      %s37 = scalar_select %p36, 0, %s35
      %s38 = ssub.s32 %s25, %s37
      %p39 = scmp.eq.s32.totalorder %s38, 0
      %s41 = sadd.s32 %s40, 1
      %s42 = scalar_select %p39, %s40, %s41
      %p45 = pneg %p39
      %p46 = scmp.eq.s32.totalorder %s18, 1
      %p47 = por %p45, %p46
      %p48 = scmp.ne.s32.totalorder %s40, %s43
      %p49 = scmp.eq.s32.totalorder %s18, 0
      %p50 = por %p48, %p49
      %p51 = scmp.ne.s32.totalorder %s40, %s43
      %p52 = scmp.eq.s32.totalorder %s23, 1
      %p53 = por %p51, %p52
      %p54 = scmp.ne.s32.totalorder %s43, %s44
      %p55 = scmp.eq.s32.totalorder %s23, 0
      %p56 = por %p54, %p55
      %p57 = scmp.ne.s32.totalorder %s43, %s44
      %p58 = scmp.eq.s32.totalorder %s24, 1
      %p59 = por %p57, %p58
      %p61 = scmp.ne.s32.totalorder %s44, %s60
      %p62 = scmp.eq.s32.totalorder %s24, 0
      %p63 = por %p61, %p62
      %s64 = ssub.s32 %s26, %s33
      %p65 = scmp.eq.s32.totalorder %s64, 0
      %s67 = sadd.s32 %s66, 1
      %s68 = scalar_select %p65, %s66, %s67
      %p71 = pneg %p65
      %p72 = scmp.eq.s32.totalorder %s18, 1
      %p73 = por %p71, %p72
      %p74 = scmp.ne.s32.totalorder %s66, %s69
      %p75 = scmp.eq.s32.totalorder %s18, 0
      %p76 = por %p74, %p75
      %p77 = scmp.ne.s32.totalorder %s66, %s69
      %p78 = scmp.eq.s32.totalorder %s23, 1
      %p79 = por %p77, %p78
      %p80 = scmp.ne.s32.totalorder %s69, %s70
      %p81 = scmp.eq.s32.totalorder %s23, 0
      %p82 = por %p80, %p81
      %p83 = scmp.ne.s32.totalorder %s69, %s70
      %p84 = scmp.eq.s32.totalorder %s24, 1
      %p85 = por %p83, %p84
      %p87 = scmp.ne.s32.totalorder %s70, %s86
      %p88 = scmp.eq.s32.totalorder %s24, 0
      %p89 = por %p87, %p88
      %s90 = ssub.s32 %s26, %s33
      %p91 = scmp.eq.s32.totalorder %s90, 0
      %s93 = sadd.s32 %s92, 1
      %s94 = scalar_select %p91, %s92, %s93
      %p97 = pneg %p91
      %p98 = scmp.eq.s32.totalorder %s18, 1
      %p99 = por %p97, %p98
      %p100 = scmp.ne.s32.totalorder %s92, %s95
      %p101 = scmp.eq.s32.totalorder %s18, 0
      %p102 = por %p100, %p101
      %p103 = scmp.ne.s32.totalorder %s92, %s95
      %p104 = scmp.eq.s32.totalorder %s23, 1
      %p105 = por %p103, %p104
      %p106 = scmp.ne.s32.totalorder %s95, %s96
      %p107 = scmp.eq.s32.totalorder %s23, 0
      %p108 = por %p106, %p107
      %p109 = scmp.ne.s32.totalorder %s95, %s96
      %p110 = scmp.eq.s32.totalorder %s24, 1
      %p111 = por %p109, %p110
      %p113 = scmp.ne.s32.totalorder %s96, %s112
      %p114 = scmp.eq.s32.totalorder %s24, 0
      %p115 = por %p113, %p114
      %s116 = ssub.s32 %s26, %s33
      %p117 = scmp.eq.s32.totalorder %s116, 0
      %s119 = sadd.s32 %s118, 1
      %s120 = scalar_select %p117, %s118, %s119
      %p123 = pneg %p117
      %p124 = scmp.eq.s32.totalorder %s18, 1
      %p125 = por %p123, %p124
      %p126 = scmp.ne.s32.totalorder %s118, %s121
      %p127 = scmp.eq.s32.totalorder %s18, 0
      %p128 = por %p126, %p127
      %p129 = scmp.ne.s32.totalorder %s118, %s121
      %p130 = scmp.eq.s32.totalorder %s23, 1
      %p131 = por %p129, %p130
      %p132 = scmp.ne.s32.totalorder %s121, %s122
      %p133 = scmp.eq.s32.totalorder %s23, 0
      %p134 = por %p132, %p133
      %p135 = scmp.ne.s32.totalorder %s121, %s122
      %p136 = scmp.eq.s32.totalorder %s24, 1
      %p137 = por %p135, %p136
      %p139 = scmp.ne.s32.totalorder %s122, %s138
      %p140 = scmp.eq.s32.totalorder %s24, 0
      %p141 = por %p139, %p140
      %s142 = ssub.s32 %s26, %s33
      %p143 = scmp.eq.s32.totalorder %s142, 0
      %s145 = sadd.s32 %s144, 1
      %s146 = scalar_select %p143, %s144, %s145
      %p149 = pneg %p143
      %p150 = scmp.eq.s32.totalorder %s18, 1
      %p151 = por %p149, %p150
      %p152 = scmp.ne.s32.totalorder %s144, %s147
      %p153 = scmp.eq.s32.totalorder %s18, 0
      %p154 = por %p152, %p153
      %p155 = scmp.ne.s32.totalorder %s144, %s147
      %p156 = scmp.eq.s32.totalorder %s23, 1
      %p157 = por %p155, %p156
      %p158 = scmp.ne.s32.totalorder %s147, %s148
      %p159 = scmp.eq.s32.totalorder %s23, 0
      %p160 = por %p158, %p159
      %p161 = scmp.ne.s32.totalorder %s147, %s148
      %p162 = scmp.eq.s32.totalorder %s24, 1
      %p163 = por %p161, %p162
      %p165 = scmp.ne.s32.totalorder %s148, %s164
      %p166 = scmp.eq.s32.totalorder %s24, 0
      %p167 = por %p165, %p166
      %s168 = ssub.s32 %s26, %s33
      %p169 = scmp.eq.s32.totalorder %s168, 0
      %s171 = sadd.s32 %s170, 1
      %s172 = scalar_select %p169, %s170, %s171
      %p175 = pneg %p169
      %p176 = scmp.eq.s32.totalorder %s18, 1
      %p177 = por %p175, %p176
      %p178 = scmp.ne.s32.totalorder %s170, %s173
      %p179 = scmp.eq.s32.totalorder %s18, 0
      %p180 = por %p178, %p179
      %p181 = scmp.ne.s32.totalorder %s170, %s173
      %p182 = scmp.eq.s32.totalorder %s23, 1
      %p183 = por %p181, %p182
      %p184 = scmp.ne.s32.totalorder %s173, %s174
      %p185 = scmp.eq.s32.totalorder %s23, 0
      %p186 = por %p184, %p185
      %p187 = scmp.ne.s32.totalorder %s173, %s174
      %p188 = scmp.eq.s32.totalorder %s24, 1
      %p189 = por %p187, %p188
      %p191 = scmp.ne.s32.totalorder %s174, %s190
      %p192 = scmp.eq.s32.totalorder %s24, 0
      %p193 = por %p191, %p192
      %s195 = sadd.s32 %s194, 1
      %p198 = scmp.eq.s32.totalorder %s18, 1
      %p199 = scmp.ne.s32.totalorder %s194, %s196
      %p200 = scmp.eq.s32.totalorder %s18, 0
      %p201 = por %p199, %p200
      %p202 = scmp.ne.s32.totalorder %s194, %s196
      %p203 = scmp.eq.s32.totalorder %s23, 1
      %p204 = por %p202, %p203
      %p205 = scmp.ne.s32.totalorder %s196, %s197
      %p206 = scmp.eq.s32.totalorder %s23, 0
      %p207 = por %p205, %p206
      %p208 = scmp.ne.s32.totalorder %s196, %s197
      %p209 = scmp.eq.s32.totalorder %s24, 1
      %p210 = por %p208, %p209
      %p212 = scmp.ne.s32.totalorder %s197, %s211
      %p213 = scmp.eq.s32.totalorder %s24, 0
      %p214 = por %p212, %p213
      %s216 = sadd.s32 %s215, 1
      %p219 = scmp.eq.s32.totalorder %s18, 1
      %p220 = scmp.ne.s32.totalorder %s215, %s217
      %p221 = scmp.eq.s32.totalorder %s18, 0
      %p222 = por %p220, %p221
      %p223 = scmp.ne.s32.totalorder %s215, %s217
      %p224 = scmp.eq.s32.totalorder %s23, 1
      %p225 = por %p223, %p224
      %p226 = scmp.ne.s32.totalorder %s217, %s218
      %p227 = scmp.eq.s32.totalorder %s23, 0
      %p228 = por %p226, %p227
      %p229 = scmp.ne.s32.totalorder %s217, %s218
      %p230 = scmp.eq.s32.totalorder %s24, 1
      %p231 = por %p229, %p230
      %p233 = scmp.ne.s32.totalorder %s218, %s232
      %p234 = scmp.eq.s32.totalorder %s24, 0
      %p235 = por %p233, %p234
      %s237 = sadd.s32 %s236, 1
      %p240 = scmp.eq.s32.totalorder %s18, 1
      %p241 = scmp.ne.s32.totalorder %s236, %s238
      %p242 = scmp.eq.s32.totalorder %s18, 0
      %p243 = por %p241, %p242
      %p244 = scmp.ne.s32.totalorder %s236, %s238
      %p245 = scmp.eq.s32.totalorder %s23, 1
      %p246 = por %p244, %p245
      %p247 = scmp.ne.s32.totalorder %s238, %s239
      %p248 = scmp.eq.s32.totalorder %s23, 0
      %p249 = por %p247, %p248
      %p250 = scmp.ne.s32.totalorder %s238, %s239
      %p251 = scmp.eq.s32.totalorder %s24, 1
      %p252 = por %p250, %p251
      %p254 = scmp.ne.s32.totalorder %s239, %s253
      %p255 = scmp.eq.s32.totalorder %s24, 0
      %p256 = por %p254, %p255
      %s257 = ssub.s32 %s25, %s37
      %p258 = scmp.eq.s32.totalorder %s257, 0
      %s260 = sadd.s32 %s259, 1
      %s261 = scalar_select %p258, %s259, %s260
      %p264 = pneg %p258
      %p265 = scmp.eq.s32.totalorder %s18, 1
      %p266 = por %p264, %p265
      %p267 = scmp.ne.s32.totalorder %s259, %s262
      %p268 = scmp.eq.s32.totalorder %s18, 0
      %p269 = por %p267, %p268
      %p270 = scmp.ne.s32.totalorder %s259, %s262
      %p271 = scmp.eq.s32.totalorder %s23, 1
      %p272 = por %p270, %p271
      %p273 = scmp.ne.s32.totalorder %s262, %s263
      %p274 = scmp.eq.s32.totalorder %s23, 0
      %p275 = por %p273, %p274
      %p276 = scmp.ne.s32.totalorder %s262, %s263
      %p277 = scmp.eq.s32.totalorder %s24, 1
      %p278 = por %p276, %p277
      %p280 = scmp.ne.s32.totalorder %s263, %s279
      %p281 = scmp.eq.s32.totalorder %s24, 0
      %p282 = por %p280, %p281
      %p283 = scmp.le.s32.totalorder 1, %s18
      %p284 = scmp.lt.s32.totalorder %s18, 3
      %p285 = pnand %p283, %p284
      %p286 = pneg %p285
      // Predicated region
      $region9: #{tpu_custom_call.1} parent=5 // pred_check
        _
      $region10: #{tpu_custom_call.1} parent=5 // pred_check_branch
        %288 = sbr.rel (%p285) target = $region12
      $region11: #{tpu_custom_call.1} parent=5 // pred_region
        %s289 = ssub.s32 %s18, 1
        // Predicated region
        $region13: #{tpu_custom_call.1} parent=11 // pred_check
          %p290 = pneg %p82
        $region14: #{tpu_custom_call.1} parent=11 // pred_check_branch
          %292 = sbr.rel (%p290) target = $region16
        $region15: #{tpu_custom_call.1} parent=11 // pred_region
          %p293 = scmp.lt.s32.totalorder %s28, 0
          %s294 = scalar_select %p293, %s28, 0
          %s295 = smul.addr %s294, 2
          %s296 = scalar_lea.vmem %s1, %s295
        $region16: #{tpu_custom_call.1} parent=11 // pred_fallthru
          _
        // Predicated region
        $region17: #{tpu_custom_call.1} parent=11 // pred_check
          %p297 = pneg %p108
        $region18: #{tpu_custom_call.1} parent=11 // pred_check_branch
          %299 = sbr.rel (%p297) target = $region20
        $region19: #{tpu_custom_call.1} parent=11 // pred_region
          %p300 = scmp.lt.s32.totalorder %s28, 0
          %s301 = scalar_select %p300, %s28, 0
          %s302 = scalar_lea.vmem %s2, %s301
        $region20: #{tpu_custom_call.1} parent=11 // pred_fallthru
          _
        // Predicated region
        $region21: #{tpu_custom_call.1} parent=11 // pred_check
          %p303 = pneg %p134
        $region22: #{tpu_custom_call.1} parent=11 // pred_check_branch
          %305 = sbr.rel (%p303) target = $region24
        $region23: #{tpu_custom_call.1} parent=11 // pred_region
          %p306 = scmp.lt.s32.totalorder %s28, 0
          %s307 = scalar_select %p306, %s28, 0
          %s308 = smul.addr %s307, 8
          %s309 = scalar_lea.vmem %s3, %s308
        $region24: #{tpu_custom_call.1} parent=11 // pred_fallthru
          _
        // Predicated region
        $region25: #{tpu_custom_call.1} parent=11 // pred_check
          %p310 = pneg %p160
        $region26: #{tpu_custom_call.1} parent=11 // pred_check_branch
          %312 = sbr.rel (%p310) target = $region28
        $region27: #{tpu_custom_call.1} parent=11 // pred_region
          %p313 = scmp.lt.s32.totalorder %s28, 0
          %s314 = scalar_select %p313, %s28, 0
          %s315 = scalar_lea.vmem %s4, %s314
        $region28: #{tpu_custom_call.1} parent=11 // pred_fallthru
          _
        // Predicated region
        $region29: #{tpu_custom_call.1} parent=11 // pred_check
          %p316 = pneg %p186
        $region30: #{tpu_custom_call.1} parent=11 // pred_check_branch
          %318 = sbr.rel (%p316) target = $region32
        $region31: #{tpu_custom_call.1} parent=11 // pred_region
          %s319 = smul.u32 16, %s28
          %p320 = scmp.lt.s32.totalorder %s319, 15
          %s321 = scalar_select %p320, %s319, 15
          %s322 = smul.addr %s321, 4
          %s323 = scalar_lea.vmem %s5, %s322
          %s324 = smul.u32 16, %s28
        $region32: #{tpu_custom_call.1} parent=11 // pred_fallthru
          _
        // Predicated region
        $region33: #{tpu_custom_call.1} parent=11 // pred_check
          %p325 = pneg %p207
        $region34: #{tpu_custom_call.1} parent=11 // pred_check_branch
          %327 = sbr.rel (%p325) target = $region36
        $region35: #{tpu_custom_call.1} parent=11 // pred_region
          _
        $region36: #{tpu_custom_call.1} parent=11 // pred_fallthru
          _
        // Predicated region
        $region37: #{tpu_custom_call.1} parent=11 // pred_check
          %p328 = pneg %p228
        $region38: #{tpu_custom_call.1} parent=11 // pred_check_branch
          %330 = sbr.rel (%p328) target = $region40
        $region39: #{tpu_custom_call.1} parent=11 // pred_region
          _
        $region40: #{tpu_custom_call.1} parent=11 // pred_fallthru
          _
        // Predicated region
        $region41: #{tpu_custom_call.1} parent=11 // pred_check
          %p331 = pneg %p249
        $region42: #{tpu_custom_call.1} parent=11 // pred_check_branch
          %333 = sbr.rel (%p331) target = $region44
        $region43: #{tpu_custom_call.1} parent=11 // pred_region
          _
        $region44: #{tpu_custom_call.1} parent=11 // pred_fallthru
          _
      $region12: #{tpu_custom_call.1} parent=5 // pred_fallthru
        _
      %p334 = scmp.lt.s32.totalorder %s18, 2
      // Predicated region
      $region45: #{tpu_custom_call.1} parent=5 // pred_check
        %p335 = pneg %p334
      $region46: #{tpu_custom_call.1} parent=5 // pred_check_branch
        %337 = sbr.rel (%p335) target = $region48
      $region47: #{tpu_custom_call.1} parent=5 // pred_region
        // Predicated region
        $region49: #{tpu_custom_call.1} parent=47 // pred_check
          %p338 = pneg %p50
        $region50: #{tpu_custom_call.1} parent=47 // pred_check_branch
          %340 = sbr.rel (%p338) target = $region52
        $region51: #{tpu_custom_call.1} parent=47 // pred_region
          %p341 = scmp.lt.s32.totalorder %s25, 1
          %s342 = scalar_select %p341, %s25, 1
          %s343 = smul.addr %s342, 32
          %s344 = smul.addr %s343, 4
          %s345 = scalar_lea.vmem %s0, %s344
        $region52: #{tpu_custom_call.1} parent=47 // pred_fallthru
          _
      $region48: #{tpu_custom_call.1} parent=5 // pred_fallthru
        _
      %p346 = scmp.le.s32.totalorder 1, %s18
      %p347 = scmp.lt.s32.totalorder %s18, 3
      %p348 = pnand %p346, %p347
      %p349 = pneg %p348
      // Predicated region
      $region53: #{tpu_custom_call.1} parent=5 // pred_check
        _
      $region54: #{tpu_custom_call.1} parent=5 // pred_check_branch
        %351 = sbr.rel (%p348) target = $region56
      $region55: #{tpu_custom_call.1} parent=5 // pred_region
        %s352 = ssub.s32 %s18, 1
        %p353 = scmp.lt.s32.totalorder %s27, 1
        %s354 = scalar_select %p353, %s27, 1
        %s355 = smul.addr %s354, 32
        %s356 = smul.addr %s355, 4
        %s357 = scalar_lea.vmem %s0, %s356
        %p358 = pneg %p56
        %p359 = pneg %p53
        %p360 = scmp.lt.s32.totalorder %s28, 0
        %s361 = scalar_select %p360, %s28, 0
        %s362 = smul.addr %s361, 2
        %s363 = scalar_lea.vmem %s1, %s362
        %p364 = pneg %p82
        %p365 = pneg %p79
        %p366 = scmp.lt.s32.totalorder %s28, 0
        %s367 = scalar_select %p366, %s28, 0
        %s368 = scalar_lea.vmem %s2, %s367
        %p369 = pneg %p108
        %p370 = pneg %p105
        %p371 = scmp.lt.s32.totalorder %s28, 0
        %s372 = scalar_select %p371, %s28, 0
        %s373 = smul.addr %s372, 8
        %s374 = scalar_lea.vmem %s3, %s373
        %p375 = pneg %p134
        %p376 = pneg %p131
        %p377 = scmp.lt.s32.totalorder %s28, 0
        %s378 = scalar_select %p377, %s28, 0
        %s379 = scalar_lea.vmem %s4, %s378
        %p380 = pneg %p160
        %p381 = pneg %p157
        %s382 = smul.u32 16, %s28
        %p383 = scmp.lt.s32.totalorder %s382, 15
        %s384 = scalar_select %p383, %s382, 15
        %s385 = smul.addr %s384, 4
        %s386 = scalar_lea.vmem %s5, %s385
        %p387 = pneg %p186
        %p388 = pneg %p183
        %p389 = pneg %p207
        %p390 = pneg %p204
        %p391 = pneg %p228
        %p392 = pneg %p225
        %p393 = pneg %p249
        %p394 = pneg %p246
        %p395 = pneg %p275
        %p396 = pneg %p272
        %s397 = sand.u32 %s262, 1
        %s398 = scalar_lea.sflag [#allocation4], %s397
        %s399 = sand.u32 %s262, 1
        %s400 = smul.addr %s399, 256
        %s401 = scalar_lea.vmem [#allocation3], %s400
        %p402 = scmp.lt.s32.totalorder %s27, 1
        %s403 = scalar_select %p402, %s27, 1
        %s404 = smul.addr %s403, 32
        %s405 = smul.addr %s404, 4
        %s406 = scalar_lea.vmem %s0, %s405
        %p407 = scmp.lt.s32.totalorder %s28, 0
        %s408 = scalar_select %p407, %s28, 0
        %s409 = smul.addr %s408, 2
        %s410 = scalar_lea.vmem %s1, %s409
        %p411 = scmp.lt.s32.totalorder %s28, 0
        %s412 = scalar_select %p411, %s28, 0
        %s413 = scalar_lea.vmem %s2, %s412
        %p414 = scmp.lt.s32.totalorder %s28, 0
        %s415 = scalar_select %p414, %s28, 0
        %s416 = smul.addr %s415, 8
        %s417 = scalar_lea.vmem %s3, %s416
        %p418 = scmp.lt.s32.totalorder %s28, 0
        %s419 = scalar_select %p418, %s28, 0
        %s420 = scalar_lea.vmem %s4, %s419
        %s421 = smul.u32 16, %s28
        %p422 = scmp.lt.s32.totalorder %s421, 15
        %s423 = scalar_select %p422, %s421, 15
        %s424 = smul.addr %s423, 4
        %s425 = scalar_lea.vmem %s5, %s424
        %s426 = smul.u32 16, %s28
        %v428 = vld [vmem:[%s406] sm:$0xf]
        %v429 = vld [vmem:[%s406 + $0x4] sm:$0xf]
        %v430 = vld [vmem:[%s406 + $0x8] sm:$0xf]
        %v431 = vld [vmem:[%s406 + $0xc] sm:$0xf]
        %v432 = vld [vmem:[%s406 + $0x10] sm:$0xf]
        %v433 = vld [vmem:[%s406 + $0x14] sm:$0xf]
        %v434 = vld [vmem:[%s406 + $0x18] sm:$0xf]
        %v435 = vld [vmem:[%s406 + $0x1c] sm:$0xf]
        %v436 = vld [vmem:[%s406 + $0x20] sm:$0xf]
        %v437 = vld [vmem:[%s406 + $0x24] sm:$0xf]
        %v438 = vld [vmem:[%s406 + $0x28] sm:$0xf]
        %v439 = vld [vmem:[%s406 + $0x2c] sm:$0xf]
        %v440 = vld [vmem:[%s406 + $0x30] sm:$0xf]
        %v441 = vld [vmem:[%s406 + $0x34] sm:$0xf]
        %v442 = vld [vmem:[%s406 + $0x38] sm:$0xf]
        %v443 = vld [vmem:[%s406 + $0x3c] sm:$0xf]
        %v444 = vld [vmem:[%s406 + $0x40] sm:$0xf]
        %v445 = vld [vmem:[%s406 + $0x44] sm:$0xf]
        %v446 = vld [vmem:[%s406 + $0x48] sm:$0xf]
        %v447 = vld [vmem:[%s406 + $0x4c] sm:$0xf]
        %v448 = vld [vmem:[%s406 + $0x50] sm:$0xf]
        %v449 = vld [vmem:[%s406 + $0x54] sm:$0xf]
        %v450 = vld [vmem:[%s406 + $0x58] sm:$0xf]
        %v451 = vld [vmem:[%s406 + $0x5c] sm:$0xf]
        %v452 = vld [vmem:[%s406 + $0x60] sm:$0xf]
        %v453 = vld [vmem:[%s406 + $0x64] sm:$0xf]
        %v454 = vld [vmem:[%s406 + $0x68] sm:$0xf]
        %v455 = vld [vmem:[%s406 + $0x6c] sm:$0xf]
        %v456 = vld [vmem:[%s406 + $0x70] sm:$0xf]
        %v457 = vld [vmem:[%s406 + $0x74] sm:$0xf]
        %v458 = vld [vmem:[%s406 + $0x78] sm:$0xf]
        %v459 = vld [vmem:[%s406 + $0x7c] sm:$0xf]
        %v460 = vld [vmem:[%s410] sm:$0x3]
        %v461 = vld [vmem:[%s413] sm:$0x1]
        %v463 = vperm.slane %v461, 0
        %v497 = vunpack.c.l.b16 %v428
        %v498 = vunpack.c.l.b16 %v429
        %v499 = vunpack.c.l.b16 %v430
        %v500 = vunpack.c.l.b16 %v431
        %v501 = vunpack.c.l.b16 %v432
        %v502 = vunpack.c.l.b16 %v433
        %v503 = vunpack.c.l.b16 %v434
        %v504 = vunpack.c.l.b16 %v435
        %v505 = vunpack.c.l.b16 %v436
        %v506 = vunpack.c.l.b16 %v437
        %v507 = vunpack.c.l.b16 %v438
        %v508 = vunpack.c.l.b16 %v439
        %v509 = vunpack.c.l.b16 %v440
        %v510 = vunpack.c.l.b16 %v441
        %v511 = vunpack.c.l.b16 %v442
        %v512 = vunpack.c.l.b16 %v443
        %v513 = vunpack.c.l.b16 %v444
        %v514 = vunpack.c.l.b16 %v445
        %v515 = vunpack.c.l.b16 %v446
        %v516 = vunpack.c.l.b16 %v447
        %v517 = vunpack.c.l.b16 %v448
        %v518 = vunpack.c.l.b16 %v449
        %v519 = vunpack.c.l.b16 %v450
        %v520 = vunpack.c.l.b16 %v451
        %v521 = vunpack.c.l.b16 %v452
        %v522 = vunpack.c.l.b16 %v453
        %v523 = vunpack.c.l.b16 %v454
        %v524 = vunpack.c.l.b16 %v455
        %v525 = vunpack.c.l.b16 %v456
        %v526 = vunpack.c.l.b16 %v457
        %v527 = vunpack.c.l.b16 %v458
        %v528 = vunpack.c.l.b16 %v459
        %v529 = vpack.c.b16 %v498, %v497
        %v530 = vpack.c.b16 %v500, %v499
        %v531 = vpack.c.b16 %v502, %v501
        %v532 = vpack.c.b16 %v504, %v503
        %v533 = vpack.c.b16 %v506, %v505
        %v534 = vpack.c.b16 %v508, %v507
        %v535 = vpack.c.b16 %v510, %v509
        %v536 = vpack.c.b16 %v512, %v511
        %v537 = vpack.c.b16 %v514, %v513
        %v538 = vpack.c.b16 %v516, %v515
        %v539 = vpack.c.b16 %v518, %v517
        %v540 = vpack.c.b16 %v520, %v519
        %v541 = vpack.c.b16 %v522, %v521
        %v542 = vpack.c.b16 %v524, %v523
        %v543 = vpack.c.b16 %v526, %v525
        %v544 = vpack.c.b16 %v528, %v527
        %vm545 = vcmask 31744
        %v547 = vsel %vm545, %v529, 0
        %v550 = vsel %vm545, %v530, 0
        %v553 = vsel %vm545, %v531, 0
        %v556 = vsel %vm545, %v532, 0
        %v559 = vsel %vm545, %v533, 0
        %v562 = vsel %vm545, %v534, 0
        %v565 = vsel %vm545, %v535, 0
        %v568 = vsel %vm545, %v536, 0
        %v571 = vsel %vm545, %v537, 0
        %v574 = vsel %vm545, %v538, 0
        %v577 = vsel %vm545, %v539, 0
        %v580 = vsel %vm545, %v540, 0
        %v583 = vsel %vm545, %v541, 0
        %v586 = vsel %vm545, %v542, 0
        %v589 = vsel %vm545, %v543, 0
        %v592 = vsel %vm545, %v544, 0
        %vm594 = vcmask 1041408
        %v596 = vsel %vm594, %v460, 0
        %598 = vmatpush.bf16.msra.mxu0 0
        %599 = vmatpush.bf16.msra.mxu0 0
        %600 = vmatpush.bf16.msra.mxu0 0
        %601 = vmatpush.bf16.msra.mxu0 0
        %602 = vmatpush.bf16.msra.mxu0 0
        %603 = vmatpush.bf16.msra.mxu0 0
        %604 = vmatpush.bf16.msra.mxu0 0
        %605 = vmatpush.bf16.msra.mxu0 %v596
        %606 = vmatmul.bf16.gmra.mxu0 %v547
        %v607 = vpop.f32.mrf.mxu0
        %v608 = vadd.f32 %v463, %v607
        %v609 = vpop.f32.mrf.mxu0
        %v610 = vadd.f32 %v463, %v609
        %611 = vmatmul.bf16.gmra.mxu0 %v550
        %v612 = vpop.f32.mrf.mxu0
        %v613 = vadd.f32 %v463, %v612
        %v614 = vpop.f32.mrf.mxu0
        %v615 = vadd.f32 %v463, %v614
        %616 = vmatmul.bf16.gmra.mxu0 %v553
        %v617 = vpop.f32.mrf.mxu0
        %v618 = vadd.f32 %v463, %v617
        %v619 = vpop.f32.mrf.mxu0
        %v620 = vadd.f32 %v463, %v619
        %621 = vmatmul.bf16.gmra.mxu0 %v556
        %v622 = vpop.f32.mrf.mxu0
        %v623 = vadd.f32 %v463, %v622
        %v624 = vpop.f32.mrf.mxu0
        %v625 = vadd.f32 %v463, %v624
        %626 = vmatmul.bf16.gmra.mxu0 %v559
        %v627 = vpop.f32.mrf.mxu0
        %v628 = vadd.f32 %v463, %v627
        %v629 = vpop.f32.mrf.mxu0
        %v630 = vadd.f32 %v463, %v629
        %631 = vmatmul.bf16.gmra.mxu0 %v562
        %v632 = vpop.f32.mrf.mxu0
        %v633 = vadd.f32 %v463, %v632
        %v634 = vpop.f32.mrf.mxu0
        %v635 = vadd.f32 %v463, %v634
        %636 = vmatmul.bf16.gmra.mxu0 %v565
        %v637 = vpop.f32.mrf.mxu0
        %v638 = vadd.f32 %v463, %v637
        %v639 = vpop.f32.mrf.mxu0
        %v640 = vadd.f32 %v463, %v639
        %641 = vmatmul.bf16.gmra.mxu0 %v568
        %v642 = vpop.f32.mrf.mxu0
        %v643 = vadd.f32 %v463, %v642
        %v644 = vpop.f32.mrf.mxu0
        %v645 = vadd.f32 %v463, %v644
        %646 = vmatmul.bf16.gmra.mxu0 %v571
        %v647 = vpop.f32.mrf.mxu0
        %v648 = vadd.f32 %v463, %v647
        %v649 = vpop.f32.mrf.mxu0
        %v650 = vadd.f32 %v463, %v649
        %651 = vmatmul.bf16.gmra.mxu0 %v574
        %v652 = vpop.f32.mrf.mxu0
        %v653 = vadd.f32 %v463, %v652
        %v654 = vpop.f32.mrf.mxu0
        %v655 = vadd.f32 %v463, %v654
        %656 = vmatmul.bf16.gmra.mxu0 %v577
        %v657 = vpop.f32.mrf.mxu0
        %v658 = vadd.f32 %v463, %v657
        %v659 = vpop.f32.mrf.mxu0
        %v660 = vadd.f32 %v463, %v659
        %661 = vmatmul.bf16.gmra.mxu0 %v580
        %v662 = vpop.f32.mrf.mxu0
        %v663 = vadd.f32 %v463, %v662
        %v664 = vpop.f32.mrf.mxu0
        %v665 = vadd.f32 %v463, %v664
        %666 = vmatmul.bf16.gmra.mxu0 %v583
        %v667 = vpop.f32.mrf.mxu0
        %v668 = vadd.f32 %v463, %v667
        %v669 = vpop.f32.mrf.mxu0
        %v670 = vadd.f32 %v463, %v669
        %671 = vmatmul.bf16.gmra.mxu0 %v586
        %v672 = vpop.f32.mrf.mxu0
        %v673 = vadd.f32 %v463, %v672
        %v674 = vpop.f32.mrf.mxu0
        %v675 = vadd.f32 %v463, %v674
        %676 = vmatmul.bf16.gmra.mxu0 %v589
        %v677 = vpop.f32.mrf.mxu0
        %v678 = vadd.f32 %v463, %v677
        %v679 = vpop.f32.mrf.mxu0
        %v680 = vadd.f32 %v463, %v679
        %681 = vmatmul.bf16.gmra.mxu0 %v592
        %v682 = vpop.f32.mrf.mxu0
        %v683 = vadd.f32 %v463, %v682
        %v684 = vpop.f32.mrf.mxu0
        %v685 = vadd.f32 %v463, %v684
        %686 = vdwg.mxu0
        %v687 = vmax.f32 %v608, 0.0
        %v688 = vmax.f32 %v610, 0.0
        %v689 = vmax.f32 %v613, 0.0
        %v690 = vmax.f32 %v615, 0.0
        %v691 = vmax.f32 %v618, 0.0
        %v692 = vmax.f32 %v620, 0.0
        %v693 = vmax.f32 %v623, 0.0
        %v694 = vmax.f32 %v625, 0.0
        %v695 = vmax.f32 %v628, 0.0
        %v696 = vmax.f32 %v630, 0.0
        %v697 = vmax.f32 %v633, 0.0
        %v698 = vmax.f32 %v635, 0.0
        %v699 = vmax.f32 %v638, 0.0
        %v700 = vmax.f32 %v640, 0.0
        %v701 = vmax.f32 %v643, 0.0
        %v702 = vmax.f32 %v645, 0.0
        %v703 = vmax.f32 %v648, 0.0
        %v704 = vmax.f32 %v650, 0.0
        %v705 = vmax.f32 %v653, 0.0
        %v706 = vmax.f32 %v655, 0.0
        %v707 = vmax.f32 %v658, 0.0
        %v708 = vmax.f32 %v660, 0.0
        %v709 = vmax.f32 %v663, 0.0
        %v710 = vmax.f32 %v665, 0.0
        %v711 = vmax.f32 %v668, 0.0
        %v712 = vmax.f32 %v670, 0.0
        %v713 = vmax.f32 %v673, 0.0
        %v714 = vmax.f32 %v675, 0.0
        %v715 = vmax.f32 %v678, 0.0
        %v716 = vmax.f32 %v680, 0.0
        %v717 = vmax.f32 %v683, 0.0
        %v718 = vmax.f32 %v685, 0.0
        %719 = vst [vmem:[#allocation2] sm:$0xff] 0.0
        %720 = vst [vmem:[#allocation2 + $0x8] sm:$0xff] 0.0
        %s721 = scalar_lea.vmem [#allocation2], 272
        %722 = vst [vmem:[%s721] sm:$0xff] 0.0
        %723 = vst [vmem:[%s721 + $0x8] sm:$0xff] 0.0
        %s724 = scalar_lea.vmem [#allocation2], 16
        %725 = vst [vmem:[%s724] sm:$0xff] %v687
        %726 = vst [vmem:[%s724 + $0x8] sm:$0xff] %v688
        %727 = vst [vmem:[%s724 + $0x10] sm:$0xff] %v689
        %728 = vst [vmem:[%s724 + $0x18] sm:$0xff] %v690
        %729 = vst [vmem:[%s724 + $0x20] sm:$0xff] %v691
        %730 = vst [vmem:[%s724 + $0x28] sm:$0xff] %v692
        %731 = vst [vmem:[%s724 + $0x30] sm:$0xff] %v693
        %732 = vst [vmem:[%s724 + $0x38] sm:$0xff] %v694
        %733 = vst [vmem:[%s724 + $0x40] sm:$0xff] %v695
        %734 = vst [vmem:[%s724 + $0x48] sm:$0xff] %v696
        %735 = vst [vmem:[%s724 + $0x50] sm:$0xff] %v697
        %736 = vst [vmem:[%s724 + $0x58] sm:$0xff] %v698
        %737 = vst [vmem:[%s724 + $0x60] sm:$0xff] %v699
        %738 = vst [vmem:[%s724 + $0x68] sm:$0xff] %v700
        %739 = vst [vmem:[%s724 + $0x70] sm:$0xff] %v701
        %740 = vst [vmem:[%s724 + $0x78] sm:$0xff] %v702
        %741 = vst [vmem:[%s724 + $0x80] sm:$0xff] %v703
        %742 = vst [vmem:[%s724 + $0x88] sm:$0xff] %v704
        %743 = vst [vmem:[%s724 + $0x90] sm:$0xff] %v705
        %744 = vst [vmem:[%s724 + $0x98] sm:$0xff] %v706
        %745 = vst [vmem:[%s724 + $0xa0] sm:$0xff] %v707
        %746 = vst [vmem:[%s724 + $0xa8] sm:$0xff] %v708
        %747 = vst [vmem:[%s724 + $0xb0] sm:$0xff] %v709
        %748 = vst [vmem:[%s724 + $0xb8] sm:$0xff] %v710
        %749 = vst [vmem:[%s724 + $0xc0] sm:$0xff] %v711
        %750 = vst [vmem:[%s724 + $0xc8] sm:$0xff] %v712
        %751 = vst [vmem:[%s724 + $0xd0] sm:$0xff] %v713
        %752 = vst [vmem:[%s724 + $0xd8] sm:$0xff] %v714
        %753 = vst [vmem:[%s724 + $0xe0] sm:$0xff] %v715
        %754 = vst [vmem:[%s724 + $0xe8] sm:$0xff] %v716
        %755 = vst [vmem:[%s724 + $0xf0] sm:$0xff] %v717
        %756 = vst [vmem:[%s724 + $0xf8] sm:$0xff] %v718
        %v757 = vlaneseq
        %v758 = vshrl.u32 %v757, 7
        %v759 = vadd.s32 %v758, 8
        %v760 = vld [vmem:[%s724] sm:$0xff]
        %v761 = vld [vmem:[%s724 + $0x8] sm:$0xff]
        %v762 = vld [vmem:[%s724 + $0x10] sm:$0xff]
        %v763 = vld [vmem:[%s724 + $0x18] sm:$0xff]
        %v764 = vld [vmem:[%s724 + $0x20] sm:$0xff]
        %v765 = vld [vmem:[%s724 + $0x28] sm:$0xff]
        %v766 = vld [vmem:[%s724 + $0x30] sm:$0xff]
        %v767 = vld [vmem:[%s724 + $0x38] sm:$0xff]
        %v768 = vld [vmem:[%s724 + $0x40] sm:$0xff]
        %v769 = vld [vmem:[%s724 + $0x48] sm:$0xff]
        %v770 = vld [vmem:[%s724 + $0x50] sm:$0xff]
        %v771 = vld [vmem:[%s724 + $0x58] sm:$0xff]
        %v772 = vld [vmem:[%s724 + $0x60] sm:$0xff]
        %v773 = vld [vmem:[%s724 + $0x68] sm:$0xff]
        %v774 = vld [vmem:[%s724 + $0x70] sm:$0xff]
        %v775 = vld [vmem:[%s724 + $0x78] sm:$0xff]
        %v776 = vld [vmem:[%s724 + $0x80] sm:$0xff]
        %v777 = vld [vmem:[%s724 + $0x88] sm:$0xff]
        %v778 = vld [vmem:[%s724 + $0x90] sm:$0xff]
        %v779 = vld [vmem:[%s724 + $0x98] sm:$0xff]
        %v780 = vld [vmem:[%s724 + $0xa0] sm:$0xff]
        %v781 = vld [vmem:[%s724 + $0xa8] sm:$0xff]
        %v782 = vld [vmem:[%s724 + $0xb0] sm:$0xff]
        %v783 = vld [vmem:[%s724 + $0xb8] sm:$0xff]
        %v784 = vld [vmem:[%s724 + $0xc0] sm:$0xff]
        %v785 = vld [vmem:[%s724 + $0xc8] sm:$0xff]
        %v786 = vld [vmem:[%s724 + $0xd0] sm:$0xff]
        %v787 = vld [vmem:[%s724 + $0xd8] sm:$0xff]
        %v788 = vld [vmem:[%s724 + $0xe0] sm:$0xff]
        %v789 = vld [vmem:[%s724 + $0xe8] sm:$0xff]
        %v790 = vld [vmem:[%s724 + $0xf0] sm:$0xff]
        %v791 = vld [vmem:[%s724 + $0xf8] sm:$0xff]
        %v792 = vld [vmem:[%s417 + $0x4] sm:$0x1]
        %v793 = vperm.slane %v792, 0
        %v794 = vmul.f32 %v760, %v793
        %v795 = vmul.f32 %v761, %v793
        %v796 = vmul.f32 %v762, %v793
        %v797 = vmul.f32 %v763, %v793
        %v798 = vmul.f32 %v764, %v793
        %v799 = vmul.f32 %v765, %v793
        %v800 = vmul.f32 %v766, %v793
        %v801 = vmul.f32 %v767, %v793
        %v802 = vmul.f32 %v768, %v793
        %v803 = vmul.f32 %v769, %v793
        %v804 = vmul.f32 %v770, %v793
        %v805 = vmul.f32 %v771, %v793
        %v806 = vmul.f32 %v772, %v793
        %v807 = vmul.f32 %v773, %v793
        %v808 = vmul.f32 %v774, %v793
        %v809 = vmul.f32 %v775, %v793
        %v810 = vmul.f32 %v776, %v793
        %v811 = vmul.f32 %v777, %v793
        %v812 = vmul.f32 %v778, %v793
        %v813 = vmul.f32 %v779, %v793
        %v814 = vmul.f32 %v780, %v793
        %v815 = vmul.f32 %v781, %v793
        %v816 = vmul.f32 %v782, %v793
        %v817 = vmul.f32 %v783, %v793
        %v818 = vmul.f32 %v784, %v793
        %v819 = vmul.f32 %v785, %v793
        %v820 = vmul.f32 %v786, %v793
        %v821 = vmul.f32 %v787, %v793
        %v822 = vmul.f32 %v788, %v793
        %v823 = vmul.f32 %v789, %v793
        %v824 = vmul.f32 %v790, %v793
        %v825 = vmul.f32 %v791, %v793
        %v826 = vld [vmem:[#allocation2] sm:$0xff]
        %v827 = vld [vmem:[#allocation2 + $0x8] sm:$0xff]
        %v828 = vld [vmem:[#allocation2 + $0x10] sm:$0xff]
        %v829 = vld [vmem:[#allocation2 + $0x18] sm:$0xff]
        %v830 = vld [vmem:[#allocation2 + $0x20] sm:$0xff]
        %v831 = vld [vmem:[#allocation2 + $0x28] sm:$0xff]
        %v832 = vld [vmem:[#allocation2 + $0x30] sm:$0xff]
        %v833 = vld [vmem:[#allocation2 + $0x38] sm:$0xff]
        %v834 = vld [vmem:[#allocation2 + $0x40] sm:$0xff]
        %v835 = vld [vmem:[#allocation2 + $0x48] sm:$0xff]
        %v836 = vld [vmem:[#allocation2 + $0x50] sm:$0xff]
        %v837 = vld [vmem:[#allocation2 + $0x58] sm:$0xff]
        %v838 = vld [vmem:[#allocation2 + $0x60] sm:$0xff]
        %v839 = vld [vmem:[#allocation2 + $0x68] sm:$0xff]
        %v840 = vld [vmem:[#allocation2 + $0x70] sm:$0xff]
        %v841 = vld [vmem:[#allocation2 + $0x78] sm:$0xff]
        %v842 = vld [vmem:[#allocation2 + $0x80] sm:$0xff]
        %v843 = vld [vmem:[#allocation2 + $0x88] sm:$0xff]
        %v844 = vld [vmem:[#allocation2 + $0x90] sm:$0xff]
        %v845 = vld [vmem:[#allocation2 + $0x98] sm:$0xff]
        %v846 = vld [vmem:[#allocation2 + $0xa0] sm:$0xff]
        %v847 = vld [vmem:[#allocation2 + $0xa8] sm:$0xff]
        %v848 = vld [vmem:[#allocation2 + $0xb0] sm:$0xff]
        %v849 = vld [vmem:[#allocation2 + $0xb8] sm:$0xff]
        %v850 = vld [vmem:[#allocation2 + $0xc0] sm:$0xff]
        %v851 = vld [vmem:[#allocation2 + $0xc8] sm:$0xff]
        %v852 = vld [vmem:[#allocation2 + $0xd0] sm:$0xff]
        %v853 = vld [vmem:[#allocation2 + $0xd8] sm:$0xff]
        %v854 = vld [vmem:[#allocation2 + $0xe0] sm:$0xff]
        %v855 = vld [vmem:[#allocation2 + $0xe8] sm:$0xff]
        %v856 = vld [vmem:[#allocation2 + $0xf0] sm:$0xff]
        %v857 = vld [vmem:[#allocation2 + $0xf8] sm:$0xff]
        %v858 = vrot.slane %v826, 7
        %v859 = vrot.slane %v828, 7
        %v860 = vrot.slane %v830, 7
        %v861 = vrot.slane %v832, 7
        %v862 = vrot.slane %v834, 7
        %v863 = vrot.slane %v836, 7
        %v864 = vrot.slane %v838, 7
        %v865 = vrot.slane %v840, 7
        %v866 = vrot.slane %v842, 7
        %v867 = vrot.slane %v844, 7
        %v868 = vrot.slane %v846, 7
        %v869 = vrot.slane %v848, 7
        %v870 = vrot.slane %v850, 7
        %v871 = vrot.slane %v852, 7
        %v872 = vrot.slane %v854, 7
        %v873 = vrot.slane %v856, 7
        %v874 = vrot.slane %v827, 7
        %v875 = vrot.slane %v829, 7
        %v876 = vrot.slane %v831, 7
        %v877 = vrot.slane %v833, 7
        %v878 = vrot.slane %v835, 7
        %v879 = vrot.slane %v837, 7
        %v880 = vrot.slane %v839, 7
        %v881 = vrot.slane %v841, 7
        %v882 = vrot.slane %v843, 7
        %v883 = vrot.slane %v845, 7
        %v884 = vrot.slane %v847, 7
        %v885 = vrot.slane %v849, 7
        %v886 = vrot.slane %v851, 7
        %v887 = vrot.slane %v853, 7
        %v888 = vrot.slane %v855, 7
        %v889 = vrot.slane %v857, 7
        %vm890 = vcmp.lt.s32.totalorder %v758, 1
        %v891 = vsel %vm890, %v858, %v874
        %v892 = vsel %vm890, %v859, %v875
        %v893 = vsel %vm890, %v860, %v876
        %v894 = vsel %vm890, %v861, %v877
        %v895 = vsel %vm890, %v862, %v878
        %v896 = vsel %vm890, %v863, %v879
        %v897 = vsel %vm890, %v864, %v880
        %v898 = vsel %vm890, %v865, %v881
        %v899 = vsel %vm890, %v866, %v882
        %v900 = vsel %vm890, %v867, %v883
        %v901 = vsel %vm890, %v868, %v884
        %v902 = vsel %vm890, %v869, %v885
        %v903 = vsel %vm890, %v870, %v886
        %v904 = vsel %vm890, %v871, %v887
        %v905 = vsel %vm890, %v872, %v888
        %v906 = vsel %vm890, %v873, %v889
        %v907 = vsel %vm890, %v874, %v858
        %v908 = vsel %vm890, %v875, %v859
        %v909 = vsel %vm890, %v876, %v860
        %v910 = vsel %vm890, %v877, %v861
        %v911 = vsel %vm890, %v878, %v862
        %v912 = vsel %vm890, %v879, %v863
        %v913 = vsel %vm890, %v880, %v864
        %v914 = vsel %vm890, %v881, %v865
        %v915 = vsel %vm890, %v882, %v866
        %v916 = vsel %vm890, %v883, %v867
        %v917 = vsel %vm890, %v884, %v868
        %v918 = vsel %vm890, %v885, %v869
        %v919 = vsel %vm890, %v886, %v870
        %v920 = vsel %vm890, %v887, %v871
        %v921 = vsel %vm890, %v888, %v872
        %v922 = vsel %vm890, %v889, %v873
        %vm923 = vcmp.ge.s32.totalorder %v758, 1
        %vm924 = vcmp.ge.s32.totalorder %v759, 1
        %vm925 = vcmp.lt.s32.totalorder %v758, 17
        %vm926 = vcmp.lt.s32.totalorder %v759, 17
        %vm927 = vmand %vm923, %vm925
        %vm928 = vmand %vm924, %vm926
        %v929 = vsel %vm927, 1, 0
        %v930 = vsel %vm928, 1, 0
        %vm931 = vcmp.eq.s32.totalorder %v929, 1
        %vm932 = vcmp.eq.s32.totalorder %v930, 1
        %v933 = vsel %vm931, %v907, 0.0
        %v934 = vsel %vm932, %v891, 0.0
        %v935 = vsel %vm931, %v908, 0.0
        %v936 = vsel %vm932, %v892, 0.0
        %v937 = vsel %vm931, %v909, 0.0
        %v938 = vsel %vm932, %v893, 0.0
        %v939 = vsel %vm931, %v910, 0.0
        %v940 = vsel %vm932, %v894, 0.0
        %v941 = vsel %vm931, %v911, 0.0
        %v942 = vsel %vm932, %v895, 0.0
        %v943 = vsel %vm931, %v912, 0.0
        %v944 = vsel %vm932, %v896, 0.0
        %v945 = vsel %vm931, %v913, 0.0
        %v946 = vsel %vm932, %v897, 0.0
        %v947 = vsel %vm931, %v914, 0.0
        %v948 = vsel %vm932, %v898, 0.0
        %v949 = vsel %vm931, %v915, 0.0
        %v950 = vsel %vm932, %v899, 0.0
        %v951 = vsel %vm931, %v916, 0.0
        %v952 = vsel %vm932, %v900, 0.0
        %v953 = vsel %vm931, %v917, 0.0
        %v954 = vsel %vm932, %v901, 0.0
        %v955 = vsel %vm931, %v918, 0.0
        %v956 = vsel %vm932, %v902, 0.0
        %v957 = vsel %vm931, %v919, 0.0
        %v958 = vsel %vm932, %v903, 0.0
        %v959 = vsel %vm931, %v920, 0.0
        %v960 = vsel %vm932, %v904, 0.0
        %v961 = vsel %vm931, %v921, 0.0
        %v962 = vsel %vm932, %v905, 0.0
        %v963 = vsel %vm931, %v922, 0.0
        %v964 = vsel %vm932, %v906, 0.0
        %v965 = vld [vmem:[%s417] sm:$0x1]
        %v966 = vperm.slane %v965, 0
        %v967 = vmul.f32 %v933, %v966
        %v968 = vmul.f32 %v934, %v966
        %v969 = vmul.f32 %v935, %v966
        %v970 = vmul.f32 %v936, %v966
        %v971 = vmul.f32 %v937, %v966
        %v972 = vmul.f32 %v938, %v966
        %v973 = vmul.f32 %v939, %v966
        %v974 = vmul.f32 %v940, %v966
        %v975 = vmul.f32 %v941, %v966
        %v976 = vmul.f32 %v942, %v966
        %v977 = vmul.f32 %v943, %v966
        %v978 = vmul.f32 %v944, %v966
        %v979 = vmul.f32 %v945, %v966
        %v980 = vmul.f32 %v946, %v966
        %v981 = vmul.f32 %v947, %v966
        %v982 = vmul.f32 %v948, %v966
        %v983 = vmul.f32 %v949, %v966
        %v984 = vmul.f32 %v950, %v966
        %v985 = vmul.f32 %v951, %v966
        %v986 = vmul.f32 %v952, %v966
        %v987 = vmul.f32 %v953, %v966
        %v988 = vmul.f32 %v954, %v966
        %v989 = vmul.f32 %v955, %v966
        %v990 = vmul.f32 %v956, %v966
        %v991 = vmul.f32 %v957, %v966
        %v992 = vmul.f32 %v958, %v966
        %v993 = vmul.f32 %v959, %v966
        %v994 = vmul.f32 %v960, %v966
        %v995 = vmul.f32 %v961, %v966
        %v996 = vmul.f32 %v962, %v966
        %v997 = vmul.f32 %v963, %v966
        %v998 = vmul.f32 %v964, %v966
        %v999 = vadd.f32 %v794, %v967
        %v1000 = vadd.f32 %v795, %v968
        %v1001 = vadd.f32 %v796, %v969
        %v1002 = vadd.f32 %v797, %v970
        %v1003 = vadd.f32 %v798, %v971
        %v1004 = vadd.f32 %v799, %v972
        %v1005 = vadd.f32 %v800, %v973
        %v1006 = vadd.f32 %v801, %v974
        %v1007 = vadd.f32 %v802, %v975
        %v1008 = vadd.f32 %v803, %v976
        %v1009 = vadd.f32 %v804, %v977
        %v1010 = vadd.f32 %v805, %v978
        %v1011 = vadd.f32 %v806, %v979
        %v1012 = vadd.f32 %v807, %v980
        %v1013 = vadd.f32 %v808, %v981
        %v1014 = vadd.f32 %v809, %v982
        %v1015 = vadd.f32 %v810, %v983
        %v1016 = vadd.f32 %v811, %v984
        %v1017 = vadd.f32 %v812, %v985
        %v1018 = vadd.f32 %v813, %v986
        %v1019 = vadd.f32 %v814, %v987
        %v1020 = vadd.f32 %v815, %v988
        %v1021 = vadd.f32 %v816, %v989
        %v1022 = vadd.f32 %v817, %v990
        %v1023 = vadd.f32 %v818, %v991
        %v1024 = vadd.f32 %v819, %v992
        %v1025 = vadd.f32 %v820, %v993
        %v1026 = vadd.f32 %v821, %v994
        %v1027 = vadd.f32 %v822, %v995
        %v1028 = vadd.f32 %v823, %v996
        %v1029 = vadd.f32 %v824, %v997
        %v1030 = vadd.f32 %v825, %v998
        %v1031 = vld [vmem:[%s417 + $0x1] sm:$0x1]
        %v1032 = vperm.slane %v1031, 0
        %v1033 = vmul.f32 %v826, %v1032
        %v1034 = vmul.f32 %v827, %v1032
        %v1035 = vmul.f32 %v828, %v1032
        %v1036 = vmul.f32 %v829, %v1032
        %v1037 = vmul.f32 %v830, %v1032
        %v1038 = vmul.f32 %v831, %v1032
        %v1039 = vmul.f32 %v832, %v1032
        %v1040 = vmul.f32 %v833, %v1032
        %v1041 = vmul.f32 %v834, %v1032
        %v1042 = vmul.f32 %v835, %v1032
        %v1043 = vmul.f32 %v836, %v1032
        %v1044 = vmul.f32 %v837, %v1032
        %v1045 = vmul.f32 %v838, %v1032
        %v1046 = vmul.f32 %v839, %v1032
        %v1047 = vmul.f32 %v840, %v1032
        %v1048 = vmul.f32 %v841, %v1032
        %v1049 = vmul.f32 %v842, %v1032
        %v1050 = vmul.f32 %v843, %v1032
        %v1051 = vmul.f32 %v844, %v1032
        %v1052 = vmul.f32 %v845, %v1032
        %v1053 = vmul.f32 %v846, %v1032
        %v1054 = vmul.f32 %v847, %v1032
        %v1055 = vmul.f32 %v848, %v1032
        %v1056 = vmul.f32 %v849, %v1032
        %v1057 = vmul.f32 %v850, %v1032
        %v1058 = vmul.f32 %v851, %v1032
        %v1059 = vmul.f32 %v852, %v1032
        %v1060 = vmul.f32 %v853, %v1032
        %v1061 = vmul.f32 %v854, %v1032
        %v1062 = vmul.f32 %v855, %v1032
        %v1063 = vmul.f32 %v856, %v1032
        %v1064 = vmul.f32 %v857, %v1032
        %v1065 = vadd.f32 %v999, %v1033
        %v1066 = vadd.f32 %v1000, %v1034
        %v1067 = vadd.f32 %v1001, %v1035
        %v1068 = vadd.f32 %v1002, %v1036
        %v1069 = vadd.f32 %v1003, %v1037
        %v1070 = vadd.f32 %v1004, %v1038
        %v1071 = vadd.f32 %v1005, %v1039
        %v1072 = vadd.f32 %v1006, %v1040
        %v1073 = vadd.f32 %v1007, %v1041
        %v1074 = vadd.f32 %v1008, %v1042
        %v1075 = vadd.f32 %v1009, %v1043
        %v1076 = vadd.f32 %v1010, %v1044
        %v1077 = vadd.f32 %v1011, %v1045
        %v1078 = vadd.f32 %v1012, %v1046
        %v1079 = vadd.f32 %v1013, %v1047
        %v1080 = vadd.f32 %v1014, %v1048
        %v1081 = vadd.f32 %v1015, %v1049
        %v1082 = vadd.f32 %v1016, %v1050
        %v1083 = vadd.f32 %v1017, %v1051
        %v1084 = vadd.f32 %v1018, %v1052
        %v1085 = vadd.f32 %v1019, %v1053
        %v1086 = vadd.f32 %v1020, %v1054
        %v1087 = vadd.f32 %v1021, %v1055
        %v1088 = vadd.f32 %v1022, %v1056
        %v1089 = vadd.f32 %v1023, %v1057
        %v1090 = vadd.f32 %v1024, %v1058
        %v1091 = vadd.f32 %v1025, %v1059
        %v1092 = vadd.f32 %v1026, %v1060
        %v1093 = vadd.f32 %v1027, %v1061
        %v1094 = vadd.f32 %v1028, %v1062
        %v1095 = vadd.f32 %v1029, %v1063
        %v1096 = vadd.f32 %v1030, %v1064
        %v1097 = vrot.slane %v826, 1
        %v1098 = vrot.slane %v828, 1
        %v1099 = vrot.slane %v830, 1
        %v1100 = vrot.slane %v832, 1
        %v1101 = vrot.slane %v834, 1
        %v1102 = vrot.slane %v836, 1
        %v1103 = vrot.slane %v838, 1
        %v1104 = vrot.slane %v840, 1
        %v1105 = vrot.slane %v842, 1
        %v1106 = vrot.slane %v844, 1
        %v1107 = vrot.slane %v846, 1
        %v1108 = vrot.slane %v848, 1
        %v1109 = vrot.slane %v850, 1
        %v1110 = vrot.slane %v852, 1
        %v1111 = vrot.slane %v854, 1
        %v1112 = vrot.slane %v856, 1
        %v1113 = vrot.slane %v827, 1
        %v1114 = vrot.slane %v829, 1
        %v1115 = vrot.slane %v831, 1
        %v1116 = vrot.slane %v833, 1
        %v1117 = vrot.slane %v835, 1
        %v1118 = vrot.slane %v837, 1
        %v1119 = vrot.slane %v839, 1
        %v1120 = vrot.slane %v841, 1
        %v1121 = vrot.slane %v843, 1
        %v1122 = vrot.slane %v845, 1
        %v1123 = vrot.slane %v847, 1
        %v1124 = vrot.slane %v849, 1
        %v1125 = vrot.slane %v851, 1
        %v1126 = vrot.slane %v853, 1
        %v1127 = vrot.slane %v855, 1
        %v1128 = vrot.slane %v857, 1
        %vm1129 = vcmp.lt.s32.totalorder %v758, 7
        %v1130 = vsel %vm1129, %v1097, %v1113
        %v1131 = vsel %vm1129, %v1098, %v1114
        %v1132 = vsel %vm1129, %v1099, %v1115
        %v1133 = vsel %vm1129, %v1100, %v1116
        %v1134 = vsel %vm1129, %v1101, %v1117
        %v1135 = vsel %vm1129, %v1102, %v1118
        %v1136 = vsel %vm1129, %v1103, %v1119
        %v1137 = vsel %vm1129, %v1104, %v1120
        %v1138 = vsel %vm1129, %v1105, %v1121
        %v1139 = vsel %vm1129, %v1106, %v1122
        %v1140 = vsel %vm1129, %v1107, %v1123
        %v1141 = vsel %vm1129, %v1108, %v1124
        %v1142 = vsel %vm1129, %v1109, %v1125
        %v1143 = vsel %vm1129, %v1110, %v1126
        %v1144 = vsel %vm1129, %v1111, %v1127
        %v1145 = vsel %vm1129, %v1112, %v1128
        %v1146 = vsel %vm1129, %v1113, %v1097
        %v1147 = vsel %vm1129, %v1114, %v1098
        %v1148 = vsel %vm1129, %v1115, %v1099
        %v1149 = vsel %vm1129, %v1116, %v1100
        %v1150 = vsel %vm1129, %v1117, %v1101
        %v1151 = vsel %vm1129, %v1118, %v1102
        %v1152 = vsel %vm1129, %v1119, %v1103
        %v1153 = vsel %vm1129, %v1120, %v1104
        %v1154 = vsel %vm1129, %v1121, %v1105
        %v1155 = vsel %vm1129, %v1122, %v1106
        %v1156 = vsel %vm1129, %v1123, %v1107
        %v1157 = vsel %vm1129, %v1124, %v1108
        %v1158 = vsel %vm1129, %v1125, %v1109
        %v1159 = vsel %vm1129, %v1126, %v1110
        %v1160 = vsel %vm1129, %v1127, %v1111
        %v1161 = vsel %vm1129, %v1128, %v1112
        %vm1162 = vcmp.ge.s32.totalorder %v758, 4294967295
        %vm1163 = vcmp.ge.s32.totalorder %v759, 4294967295
        %vm1164 = vcmp.lt.s32.totalorder %v758, 15
        %vm1165 = vcmp.lt.s32.totalorder %v759, 15
        %vm1166 = vmand %vm1162, %vm1164
        %vm1167 = vmand %vm1163, %vm1165
        %v1168 = vsel %vm1166, 1, 0
        %v1169 = vsel %vm1167, 1, 0
        %vm1170 = vcmp.eq.s32.totalorder %v1168, 1
        %vm1171 = vcmp.eq.s32.totalorder %v1169, 1
        %v1172 = vsel %vm1170, %v1130, 0.0
        %v1173 = vsel %vm1171, %v1146, 0.0
        %v1174 = vsel %vm1170, %v1131, 0.0
        %v1175 = vsel %vm1171, %v1147, 0.0
        %v1176 = vsel %vm1170, %v1132, 0.0
        %v1177 = vsel %vm1171, %v1148, 0.0
        %v1178 = vsel %vm1170, %v1133, 0.0
        %v1179 = vsel %vm1171, %v1149, 0.0
        %v1180 = vsel %vm1170, %v1134, 0.0
        %v1181 = vsel %vm1171, %v1150, 0.0
        %v1182 = vsel %vm1170, %v1135, 0.0
        %v1183 = vsel %vm1171, %v1151, 0.0
        %v1184 = vsel %vm1170, %v1136, 0.0
        %v1185 = vsel %vm1171, %v1152, 0.0
        %v1186 = vsel %vm1170, %v1137, 0.0
        %v1187 = vsel %vm1171, %v1153, 0.0
        %v1188 = vsel %vm1170, %v1138, 0.0
        %v1189 = vsel %vm1171, %v1154, 0.0
        %v1190 = vsel %vm1170, %v1139, 0.0
        %v1191 = vsel %vm1171, %v1155, 0.0
        %v1192 = vsel %vm1170, %v1140, 0.0
        %v1193 = vsel %vm1171, %v1156, 0.0
        %v1194 = vsel %vm1170, %v1141, 0.0
        %v1195 = vsel %vm1171, %v1157, 0.0
        %v1196 = vsel %vm1170, %v1142, 0.0
        %v1197 = vsel %vm1171, %v1158, 0.0
        %v1198 = vsel %vm1170, %v1143, 0.0
        %v1199 = vsel %vm1171, %v1159, 0.0
        %v1200 = vsel %vm1170, %v1144, 0.0
        %v1201 = vsel %vm1171, %v1160, 0.0
        %v1202 = vsel %vm1170, %v1145, 0.0
        %v1203 = vsel %vm1171, %v1161, 0.0
        %v1204 = vld [vmem:[%s417 + $0x2] sm:$0x1]
        %v1205 = vperm.slane %v1204, 0
        %v1206 = vmul.f32 %v1172, %v1205
        %v1207 = vmul.f32 %v1173, %v1205
        %v1208 = vmul.f32 %v1174, %v1205
        %v1209 = vmul.f32 %v1175, %v1205
        %v1210 = vmul.f32 %v1176, %v1205
        %v1211 = vmul.f32 %v1177, %v1205
        %v1212 = vmul.f32 %v1178, %v1205
        %v1213 = vmul.f32 %v1179, %v1205
        %v1214 = vmul.f32 %v1180, %v1205
        %v1215 = vmul.f32 %v1181, %v1205
        %v1216 = vmul.f32 %v1182, %v1205
        %v1217 = vmul.f32 %v1183, %v1205
        %v1218 = vmul.f32 %v1184, %v1205
        %v1219 = vmul.f32 %v1185, %v1205
        %v1220 = vmul.f32 %v1186, %v1205
        %v1221 = vmul.f32 %v1187, %v1205
        %v1222 = vmul.f32 %v1188, %v1205
        %v1223 = vmul.f32 %v1189, %v1205
        %v1224 = vmul.f32 %v1190, %v1205
        %v1225 = vmul.f32 %v1191, %v1205
        %v1226 = vmul.f32 %v1192, %v1205
        %v1227 = vmul.f32 %v1193, %v1205
        %v1228 = vmul.f32 %v1194, %v1205
        %v1229 = vmul.f32 %v1195, %v1205
        %v1230 = vmul.f32 %v1196, %v1205
        %v1231 = vmul.f32 %v1197, %v1205
        %v1232 = vmul.f32 %v1198, %v1205
        %v1233 = vmul.f32 %v1199, %v1205
        %v1234 = vmul.f32 %v1200, %v1205
        %v1235 = vmul.f32 %v1201, %v1205
        %v1236 = vmul.f32 %v1202, %v1205
        %v1237 = vmul.f32 %v1203, %v1205
        %v1238 = vadd.f32 %v1065, %v1206
        %v1239 = vadd.f32 %v1066, %v1207
        %v1240 = vadd.f32 %v1067, %v1208
        %v1241 = vadd.f32 %v1068, %v1209
        %v1242 = vadd.f32 %v1069, %v1210
        %v1243 = vadd.f32 %v1070, %v1211
        %v1244 = vadd.f32 %v1071, %v1212
        %v1245 = vadd.f32 %v1072, %v1213
        %v1246 = vadd.f32 %v1073, %v1214
        %v1247 = vadd.f32 %v1074, %v1215
        %v1248 = vadd.f32 %v1075, %v1216
        %v1249 = vadd.f32 %v1076, %v1217
        %v1250 = vadd.f32 %v1077, %v1218
        %v1251 = vadd.f32 %v1078, %v1219
        %v1252 = vadd.f32 %v1079, %v1220
        %v1253 = vadd.f32 %v1080, %v1221
        %v1254 = vadd.f32 %v1081, %v1222
        %v1255 = vadd.f32 %v1082, %v1223
        %v1256 = vadd.f32 %v1083, %v1224
        %v1257 = vadd.f32 %v1084, %v1225
        %v1258 = vadd.f32 %v1085, %v1226
        %v1259 = vadd.f32 %v1086, %v1227
        %v1260 = vadd.f32 %v1087, %v1228
        %v1261 = vadd.f32 %v1088, %v1229
        %v1262 = vadd.f32 %v1089, %v1230
        %v1263 = vadd.f32 %v1090, %v1231
        %v1264 = vadd.f32 %v1091, %v1232
        %v1265 = vadd.f32 %v1092, %v1233
        %v1266 = vadd.f32 %v1093, %v1234
        %v1267 = vadd.f32 %v1094, %v1235
        %v1268 = vadd.f32 %v1095, %v1236
        %v1269 = vadd.f32 %v1096, %v1237
        %v1270 = vrot.slane %v760, 7
        %v1271 = vrot.slane %v762, 7
        %v1272 = vrot.slane %v764, 7
        %v1273 = vrot.slane %v766, 7
        %v1274 = vrot.slane %v768, 7
        %v1275 = vrot.slane %v770, 7
        %v1276 = vrot.slane %v772, 7
        %v1277 = vrot.slane %v774, 7
        %v1278 = vrot.slane %v776, 7
        %v1279 = vrot.slane %v778, 7
        %v1280 = vrot.slane %v780, 7
        %v1281 = vrot.slane %v782, 7
        %v1282 = vrot.slane %v784, 7
        %v1283 = vrot.slane %v786, 7
        %v1284 = vrot.slane %v788, 7
        %v1285 = vrot.slane %v790, 7
        %v1286 = vrot.slane %v761, 7
        %v1287 = vrot.slane %v763, 7
        %v1288 = vrot.slane %v765, 7
        %v1289 = vrot.slane %v767, 7
        %v1290 = vrot.slane %v769, 7
        %v1291 = vrot.slane %v771, 7
        %v1292 = vrot.slane %v773, 7
        %v1293 = vrot.slane %v775, 7
        %v1294 = vrot.slane %v777, 7
        %v1295 = vrot.slane %v779, 7
        %v1296 = vrot.slane %v781, 7
        %v1297 = vrot.slane %v783, 7
        %v1298 = vrot.slane %v785, 7
        %v1299 = vrot.slane %v787, 7
        %v1300 = vrot.slane %v789, 7
        %v1301 = vrot.slane %v791, 7
        %v1302 = vsel %vm890, %v1270, %v1286
        %v1303 = vsel %vm890, %v1271, %v1287
        %v1304 = vsel %vm890, %v1272, %v1288
        %v1305 = vsel %vm890, %v1273, %v1289
        %v1306 = vsel %vm890, %v1274, %v1290
        %v1307 = vsel %vm890, %v1275, %v1291
        %v1308 = vsel %vm890, %v1276, %v1292
        %v1309 = vsel %vm890, %v1277, %v1293
        %v1310 = vsel %vm890, %v1278, %v1294
        %v1311 = vsel %vm890, %v1279, %v1295
        %v1312 = vsel %vm890, %v1280, %v1296
        %v1313 = vsel %vm890, %v1281, %v1297
        %v1314 = vsel %vm890, %v1282, %v1298
        %v1315 = vsel %vm890, %v1283, %v1299
        %v1316 = vsel %vm890, %v1284, %v1300
        %v1317 = vsel %vm890, %v1285, %v1301
        %v1318 = vsel %vm890, %v1286, %v1270
        %v1319 = vsel %vm890, %v1287, %v1271
        %v1320 = vsel %vm890, %v1288, %v1272
        %v1321 = vsel %vm890, %v1289, %v1273
        %v1322 = vsel %vm890, %v1290, %v1274
        %v1323 = vsel %vm890, %v1291, %v1275
        %v1324 = vsel %vm890, %v1292, %v1276
        %v1325 = vsel %vm890, %v1293, %v1277
        %v1326 = vsel %vm890, %v1294, %v1278
        %v1327 = vsel %vm890, %v1295, %v1279
        %v1328 = vsel %vm890, %v1296, %v1280
        %v1329 = vsel %vm890, %v1297, %v1281
        %v1330 = vsel %vm890, %v1298, %v1282
        %v1331 = vsel %vm890, %v1299, %v1283
        %v1332 = vsel %vm890, %v1300, %v1284
        %v1333 = vsel %vm890, %v1301, %v1285
        %v1334 = vsel %vm931, %v1318, 0.0
        %v1335 = vsel %vm932, %v1302, 0.0
        %v1336 = vsel %vm931, %v1319, 0.0
        %v1337 = vsel %vm932, %v1303, 0.0
        %v1338 = vsel %vm931, %v1320, 0.0
        %v1339 = vsel %vm932, %v1304, 0.0
        %v1340 = vsel %vm931, %v1321, 0.0
        %v1341 = vsel %vm932, %v1305, 0.0
        %v1342 = vsel %vm931, %v1322, 0.0
        %v1343 = vsel %vm932, %v1306, 0.0
        %v1344 = vsel %vm931, %v1323, 0.0
        %v1345 = vsel %vm932, %v1307, 0.0
        %v1346 = vsel %vm931, %v1324, 0.0
        %v1347 = vsel %vm932, %v1308, 0.0
        %v1348 = vsel %vm931, %v1325, 0.0
        %v1349 = vsel %vm932, %v1309, 0.0
        %v1350 = vsel %vm931, %v1326, 0.0
        %v1351 = vsel %vm932, %v1310, 0.0
        %v1352 = vsel %vm931, %v1327, 0.0
        %v1353 = vsel %vm932, %v1311, 0.0
        %v1354 = vsel %vm931, %v1328, 0.0
        %v1355 = vsel %vm932, %v1312, 0.0
        %v1356 = vsel %vm931, %v1329, 0.0
        %v1357 = vsel %vm932, %v1313, 0.0
        %v1358 = vsel %vm931, %v1330, 0.0
        %v1359 = vsel %vm932, %v1314, 0.0
        %v1360 = vsel %vm931, %v1331, 0.0
        %v1361 = vsel %vm932, %v1315, 0.0
        %v1362 = vsel %vm931, %v1332, 0.0
        %v1363 = vsel %vm932, %v1316, 0.0
        %v1364 = vsel %vm931, %v1333, 0.0
        %v1365 = vsel %vm932, %v1317, 0.0
        %v1366 = vld [vmem:[%s417 + $0x3] sm:$0x1]
        %v1367 = vperm.slane %v1366, 0
        %v1368 = vmul.f32 %v1334, %v1367
        %v1369 = vmul.f32 %v1335, %v1367
        %v1370 = vmul.f32 %v1336, %v1367
        %v1371 = vmul.f32 %v1337, %v1367
        %v1372 = vmul.f32 %v1338, %v1367
        %v1373 = vmul.f32 %v1339, %v1367
        %v1374 = vmul.f32 %v1340, %v1367
        %v1375 = vmul.f32 %v1341, %v1367
        %v1376 = vmul.f32 %v1342, %v1367
        %v1377 = vmul.f32 %v1343, %v1367
        %v1378 = vmul.f32 %v1344, %v1367
        %v1379 = vmul.f32 %v1345, %v1367
        %v1380 = vmul.f32 %v1346, %v1367
        %v1381 = vmul.f32 %v1347, %v1367
        %v1382 = vmul.f32 %v1348, %v1367
        %v1383 = vmul.f32 %v1349, %v1367
        %v1384 = vmul.f32 %v1350, %v1367
        %v1385 = vmul.f32 %v1351, %v1367
        %v1386 = vmul.f32 %v1352, %v1367
        %v1387 = vmul.f32 %v1353, %v1367
        %v1388 = vmul.f32 %v1354, %v1367
        %v1389 = vmul.f32 %v1355, %v1367
        %v1390 = vmul.f32 %v1356, %v1367
        %v1391 = vmul.f32 %v1357, %v1367
        %v1392 = vmul.f32 %v1358, %v1367
        %v1393 = vmul.f32 %v1359, %v1367
        %v1394 = vmul.f32 %v1360, %v1367
        %v1395 = vmul.f32 %v1361, %v1367
        %v1396 = vmul.f32 %v1362, %v1367
        %v1397 = vmul.f32 %v1363, %v1367
        %v1398 = vmul.f32 %v1364, %v1367
        %v1399 = vmul.f32 %v1365, %v1367
        %v1400 = vadd.f32 %v1238, %v1368
        %v1401 = vadd.f32 %v1239, %v1369
        %v1402 = vadd.f32 %v1240, %v1370
        %v1403 = vadd.f32 %v1241, %v1371
        %v1404 = vadd.f32 %v1242, %v1372
        %v1405 = vadd.f32 %v1243, %v1373
        %v1406 = vadd.f32 %v1244, %v1374
        %v1407 = vadd.f32 %v1245, %v1375
        %v1408 = vadd.f32 %v1246, %v1376
        %v1409 = vadd.f32 %v1247, %v1377
        %v1410 = vadd.f32 %v1248, %v1378
        %v1411 = vadd.f32 %v1249, %v1379
        %v1412 = vadd.f32 %v1250, %v1380
        %v1413 = vadd.f32 %v1251, %v1381
        %v1414 = vadd.f32 %v1252, %v1382
        %v1415 = vadd.f32 %v1253, %v1383
        %v1416 = vadd.f32 %v1254, %v1384
        %v1417 = vadd.f32 %v1255, %v1385
        %v1418 = vadd.f32 %v1256, %v1386
        %v1419 = vadd.f32 %v1257, %v1387
        %v1420 = vadd.f32 %v1258, %v1388
        %v1421 = vadd.f32 %v1259, %v1389
        %v1422 = vadd.f32 %v1260, %v1390
        %v1423 = vadd.f32 %v1261, %v1391
        %v1424 = vadd.f32 %v1262, %v1392
        %v1425 = vadd.f32 %v1263, %v1393
        %v1426 = vadd.f32 %v1264, %v1394
        %v1427 = vadd.f32 %v1265, %v1395
        %v1428 = vadd.f32 %v1266, %v1396
        %v1429 = vadd.f32 %v1267, %v1397
        %v1430 = vadd.f32 %v1268, %v1398
        %v1431 = vadd.f32 %v1269, %v1399
        %v1432 = vrot.slane %v760, 1
        %v1433 = vrot.slane %v762, 1
        %v1434 = vrot.slane %v764, 1
        %v1435 = vrot.slane %v766, 1
        %v1436 = vrot.slane %v768, 1
        %v1437 = vrot.slane %v770, 1
        %v1438 = vrot.slane %v772, 1
        %v1439 = vrot.slane %v774, 1
        %v1440 = vrot.slane %v776, 1
        %v1441 = vrot.slane %v778, 1
        %v1442 = vrot.slane %v780, 1
        %v1443 = vrot.slane %v782, 1
        %v1444 = vrot.slane %v784, 1
        %v1445 = vrot.slane %v786, 1
        %v1446 = vrot.slane %v788, 1
        %v1447 = vrot.slane %v790, 1
        %v1448 = vrot.slane %v761, 1
        %v1449 = vrot.slane %v763, 1
        %v1450 = vrot.slane %v765, 1
        %v1451 = vrot.slane %v767, 1
        %v1452 = vrot.slane %v769, 1
        %v1453 = vrot.slane %v771, 1
        %v1454 = vrot.slane %v773, 1
        %v1455 = vrot.slane %v775, 1
        %v1456 = vrot.slane %v777, 1
        %v1457 = vrot.slane %v779, 1
        %v1458 = vrot.slane %v781, 1
        %v1459 = vrot.slane %v783, 1
        %v1460 = vrot.slane %v785, 1
        %v1461 = vrot.slane %v787, 1
        %v1462 = vrot.slane %v789, 1
        %v1463 = vrot.slane %v791, 1
        %v1464 = vsel %vm1129, %v1432, %v1448
        %v1465 = vsel %vm1129, %v1433, %v1449
        %v1466 = vsel %vm1129, %v1434, %v1450
        %v1467 = vsel %vm1129, %v1435, %v1451
        %v1468 = vsel %vm1129, %v1436, %v1452
        %v1469 = vsel %vm1129, %v1437, %v1453
        %v1470 = vsel %vm1129, %v1438, %v1454
        %v1471 = vsel %vm1129, %v1439, %v1455
        %v1472 = vsel %vm1129, %v1440, %v1456
        %v1473 = vsel %vm1129, %v1441, %v1457
        %v1474 = vsel %vm1129, %v1442, %v1458
        %v1475 = vsel %vm1129, %v1443, %v1459
        %v1476 = vsel %vm1129, %v1444, %v1460
        %v1477 = vsel %vm1129, %v1445, %v1461
        %v1478 = vsel %vm1129, %v1446, %v1462
        %v1479 = vsel %vm1129, %v1447, %v1463
        %v1480 = vsel %vm1129, %v1448, %v1432
        %v1481 = vsel %vm1129, %v1449, %v1433
        %v1482 = vsel %vm1129, %v1450, %v1434
        %v1483 = vsel %vm1129, %v1451, %v1435
        %v1484 = vsel %vm1129, %v1452, %v1436
        %v1485 = vsel %vm1129, %v1453, %v1437
        %v1486 = vsel %vm1129, %v1454, %v1438
        %v1487 = vsel %vm1129, %v1455, %v1439
        %v1488 = vsel %vm1129, %v1456, %v1440
        %v1489 = vsel %vm1129, %v1457, %v1441
        %v1490 = vsel %vm1129, %v1458, %v1442
        %v1491 = vsel %vm1129, %v1459, %v1443
        %v1492 = vsel %vm1129, %v1460, %v1444
        %v1493 = vsel %vm1129, %v1461, %v1445
        %v1494 = vsel %vm1129, %v1462, %v1446
        %v1495 = vsel %vm1129, %v1463, %v1447
        %v1496 = vsel %vm1170, %v1464, 0.0
        %v1497 = vsel %vm1171, %v1480, 0.0
        %v1498 = vsel %vm1170, %v1465, 0.0
        %v1499 = vsel %vm1171, %v1481, 0.0
        %v1500 = vsel %vm1170, %v1466, 0.0
        %v1501 = vsel %vm1171, %v1482, 0.0
        %v1502 = vsel %vm1170, %v1467, 0.0
        %v1503 = vsel %vm1171, %v1483, 0.0
        %v1504 = vsel %vm1170, %v1468, 0.0
        %v1505 = vsel %vm1171, %v1484, 0.0
        %v1506 = vsel %vm1170, %v1469, 0.0
        %v1507 = vsel %vm1171, %v1485, 0.0
        %v1508 = vsel %vm1170, %v1470, 0.0
        %v1509 = vsel %vm1171, %v1486, 0.0
        %v1510 = vsel %vm1170, %v1471, 0.0
        %v1511 = vsel %vm1171, %v1487, 0.0
        %v1512 = vsel %vm1170, %v1472, 0.0
        %v1513 = vsel %vm1171, %v1488, 0.0
        %v1514 = vsel %vm1170, %v1473, 0.0
        %v1515 = vsel %vm1171, %v1489, 0.0
        %v1516 = vsel %vm1170, %v1474, 0.0
        %v1517 = vsel %vm1171, %v1490, 0.0
        %v1518 = vsel %vm1170, %v1475, 0.0
        %v1519 = vsel %vm1171, %v1491, 0.0
        %v1520 = vsel %vm1170, %v1476, 0.0
        %v1521 = vsel %vm1171, %v1492, 0.0
        %v1522 = vsel %vm1170, %v1477, 0.0
        %v1523 = vsel %vm1171, %v1493, 0.0
        %v1524 = vsel %vm1170, %v1478, 0.0
        %v1525 = vsel %vm1171, %v1494, 0.0
        %v1526 = vsel %vm1170, %v1479, 0.0
        %v1527 = vsel %vm1171, %v1495, 0.0
        %v1528 = vld [vmem:[%s417 + $0x5] sm:$0x1]
        %v1529 = vperm.slane %v1528, 0
        %v1530 = vmul.f32 %v1496, %v1529
        %v1531 = vmul.f32 %v1497, %v1529
        %v1532 = vmul.f32 %v1498, %v1529
        %v1533 = vmul.f32 %v1499, %v1529
        %v1534 = vmul.f32 %v1500, %v1529
        %v1535 = vmul.f32 %v1501, %v1529
        %v1536 = vmul.f32 %v1502, %v1529
        %v1537 = vmul.f32 %v1503, %v1529
        %v1538 = vmul.f32 %v1504, %v1529
        %v1539 = vmul.f32 %v1505, %v1529
        %v1540 = vmul.f32 %v1506, %v1529
        %v1541 = vmul.f32 %v1507, %v1529
        %v1542 = vmul.f32 %v1508, %v1529
        %v1543 = vmul.f32 %v1509, %v1529
        %v1544 = vmul.f32 %v1510, %v1529
        %v1545 = vmul.f32 %v1511, %v1529
        %v1546 = vmul.f32 %v1512, %v1529
        %v1547 = vmul.f32 %v1513, %v1529
        %v1548 = vmul.f32 %v1514, %v1529
        %v1549 = vmul.f32 %v1515, %v1529
        %v1550 = vmul.f32 %v1516, %v1529
        %v1551 = vmul.f32 %v1517, %v1529
        %v1552 = vmul.f32 %v1518, %v1529
        %v1553 = vmul.f32 %v1519, %v1529
        %v1554 = vmul.f32 %v1520, %v1529
        %v1555 = vmul.f32 %v1521, %v1529
        %v1556 = vmul.f32 %v1522, %v1529
        %v1557 = vmul.f32 %v1523, %v1529
        %v1558 = vmul.f32 %v1524, %v1529
        %v1559 = vmul.f32 %v1525, %v1529
        %v1560 = vmul.f32 %v1526, %v1529
        %v1561 = vmul.f32 %v1527, %v1529
        %v1562 = vadd.f32 %v1400, %v1530
        %v1563 = vadd.f32 %v1401, %v1531
        %v1564 = vadd.f32 %v1402, %v1532
        %v1565 = vadd.f32 %v1403, %v1533
        %v1566 = vadd.f32 %v1404, %v1534
        %v1567 = vadd.f32 %v1405, %v1535
        %v1568 = vadd.f32 %v1406, %v1536
        %v1569 = vadd.f32 %v1407, %v1537
        %v1570 = vadd.f32 %v1408, %v1538
        %v1571 = vadd.f32 %v1409, %v1539
        %v1572 = vadd.f32 %v1410, %v1540
        %v1573 = vadd.f32 %v1411, %v1541
        %v1574 = vadd.f32 %v1412, %v1542
        %v1575 = vadd.f32 %v1413, %v1543
        %v1576 = vadd.f32 %v1414, %v1544
        %v1577 = vadd.f32 %v1415, %v1545
        %v1578 = vadd.f32 %v1416, %v1546
        %v1579 = vadd.f32 %v1417, %v1547
        %v1580 = vadd.f32 %v1418, %v1548
        %v1581 = vadd.f32 %v1419, %v1549
        %v1582 = vadd.f32 %v1420, %v1550
        %v1583 = vadd.f32 %v1421, %v1551
        %v1584 = vadd.f32 %v1422, %v1552
        %v1585 = vadd.f32 %v1423, %v1553
        %v1586 = vadd.f32 %v1424, %v1554
        %v1587 = vadd.f32 %v1425, %v1555
        %v1588 = vadd.f32 %v1426, %v1556
        %v1589 = vadd.f32 %v1427, %v1557
        %v1590 = vadd.f32 %v1428, %v1558
        %v1591 = vadd.f32 %v1429, %v1559
        %v1592 = vadd.f32 %v1430, %v1560
        %v1593 = vadd.f32 %v1431, %v1561
        %s1594 = scalar_lea.vmem [#allocation2], 32
        %v1595 = vld [vmem:[%s1594] sm:$0xff]
        %v1596 = vld [vmem:[%s1594 + $0x8] sm:$0xff]
        %v1597 = vld [vmem:[%s1594 + $0x10] sm:$0xff]
        %v1598 = vld [vmem:[%s1594 + $0x18] sm:$0xff]
        %v1599 = vld [vmem:[%s1594 + $0x20] sm:$0xff]
        %v1600 = vld [vmem:[%s1594 + $0x28] sm:$0xff]
        %v1601 = vld [vmem:[%s1594 + $0x30] sm:$0xff]
        %v1602 = vld [vmem:[%s1594 + $0x38] sm:$0xff]
        %v1603 = vld [vmem:[%s1594 + $0x40] sm:$0xff]
        %v1604 = vld [vmem:[%s1594 + $0x48] sm:$0xff]
        %v1605 = vld [vmem:[%s1594 + $0x50] sm:$0xff]
        %v1606 = vld [vmem:[%s1594 + $0x58] sm:$0xff]
        %v1607 = vld [vmem:[%s1594 + $0x60] sm:$0xff]
        %v1608 = vld [vmem:[%s1594 + $0x68] sm:$0xff]
        %v1609 = vld [vmem:[%s1594 + $0x70] sm:$0xff]
        %v1610 = vld [vmem:[%s1594 + $0x78] sm:$0xff]
        %v1611 = vld [vmem:[%s1594 + $0x80] sm:$0xff]
        %v1612 = vld [vmem:[%s1594 + $0x88] sm:$0xff]
        %v1613 = vld [vmem:[%s1594 + $0x90] sm:$0xff]
        %v1614 = vld [vmem:[%s1594 + $0x98] sm:$0xff]
        %v1615 = vld [vmem:[%s1594 + $0xa0] sm:$0xff]
        %v1616 = vld [vmem:[%s1594 + $0xa8] sm:$0xff]
        %v1617 = vld [vmem:[%s1594 + $0xb0] sm:$0xff]
        %v1618 = vld [vmem:[%s1594 + $0xb8] sm:$0xff]
        %v1619 = vld [vmem:[%s1594 + $0xc0] sm:$0xff]
        %v1620 = vld [vmem:[%s1594 + $0xc8] sm:$0xff]
        %v1621 = vld [vmem:[%s1594 + $0xd0] sm:$0xff]
        %v1622 = vld [vmem:[%s1594 + $0xd8] sm:$0xff]
        %v1623 = vld [vmem:[%s1594 + $0xe0] sm:$0xff]
        %v1624 = vld [vmem:[%s1594 + $0xe8] sm:$0xff]
        %v1625 = vld [vmem:[%s1594 + $0xf0] sm:$0xff]
        %v1626 = vld [vmem:[%s1594 + $0xf8] sm:$0xff]
        %v1627 = vrot.slane %v1595, 7
        %v1628 = vrot.slane %v1597, 7
        %v1629 = vrot.slane %v1599, 7
        %v1630 = vrot.slane %v1601, 7
        %v1631 = vrot.slane %v1603, 7
        %v1632 = vrot.slane %v1605, 7
        %v1633 = vrot.slane %v1607, 7
        %v1634 = vrot.slane %v1609, 7
        %v1635 = vrot.slane %v1611, 7
        %v1636 = vrot.slane %v1613, 7
        %v1637 = vrot.slane %v1615, 7
        %v1638 = vrot.slane %v1617, 7
        %v1639 = vrot.slane %v1619, 7
        %v1640 = vrot.slane %v1621, 7
        %v1641 = vrot.slane %v1623, 7
        %v1642 = vrot.slane %v1625, 7
        %v1643 = vrot.slane %v1596, 7
        %v1644 = vrot.slane %v1598, 7
        %v1645 = vrot.slane %v1600, 7
        %v1646 = vrot.slane %v1602, 7
        %v1647 = vrot.slane %v1604, 7
        %v1648 = vrot.slane %v1606, 7
        %v1649 = vrot.slane %v1608, 7
        %v1650 = vrot.slane %v1610, 7
        %v1651 = vrot.slane %v1612, 7
        %v1652 = vrot.slane %v1614, 7
        %v1653 = vrot.slane %v1616, 7
        %v1654 = vrot.slane %v1618, 7
        %v1655 = vrot.slane %v1620, 7
        %v1656 = vrot.slane %v1622, 7
        %v1657 = vrot.slane %v1624, 7
        %v1658 = vrot.slane %v1626, 7
        %v1659 = vsel %vm890, %v1627, %v1643
        %v1660 = vsel %vm890, %v1628, %v1644
        %v1661 = vsel %vm890, %v1629, %v1645
        %v1662 = vsel %vm890, %v1630, %v1646
        %v1663 = vsel %vm890, %v1631, %v1647
        %v1664 = vsel %vm890, %v1632, %v1648
        %v1665 = vsel %vm890, %v1633, %v1649
        %v1666 = vsel %vm890, %v1634, %v1650
        %v1667 = vsel %vm890, %v1635, %v1651
        %v1668 = vsel %vm890, %v1636, %v1652
        %v1669 = vsel %vm890, %v1637, %v1653
        %v1670 = vsel %vm890, %v1638, %v1654
        %v1671 = vsel %vm890, %v1639, %v1655
        %v1672 = vsel %vm890, %v1640, %v1656
        %v1673 = vsel %vm890, %v1641, %v1657
        %v1674 = vsel %vm890, %v1642, %v1658
        %v1675 = vsel %vm890, %v1643, %v1627
        %v1676 = vsel %vm890, %v1644, %v1628
        %v1677 = vsel %vm890, %v1645, %v1629
        %v1678 = vsel %vm890, %v1646, %v1630
        %v1679 = vsel %vm890, %v1647, %v1631
        %v1680 = vsel %vm890, %v1648, %v1632
        %v1681 = vsel %vm890, %v1649, %v1633
        %v1682 = vsel %vm890, %v1650, %v1634
        %v1683 = vsel %vm890, %v1651, %v1635
        %v1684 = vsel %vm890, %v1652, %v1636
        %v1685 = vsel %vm890, %v1653, %v1637
        %v1686 = vsel %vm890, %v1654, %v1638
        %v1687 = vsel %vm890, %v1655, %v1639
        %v1688 = vsel %vm890, %v1656, %v1640
        %v1689 = vsel %vm890, %v1657, %v1641
        %v1690 = vsel %vm890, %v1658, %v1642
        %v1691 = vsel %vm931, %v1675, 0.0
        %v1692 = vsel %vm932, %v1659, 0.0
        %v1693 = vsel %vm931, %v1676, 0.0
        %v1694 = vsel %vm932, %v1660, 0.0
        %v1695 = vsel %vm931, %v1677, 0.0
        %v1696 = vsel %vm932, %v1661, 0.0
        %v1697 = vsel %vm931, %v1678, 0.0
        %v1698 = vsel %vm932, %v1662, 0.0
        %v1699 = vsel %vm931, %v1679, 0.0
        %v1700 = vsel %vm932, %v1663, 0.0
        %v1701 = vsel %vm931, %v1680, 0.0
        %v1702 = vsel %vm932, %v1664, 0.0
        %v1703 = vsel %vm931, %v1681, 0.0
        %v1704 = vsel %vm932, %v1665, 0.0
        %v1705 = vsel %vm931, %v1682, 0.0
        %v1706 = vsel %vm932, %v1666, 0.0
        %v1707 = vsel %vm931, %v1683, 0.0
        %v1708 = vsel %vm932, %v1667, 0.0
        %v1709 = vsel %vm931, %v1684, 0.0
        %v1710 = vsel %vm932, %v1668, 0.0
        %v1711 = vsel %vm931, %v1685, 0.0
        %v1712 = vsel %vm932, %v1669, 0.0
        %v1713 = vsel %vm931, %v1686, 0.0
        %v1714 = vsel %vm932, %v1670, 0.0
        %v1715 = vsel %vm931, %v1687, 0.0
        %v1716 = vsel %vm932, %v1671, 0.0
        %v1717 = vsel %vm931, %v1688, 0.0
        %v1718 = vsel %vm932, %v1672, 0.0
        %v1719 = vsel %vm931, %v1689, 0.0
        %v1720 = vsel %vm932, %v1673, 0.0
        %v1721 = vsel %vm931, %v1690, 0.0
        %v1722 = vsel %vm932, %v1674, 0.0
        %v1723 = vld [vmem:[%s417 + $0x6] sm:$0x1]
        %v1724 = vperm.slane %v1723, 0
        %v1725 = vmul.f32 %v1691, %v1724
        %v1726 = vmul.f32 %v1692, %v1724
        %v1727 = vmul.f32 %v1693, %v1724
        %v1728 = vmul.f32 %v1694, %v1724
        %v1729 = vmul.f32 %v1695, %v1724
        %v1730 = vmul.f32 %v1696, %v1724
        %v1731 = vmul.f32 %v1697, %v1724
        %v1732 = vmul.f32 %v1698, %v1724
        %v1733 = vmul.f32 %v1699, %v1724
        %v1734 = vmul.f32 %v1700, %v1724
        %v1735 = vmul.f32 %v1701, %v1724
        %v1736 = vmul.f32 %v1702, %v1724
        %v1737 = vmul.f32 %v1703, %v1724
        %v1738 = vmul.f32 %v1704, %v1724
        %v1739 = vmul.f32 %v1705, %v1724
        %v1740 = vmul.f32 %v1706, %v1724
        %v1741 = vmul.f32 %v1707, %v1724
        %v1742 = vmul.f32 %v1708, %v1724
        %v1743 = vmul.f32 %v1709, %v1724
        %v1744 = vmul.f32 %v1710, %v1724
        %v1745 = vmul.f32 %v1711, %v1724
        %v1746 = vmul.f32 %v1712, %v1724
        %v1747 = vmul.f32 %v1713, %v1724
        %v1748 = vmul.f32 %v1714, %v1724
        %v1749 = vmul.f32 %v1715, %v1724
        %v1750 = vmul.f32 %v1716, %v1724
        %v1751 = vmul.f32 %v1717, %v1724
        %v1752 = vmul.f32 %v1718, %v1724
        %v1753 = vmul.f32 %v1719, %v1724
        %v1754 = vmul.f32 %v1720, %v1724
        %v1755 = vmul.f32 %v1721, %v1724
        %v1756 = vmul.f32 %v1722, %v1724
        %v1757 = vadd.f32 %v1562, %v1725
        %v1758 = vadd.f32 %v1563, %v1726
        %v1759 = vadd.f32 %v1564, %v1727
        %v1760 = vadd.f32 %v1565, %v1728
        %v1761 = vadd.f32 %v1566, %v1729
        %v1762 = vadd.f32 %v1567, %v1730
        %v1763 = vadd.f32 %v1568, %v1731
        %v1764 = vadd.f32 %v1569, %v1732
        %v1765 = vadd.f32 %v1570, %v1733
        %v1766 = vadd.f32 %v1571, %v1734
        %v1767 = vadd.f32 %v1572, %v1735
        %v1768 = vadd.f32 %v1573, %v1736
        %v1769 = vadd.f32 %v1574, %v1737
        %v1770 = vadd.f32 %v1575, %v1738
        %v1771 = vadd.f32 %v1576, %v1739
        %v1772 = vadd.f32 %v1577, %v1740
        %v1773 = vadd.f32 %v1578, %v1741
        %v1774 = vadd.f32 %v1579, %v1742
        %v1775 = vadd.f32 %v1580, %v1743
        %v1776 = vadd.f32 %v1581, %v1744
        %v1777 = vadd.f32 %v1582, %v1745
        %v1778 = vadd.f32 %v1583, %v1746
        %v1779 = vadd.f32 %v1584, %v1747
        %v1780 = vadd.f32 %v1585, %v1748
        %v1781 = vadd.f32 %v1586, %v1749
        %v1782 = vadd.f32 %v1587, %v1750
        %v1783 = vadd.f32 %v1588, %v1751
        %v1784 = vadd.f32 %v1589, %v1752
        %v1785 = vadd.f32 %v1590, %v1753
        %v1786 = vadd.f32 %v1591, %v1754
        %v1787 = vadd.f32 %v1592, %v1755
        %v1788 = vadd.f32 %v1593, %v1756
        %v1789 = vld [vmem:[%s417 + $0x7] sm:$0x1]
        %v1790 = vperm.slane %v1789, 0
        %v1791 = vmul.f32 %v1595, %v1790
        %v1792 = vmul.f32 %v1596, %v1790
        %v1793 = vmul.f32 %v1597, %v1790
        %v1794 = vmul.f32 %v1598, %v1790
        %v1795 = vmul.f32 %v1599, %v1790
        %v1796 = vmul.f32 %v1600, %v1790
        %v1797 = vmul.f32 %v1601, %v1790
        %v1798 = vmul.f32 %v1602, %v1790
        %v1799 = vmul.f32 %v1603, %v1790
        %v1800 = vmul.f32 %v1604, %v1790
        %v1801 = vmul.f32 %v1605, %v1790
        %v1802 = vmul.f32 %v1606, %v1790
        %v1803 = vmul.f32 %v1607, %v1790
        %v1804 = vmul.f32 %v1608, %v1790
        %v1805 = vmul.f32 %v1609, %v1790
        %v1806 = vmul.f32 %v1610, %v1790
        %v1807 = vmul.f32 %v1611, %v1790
        %v1808 = vmul.f32 %v1612, %v1790
        %v1809 = vmul.f32 %v1613, %v1790
        %v1810 = vmul.f32 %v1614, %v1790
        %v1811 = vmul.f32 %v1615, %v1790
        %v1812 = vmul.f32 %v1616, %v1790
        %v1813 = vmul.f32 %v1617, %v1790
        %v1814 = vmul.f32 %v1618, %v1790
        %v1815 = vmul.f32 %v1619, %v1790
        %v1816 = vmul.f32 %v1620, %v1790
        %v1817 = vmul.f32 %v1621, %v1790
        %v1818 = vmul.f32 %v1622, %v1790
        %v1819 = vmul.f32 %v1623, %v1790
        %v1820 = vmul.f32 %v1624, %v1790
        %v1821 = vmul.f32 %v1625, %v1790
        %v1822 = vmul.f32 %v1626, %v1790
        %v1823 = vadd.f32 %v1757, %v1791
        %v1824 = vadd.f32 %v1758, %v1792
        %v1825 = vadd.f32 %v1759, %v1793
        %v1826 = vadd.f32 %v1760, %v1794
        %v1827 = vadd.f32 %v1761, %v1795
        %v1828 = vadd.f32 %v1762, %v1796
        %v1829 = vadd.f32 %v1763, %v1797
        %v1830 = vadd.f32 %v1764, %v1798
        %v1831 = vadd.f32 %v1765, %v1799
        %v1832 = vadd.f32 %v1766, %v1800
        %v1833 = vadd.f32 %v1767, %v1801
        %v1834 = vadd.f32 %v1768, %v1802
        %v1835 = vadd.f32 %v1769, %v1803
        %v1836 = vadd.f32 %v1770, %v1804
        %v1837 = vadd.f32 %v1771, %v1805
        %v1838 = vadd.f32 %v1772, %v1806
        %v1839 = vadd.f32 %v1773, %v1807
        %v1840 = vadd.f32 %v1774, %v1808
        %v1841 = vadd.f32 %v1775, %v1809
        %v1842 = vadd.f32 %v1776, %v1810
        %v1843 = vadd.f32 %v1777, %v1811
        %v1844 = vadd.f32 %v1778, %v1812
        %v1845 = vadd.f32 %v1779, %v1813
        %v1846 = vadd.f32 %v1780, %v1814
        %v1847 = vadd.f32 %v1781, %v1815
        %v1848 = vadd.f32 %v1782, %v1816
        %v1849 = vadd.f32 %v1783, %v1817
        %v1850 = vadd.f32 %v1784, %v1818
        %v1851 = vadd.f32 %v1785, %v1819
        %v1852 = vadd.f32 %v1786, %v1820
        %v1853 = vadd.f32 %v1787, %v1821
        %v1854 = vadd.f32 %v1788, %v1822
        %v1855 = vrot.slane %v1595, 1
        %v1856 = vrot.slane %v1597, 1
        %v1857 = vrot.slane %v1599, 1
        %v1858 = vrot.slane %v1601, 1
        %v1859 = vrot.slane %v1603, 1
        %v1860 = vrot.slane %v1605, 1
        %v1861 = vrot.slane %v1607, 1
        %v1862 = vrot.slane %v1609, 1
        %v1863 = vrot.slane %v1611, 1
        %v1864 = vrot.slane %v1613, 1
        %v1865 = vrot.slane %v1615, 1
        %v1866 = vrot.slane %v1617, 1
        %v1867 = vrot.slane %v1619, 1
        %v1868 = vrot.slane %v1621, 1
        %v1869 = vrot.slane %v1623, 1
        %v1870 = vrot.slane %v1625, 1
        %v1871 = vrot.slane %v1596, 1
        %v1872 = vrot.slane %v1598, 1
        %v1873 = vrot.slane %v1600, 1
        %v1874 = vrot.slane %v1602, 1
        %v1875 = vrot.slane %v1604, 1
        %v1876 = vrot.slane %v1606, 1
        %v1877 = vrot.slane %v1608, 1
        %v1878 = vrot.slane %v1610, 1
        %v1879 = vrot.slane %v1612, 1
        %v1880 = vrot.slane %v1614, 1
        %v1881 = vrot.slane %v1616, 1
        %v1882 = vrot.slane %v1618, 1
        %v1883 = vrot.slane %v1620, 1
        %v1884 = vrot.slane %v1622, 1
        %v1885 = vrot.slane %v1624, 1
        %v1886 = vrot.slane %v1626, 1
        %v1887 = vsel %vm1129, %v1855, %v1871
        %v1888 = vsel %vm1129, %v1856, %v1872
        %v1889 = vsel %vm1129, %v1857, %v1873
        %v1890 = vsel %vm1129, %v1858, %v1874
        %v1891 = vsel %vm1129, %v1859, %v1875
        %v1892 = vsel %vm1129, %v1860, %v1876
        %v1893 = vsel %vm1129, %v1861, %v1877
        %v1894 = vsel %vm1129, %v1862, %v1878
        %v1895 = vsel %vm1129, %v1863, %v1879
        %v1896 = vsel %vm1129, %v1864, %v1880
        %v1897 = vsel %vm1129, %v1865, %v1881
        %v1898 = vsel %vm1129, %v1866, %v1882
        %v1899 = vsel %vm1129, %v1867, %v1883
        %v1900 = vsel %vm1129, %v1868, %v1884
        %v1901 = vsel %vm1129, %v1869, %v1885
        %v1902 = vsel %vm1129, %v1870, %v1886
        %v1903 = vsel %vm1129, %v1871, %v1855
        %v1904 = vsel %vm1129, %v1872, %v1856
        %v1905 = vsel %vm1129, %v1873, %v1857
        %v1906 = vsel %vm1129, %v1874, %v1858
        %v1907 = vsel %vm1129, %v1875, %v1859
        %v1908 = vsel %vm1129, %v1876, %v1860
        %v1909 = vsel %vm1129, %v1877, %v1861
        %v1910 = vsel %vm1129, %v1878, %v1862
        %v1911 = vsel %vm1129, %v1879, %v1863
        %v1912 = vsel %vm1129, %v1880, %v1864
        %v1913 = vsel %vm1129, %v1881, %v1865
        %v1914 = vsel %vm1129, %v1882, %v1866
        %v1915 = vsel %vm1129, %v1883, %v1867
        %v1916 = vsel %vm1129, %v1884, %v1868
        %v1917 = vsel %vm1129, %v1885, %v1869
        %v1918 = vsel %vm1129, %v1886, %v1870
        %v1919 = vsel %vm1170, %v1887, 0.0
        %v1920 = vsel %vm1171, %v1903, 0.0
        %v1921 = vsel %vm1170, %v1888, 0.0
        %v1922 = vsel %vm1171, %v1904, 0.0
        %v1923 = vsel %vm1170, %v1889, 0.0
        %v1924 = vsel %vm1171, %v1905, 0.0
        %v1925 = vsel %vm1170, %v1890, 0.0
        %v1926 = vsel %vm1171, %v1906, 0.0
        %v1927 = vsel %vm1170, %v1891, 0.0
        %v1928 = vsel %vm1171, %v1907, 0.0
        %v1929 = vsel %vm1170, %v1892, 0.0
        %v1930 = vsel %vm1171, %v1908, 0.0
        %v1931 = vsel %vm1170, %v1893, 0.0
        %v1932 = vsel %vm1171, %v1909, 0.0
        %v1933 = vsel %vm1170, %v1894, 0.0
        %v1934 = vsel %vm1171, %v1910, 0.0
        %v1935 = vsel %vm1170, %v1895, 0.0
        %v1936 = vsel %vm1171, %v1911, 0.0
        %v1937 = vsel %vm1170, %v1896, 0.0
        %v1938 = vsel %vm1171, %v1912, 0.0
        %v1939 = vsel %vm1170, %v1897, 0.0
        %v1940 = vsel %vm1171, %v1913, 0.0
        %v1941 = vsel %vm1170, %v1898, 0.0
        %v1942 = vsel %vm1171, %v1914, 0.0
        %v1943 = vsel %vm1170, %v1899, 0.0
        %v1944 = vsel %vm1171, %v1915, 0.0
        %v1945 = vsel %vm1170, %v1900, 0.0
        %v1946 = vsel %vm1171, %v1916, 0.0
        %v1947 = vsel %vm1170, %v1901, 0.0
        %v1948 = vsel %vm1171, %v1917, 0.0
        %v1949 = vsel %vm1170, %v1902, 0.0
        %v1950 = vsel %vm1171, %v1918, 0.0
        %v1951 = vld [vmem:[%s417 + $0x8] sm:$0x1]
        %v1952 = vperm.slane %v1951, 0
        %v1953 = vmul.f32 %v1919, %v1952
        %v1954 = vmul.f32 %v1920, %v1952
        %v1955 = vmul.f32 %v1921, %v1952
        %v1956 = vmul.f32 %v1922, %v1952
        %v1957 = vmul.f32 %v1923, %v1952
        %v1958 = vmul.f32 %v1924, %v1952
        %v1959 = vmul.f32 %v1925, %v1952
        %v1960 = vmul.f32 %v1926, %v1952
        %v1961 = vmul.f32 %v1927, %v1952
        %v1962 = vmul.f32 %v1928, %v1952
        %v1963 = vmul.f32 %v1929, %v1952
        %v1964 = vmul.f32 %v1930, %v1952
        %v1965 = vmul.f32 %v1931, %v1952
        %v1966 = vmul.f32 %v1932, %v1952
        %v1967 = vmul.f32 %v1933, %v1952
        %v1968 = vmul.f32 %v1934, %v1952
        %v1969 = vmul.f32 %v1935, %v1952
        %v1970 = vmul.f32 %v1936, %v1952
        %v1971 = vmul.f32 %v1937, %v1952
        %v1972 = vmul.f32 %v1938, %v1952
        %v1973 = vmul.f32 %v1939, %v1952
        %v1974 = vmul.f32 %v1940, %v1952
        %v1975 = vmul.f32 %v1941, %v1952
        %v1976 = vmul.f32 %v1942, %v1952
        %v1977 = vmul.f32 %v1943, %v1952
        %v1978 = vmul.f32 %v1944, %v1952
        %v1979 = vmul.f32 %v1945, %v1952
        %v1980 = vmul.f32 %v1946, %v1952
        %v1981 = vmul.f32 %v1947, %v1952
        %v1982 = vmul.f32 %v1948, %v1952
        %v1983 = vmul.f32 %v1949, %v1952
        %v1984 = vmul.f32 %v1950, %v1952
        %v1985 = vadd.f32 %v1823, %v1953
        %v1986 = vadd.f32 %v1824, %v1954
        %v1987 = vadd.f32 %v1825, %v1955
        %v1988 = vadd.f32 %v1826, %v1956
        %v1989 = vadd.f32 %v1827, %v1957
        %v1990 = vadd.f32 %v1828, %v1958
        %v1991 = vadd.f32 %v1829, %v1959
        %v1992 = vadd.f32 %v1830, %v1960
        %v1993 = vadd.f32 %v1831, %v1961
        %v1994 = vadd.f32 %v1832, %v1962
        %v1995 = vadd.f32 %v1833, %v1963
        %v1996 = vadd.f32 %v1834, %v1964
        %v1997 = vadd.f32 %v1835, %v1965
        %v1998 = vadd.f32 %v1836, %v1966
        %v1999 = vadd.f32 %v1837, %v1967
        %v2000 = vadd.f32 %v1838, %v1968
        %v2001 = vadd.f32 %v1839, %v1969
        %v2002 = vadd.f32 %v1840, %v1970
        %v2003 = vadd.f32 %v1841, %v1971
        %v2004 = vadd.f32 %v1842, %v1972
        %v2005 = vadd.f32 %v1843, %v1973
        %v2006 = vadd.f32 %v1844, %v1974
        %v2007 = vadd.f32 %v1845, %v1975
        %v2008 = vadd.f32 %v1846, %v1976
        %v2009 = vadd.f32 %v1847, %v1977
        %v2010 = vadd.f32 %v1848, %v1978
        %v2011 = vadd.f32 %v1849, %v1979
        %v2012 = vadd.f32 %v1850, %v1980
        %v2013 = vadd.f32 %v1851, %v1981
        %v2014 = vadd.f32 %v1852, %v1982
        %v2015 = vadd.f32 %v1853, %v1983
        %v2016 = vadd.f32 %v1854, %v1984
        %v2017 = vld [vmem:[%s420] sm:$0x1]
        %v2019 = vperm.slane %v2017, 0
        %v2021 = vadd.f32 %v1985, %v2019
        %v2022 = vadd.f32 %v1986, %v2019
        %v2023 = vadd.f32 %v1987, %v2019
        %v2024 = vadd.f32 %v1988, %v2019
        %v2025 = vadd.f32 %v1989, %v2019
        %v2026 = vadd.f32 %v1990, %v2019
        %v2027 = vadd.f32 %v1991, %v2019
        %v2028 = vadd.f32 %v1992, %v2019
        %v2029 = vadd.f32 %v1993, %v2019
        %v2030 = vadd.f32 %v1994, %v2019
        %v2031 = vadd.f32 %v1995, %v2019
        %v2032 = vadd.f32 %v1996, %v2019
        %v2033 = vadd.f32 %v1997, %v2019
        %v2034 = vadd.f32 %v1998, %v2019
        %v2035 = vadd.f32 %v1999, %v2019
        %v2036 = vadd.f32 %v2000, %v2019
        %v2037 = vadd.f32 %v2001, %v2019
        %v2038 = vadd.f32 %v2002, %v2019
        %v2039 = vadd.f32 %v2003, %v2019
        %v2040 = vadd.f32 %v2004, %v2019
        %v2041 = vadd.f32 %v2005, %v2019
        %v2042 = vadd.f32 %v2006, %v2019
        %v2043 = vadd.f32 %v2007, %v2019
        %v2044 = vadd.f32 %v2008, %v2019
        %v2045 = vadd.f32 %v2009, %v2019
        %v2046 = vadd.f32 %v2010, %v2019
        %v2047 = vadd.f32 %v2011, %v2019
        %v2048 = vadd.f32 %v2012, %v2019
        %v2049 = vadd.f32 %v2013, %v2019
        %v2050 = vadd.f32 %v2014, %v2019
        %v2051 = vadd.f32 %v2015, %v2019
        %v2052 = vadd.f32 %v2016, %v2019
        %v2053 = vmax.f32 %v2021, 0.0
        %v2054 = vmax.f32 %v2022, 0.0
        %v2055 = vmax.f32 %v2023, 0.0
        %v2056 = vmax.f32 %v2024, 0.0
        %v2057 = vmax.f32 %v2025, 0.0
        %v2058 = vmax.f32 %v2026, 0.0
        %v2059 = vmax.f32 %v2027, 0.0
        %v2060 = vmax.f32 %v2028, 0.0
        %v2061 = vmax.f32 %v2029, 0.0
        %v2062 = vmax.f32 %v2030, 0.0
        %v2063 = vmax.f32 %v2031, 0.0
        %v2064 = vmax.f32 %v2032, 0.0
        %v2065 = vmax.f32 %v2033, 0.0
        %v2066 = vmax.f32 %v2034, 0.0
        %v2067 = vmax.f32 %v2035, 0.0
        %v2068 = vmax.f32 %v2036, 0.0
        %v2069 = vmax.f32 %v2037, 0.0
        %v2070 = vmax.f32 %v2038, 0.0
        %v2071 = vmax.f32 %v2039, 0.0
        %v2072 = vmax.f32 %v2040, 0.0
        %v2073 = vmax.f32 %v2041, 0.0
        %v2074 = vmax.f32 %v2042, 0.0
        %v2075 = vmax.f32 %v2043, 0.0
        %v2076 = vmax.f32 %v2044, 0.0
        %v2077 = vmax.f32 %v2045, 0.0
        %v2078 = vmax.f32 %v2046, 0.0
        %v2079 = vmax.f32 %v2047, 0.0
        %v2080 = vmax.f32 %v2048, 0.0
        %v2081 = vmax.f32 %v2049, 0.0
        %v2082 = vmax.f32 %v2050, 0.0
        %v2083 = vmax.f32 %v2051, 0.0
        %v2084 = vmax.f32 %v2052, 0.0
        %v2085 = vpack.c.bf16 %v2054, %v2053
        %v2086 = vpack.c.bf16 %v2056, %v2055
        %v2087 = vpack.c.bf16 %v2058, %v2057
        %v2088 = vpack.c.bf16 %v2060, %v2059
        %v2089 = vpack.c.bf16 %v2062, %v2061
        %v2090 = vpack.c.bf16 %v2064, %v2063
        %v2091 = vpack.c.bf16 %v2066, %v2065
        %v2092 = vpack.c.bf16 %v2068, %v2067
        %v2093 = vpack.c.bf16 %v2070, %v2069
        %v2094 = vpack.c.bf16 %v2072, %v2071
        %v2095 = vpack.c.bf16 %v2074, %v2073
        %v2096 = vpack.c.bf16 %v2076, %v2075
        %v2097 = vpack.c.bf16 %v2078, %v2077
        %v2098 = vpack.c.bf16 %v2080, %v2079
        %v2099 = vpack.c.bf16 %v2082, %v2081
        %v2100 = vpack.c.bf16 %v2084, %v2083
        %v2101 = vld [vmem:[%s425] sm:$0xf]
        %v2102 = vld [vmem:[%s425 + $0x4] sm:$0xf]
        %v2103 = vld [vmem:[%s425 + $0x8] sm:$0xf]
        %v2104 = vld [vmem:[%s425 + $0xc] sm:$0xf]
        %v2105 = vld [vmem:[%s425 + $0x10] sm:$0xf]
        %v2106 = vld [vmem:[%s425 + $0x14] sm:$0xf]
        %v2107 = vld [vmem:[%s425 + $0x18] sm:$0xf]
        %v2108 = vld [vmem:[%s425 + $0x1c] sm:$0xf]
        %v2109 = vld [vmem:[%s425 + $0x20] sm:$0xf]
        %v2110 = vld [vmem:[%s425 + $0x24] sm:$0xf]
        %v2111 = vld [vmem:[%s425 + $0x28] sm:$0xf]
        %v2112 = vld [vmem:[%s425 + $0x2c] sm:$0xf]
        %v2113 = vld [vmem:[%s425 + $0x30] sm:$0xf]
        %v2114 = vld [vmem:[%s425 + $0x34] sm:$0xf]
        %v2115 = vld [vmem:[%s425 + $0x38] sm:$0xf]
        %v2116 = vld [vmem:[%s425 + $0x3c] sm:$0xf]
        %v2133 = vunpack.c.l.b16 %v2101
        %v2134 = vunpack.c.l.b16 %v2102
        %v2135 = vunpack.c.l.b16 %v2103
        %v2136 = vunpack.c.l.b16 %v2104
        %v2137 = vunpack.c.l.b16 %v2105
        %v2138 = vunpack.c.l.b16 %v2106
        %v2139 = vunpack.c.l.b16 %v2107
        %v2140 = vunpack.c.l.b16 %v2108
        %v2141 = vunpack.c.l.b16 %v2109
        %v2142 = vunpack.c.l.b16 %v2110
        %v2143 = vunpack.c.l.b16 %v2111
        %v2144 = vunpack.c.l.b16 %v2112
        %v2145 = vunpack.c.l.b16 %v2113
        %v2146 = vunpack.c.l.b16 %v2114
        %v2147 = vunpack.c.l.b16 %v2115
        %v2148 = vunpack.c.l.b16 %v2116
        %v2149 = vpack.c.b16 %v2134, %v2133
        %v2150 = vpack.c.b16 %v2136, %v2135
        %v2151 = vpack.c.b16 %v2138, %v2137
        %v2152 = vpack.c.b16 %v2140, %v2139
        %v2153 = vpack.c.b16 %v2142, %v2141
        %v2154 = vpack.c.b16 %v2144, %v2143
        %v2155 = vpack.c.b16 %v2146, %v2145
        %v2156 = vpack.c.b16 %v2148, %v2147
        %2165 = vmatpush.bf16.msra.mxu0 %v2156
        %2166 = vmatpush.bf16.msra.mxu0 %v2155
        %2167 = vmatpush.bf16.msra.mxu0 %v2154
        %2168 = vmatpush.bf16.msra.mxu0 %v2153
        %2169 = vmatpush.bf16.msra.mxu0 %v2152
        %2170 = vmatpush.bf16.msra.mxu0 %v2151
        %2171 = vmatpush.bf16.msra.mxu0 %v2150
        %2172 = vmatpush.bf16.msra.mxu0 %v2149
        %2173 = vmatmul.bf16.gmra.mxu0 %v2085
        %v2174 = vpop.f32.mrf.mxu0
        %v2175 = vadd.f32 0.0, %v2174
        %v2176 = vpop.f32.mrf.mxu0
        %v2177 = vadd.f32 0.0, %v2176
        %2178 = vmatmul.bf16.gmra.mxu0 %v2086
        %v2179 = vpop.f32.mrf.mxu0
        %v2180 = vadd.f32 0.0, %v2179
        %v2181 = vpop.f32.mrf.mxu0
        %v2182 = vadd.f32 0.0, %v2181
        %2183 = vmatmul.bf16.gmra.mxu0 %v2087
        %v2184 = vpop.f32.mrf.mxu0
        %v2185 = vadd.f32 0.0, %v2184
        %v2186 = vpop.f32.mrf.mxu0
        %v2187 = vadd.f32 0.0, %v2186
        %2188 = vmatmul.bf16.gmra.mxu0 %v2088
        %v2189 = vpop.f32.mrf.mxu0
        %v2190 = vadd.f32 0.0, %v2189
        %v2191 = vpop.f32.mrf.mxu0
        %v2192 = vadd.f32 0.0, %v2191
        %2193 = vmatmul.bf16.gmra.mxu0 %v2089
        %v2194 = vpop.f32.mrf.mxu0
        %v2195 = vadd.f32 0.0, %v2194
        %v2196 = vpop.f32.mrf.mxu0
        %v2197 = vadd.f32 0.0, %v2196
        %2198 = vmatmul.bf16.gmra.mxu0 %v2090
        %v2199 = vpop.f32.mrf.mxu0
        %v2200 = vadd.f32 0.0, %v2199
        %v2201 = vpop.f32.mrf.mxu0
        %v2202 = vadd.f32 0.0, %v2201
        %2203 = vmatmul.bf16.gmra.mxu0 %v2091
        %v2204 = vpop.f32.mrf.mxu0
        %v2205 = vadd.f32 0.0, %v2204
        %v2206 = vpop.f32.mrf.mxu0
        %v2207 = vadd.f32 0.0, %v2206
        %2208 = vmatmul.bf16.gmra.mxu0 %v2092
        %v2209 = vpop.f32.mrf.mxu0
        %v2210 = vadd.f32 0.0, %v2209
        %v2211 = vpop.f32.mrf.mxu0
        %v2212 = vadd.f32 0.0, %v2211
        %2213 = vmatmul.bf16.gmra.mxu0 %v2093
        %v2214 = vpop.f32.mrf.mxu0
        %v2215 = vadd.f32 0.0, %v2214
        %v2216 = vpop.f32.mrf.mxu0
        %v2217 = vadd.f32 0.0, %v2216
        %2218 = vmatmul.bf16.gmra.mxu0 %v2094
        %v2219 = vpop.f32.mrf.mxu0
        %v2220 = vadd.f32 0.0, %v2219
        %v2221 = vpop.f32.mrf.mxu0
        %v2222 = vadd.f32 0.0, %v2221
        %2223 = vmatmul.bf16.gmra.mxu0 %v2095
        %v2224 = vpop.f32.mrf.mxu0
        %v2225 = vadd.f32 0.0, %v2224
        %v2226 = vpop.f32.mrf.mxu0
        %v2227 = vadd.f32 0.0, %v2226
        %2228 = vmatmul.bf16.gmra.mxu0 %v2096
        %v2229 = vpop.f32.mrf.mxu0
        %v2230 = vadd.f32 0.0, %v2229
        %v2231 = vpop.f32.mrf.mxu0
        %v2232 = vadd.f32 0.0, %v2231
        %2233 = vmatmul.bf16.gmra.mxu0 %v2097
        %v2234 = vpop.f32.mrf.mxu0
        %v2235 = vadd.f32 0.0, %v2234
        %v2236 = vpop.f32.mrf.mxu0
        %v2237 = vadd.f32 0.0, %v2236
        %2238 = vmatmul.bf16.gmra.mxu0 %v2098
        %v2239 = vpop.f32.mrf.mxu0
        %v2240 = vadd.f32 0.0, %v2239
        %v2241 = vpop.f32.mrf.mxu0
        %v2242 = vadd.f32 0.0, %v2241
        %2243 = vmatmul.bf16.gmra.mxu0 %v2099
        %v2244 = vpop.f32.mrf.mxu0
        %v2245 = vadd.f32 0.0, %v2244
        %v2246 = vpop.f32.mrf.mxu0
        %v2247 = vadd.f32 0.0, %v2246
        %2248 = vmatmul.bf16.gmra.mxu0 %v2100
        %v2249 = vpop.f32.mrf.mxu0
        %v2250 = vadd.f32 0.0, %v2249
        %v2251 = vpop.f32.mrf.mxu0
        %v2252 = vadd.f32 0.0, %v2251
        %2253 = vdwg.mxu0
        %p2254 = scmp.eq.s32.totalorder %s28, 0
        // Predicated region
        $region57: #{tpu_custom_call.1} parent=55 // pred_check
          %p2255 = pneg %p2254
        $region58: #{tpu_custom_call.1} parent=55 // pred_check_branch
          %2257 = sbr.rel (%p2255) target = $region60
        $region59: #{tpu_custom_call.1} parent=55 // pred_region
          %2258 = vst [vmem:[%s401] sm:$0xff] %v2175
          %2259 = vst [vmem:[%s401 + $0x8] sm:$0xff] %v2177
          %2260 = vst [vmem:[%s401 + $0x10] sm:$0xff] %v2180
          %2261 = vst [vmem:[%s401 + $0x18] sm:$0xff] %v2182
          %2262 = vst [vmem:[%s401 + $0x20] sm:$0xff] %v2185
          %2263 = vst [vmem:[%s401 + $0x28] sm:$0xff] %v2187
          %2264 = vst [vmem:[%s401 + $0x30] sm:$0xff] %v2190
          %2265 = vst [vmem:[%s401 + $0x38] sm:$0xff] %v2192
          %2266 = vst [vmem:[%s401 + $0x40] sm:$0xff] %v2195
          %2267 = vst [vmem:[%s401 + $0x48] sm:$0xff] %v2197
          %2268 = vst [vmem:[%s401 + $0x50] sm:$0xff] %v2200
          %2269 = vst [vmem:[%s401 + $0x58] sm:$0xff] %v2202
          %2270 = vst [vmem:[%s401 + $0x60] sm:$0xff] %v2205
          %2271 = vst [vmem:[%s401 + $0x68] sm:$0xff] %v2207
          %2272 = vst [vmem:[%s401 + $0x70] sm:$0xff] %v2210
          %2273 = vst [vmem:[%s401 + $0x78] sm:$0xff] %v2212
          %2274 = vst [vmem:[%s401 + $0x80] sm:$0xff] %v2215
          %2275 = vst [vmem:[%s401 + $0x88] sm:$0xff] %v2217
          %2276 = vst [vmem:[%s401 + $0x90] sm:$0xff] %v2220
          %2277 = vst [vmem:[%s401 + $0x98] sm:$0xff] %v2222
          %2278 = vst [vmem:[%s401 + $0xa0] sm:$0xff] %v2225
          %2279 = vst [vmem:[%s401 + $0xa8] sm:$0xff] %v2227
          %2280 = vst [vmem:[%s401 + $0xb0] sm:$0xff] %v2230
          %2281 = vst [vmem:[%s401 + $0xb8] sm:$0xff] %v2232
          %2282 = vst [vmem:[%s401 + $0xc0] sm:$0xff] %v2235
          %2283 = vst [vmem:[%s401 + $0xc8] sm:$0xff] %v2237
          %2284 = vst [vmem:[%s401 + $0xd0] sm:$0xff] %v2240
          %2285 = vst [vmem:[%s401 + $0xd8] sm:$0xff] %v2242
          %2286 = vst [vmem:[%s401 + $0xe0] sm:$0xff] %v2245
          %2287 = vst [vmem:[%s401 + $0xe8] sm:$0xff] %v2247
          %2288 = vst [vmem:[%s401 + $0xf0] sm:$0xff] %v2250
          %2289 = vst [vmem:[%s401 + $0xf8] sm:$0xff] %v2252
        $region60: #{tpu_custom_call.1} parent=55 // pred_fallthru
          _
        %p2290 = scmp.gt.s32.totalorder %s28, 0
        // Predicated region
        $region61: #{tpu_custom_call.1} parent=55 // pred_check
          %p2291 = pneg %p2290
        $region62: #{tpu_custom_call.1} parent=55 // pred_check_branch
          %2293 = sbr.rel (%p2291) target = $region64
        $region63: #{tpu_custom_call.1} parent=55 // pred_region
          %v2294 = vld [vmem:[%s401] sm:$0xff]
          %v2295 = vld [vmem:[%s401 + $0x8] sm:$0xff]
          %v2296 = vld [vmem:[%s401 + $0x10] sm:$0xff]
          %v2297 = vld [vmem:[%s401 + $0x18] sm:$0xff]
          %v2298 = vld [vmem:[%s401 + $0x20] sm:$0xff]
          %v2299 = vld [vmem:[%s401 + $0x28] sm:$0xff]
          %v2300 = vld [vmem:[%s401 + $0x30] sm:$0xff]
          %v2301 = vld [vmem:[%s401 + $0x38] sm:$0xff]
          %v2302 = vld [vmem:[%s401 + $0x40] sm:$0xff]
          %v2303 = vld [vmem:[%s401 + $0x48] sm:$0xff]
          %v2304 = vld [vmem:[%s401 + $0x50] sm:$0xff]
          %v2305 = vld [vmem:[%s401 + $0x58] sm:$0xff]
          %v2306 = vld [vmem:[%s401 + $0x60] sm:$0xff]
          %v2307 = vld [vmem:[%s401 + $0x68] sm:$0xff]
          %v2308 = vld [vmem:[%s401 + $0x70] sm:$0xff]
          %v2309 = vld [vmem:[%s401 + $0x78] sm:$0xff]
          %v2310 = vld [vmem:[%s401 + $0x80] sm:$0xff]
          %v2311 = vld [vmem:[%s401 + $0x88] sm:$0xff]
          %v2312 = vld [vmem:[%s401 + $0x90] sm:$0xff]
          %v2313 = vld [vmem:[%s401 + $0x98] sm:$0xff]
          %v2314 = vld [vmem:[%s401 + $0xa0] sm:$0xff]
          %v2315 = vld [vmem:[%s401 + $0xa8] sm:$0xff]
          %v2316 = vld [vmem:[%s401 + $0xb0] sm:$0xff]
          %v2317 = vld [vmem:[%s401 + $0xb8] sm:$0xff]
          %v2318 = vld [vmem:[%s401 + $0xc0] sm:$0xff]
          %v2319 = vld [vmem:[%s401 + $0xc8] sm:$0xff]
          %v2320 = vld [vmem:[%s401 + $0xd0] sm:$0xff]
          %v2321 = vld [vmem:[%s401 + $0xd8] sm:$0xff]
          %v2322 = vld [vmem:[%s401 + $0xe0] sm:$0xff]
          %v2323 = vld [vmem:[%s401 + $0xe8] sm:$0xff]
          %v2324 = vld [vmem:[%s401 + $0xf0] sm:$0xff]
          %v2325 = vld [vmem:[%s401 + $0xf8] sm:$0xff]
          %v2326 = vadd.f32 %v2294, %v2175
          %v2327 = vadd.f32 %v2295, %v2177
          %v2328 = vadd.f32 %v2296, %v2180
          %v2329 = vadd.f32 %v2297, %v2182
          %v2330 = vadd.f32 %v2298, %v2185
          %v2331 = vadd.f32 %v2299, %v2187
          %v2332 = vadd.f32 %v2300, %v2190
          %v2333 = vadd.f32 %v2301, %v2192
          %v2334 = vadd.f32 %v2302, %v2195
          %v2335 = vadd.f32 %v2303, %v2197
          %v2336 = vadd.f32 %v2304, %v2200
          %v2337 = vadd.f32 %v2305, %v2202
          %v2338 = vadd.f32 %v2306, %v2205
          %v2339 = vadd.f32 %v2307, %v2207
          %v2340 = vadd.f32 %v2308, %v2210
          %v2341 = vadd.f32 %v2309, %v2212
          %v2342 = vadd.f32 %v2310, %v2215
          %v2343 = vadd.f32 %v2311, %v2217
          %v2344 = vadd.f32 %v2312, %v2220
          %v2345 = vadd.f32 %v2313, %v2222
          %v2346 = vadd.f32 %v2314, %v2225
          %v2347 = vadd.f32 %v2315, %v2227
          %v2348 = vadd.f32 %v2316, %v2230
          %v2349 = vadd.f32 %v2317, %v2232
          %v2350 = vadd.f32 %v2318, %v2235
          %v2351 = vadd.f32 %v2319, %v2237
          %v2352 = vadd.f32 %v2320, %v2240
          %v2353 = vadd.f32 %v2321, %v2242
          %v2354 = vadd.f32 %v2322, %v2245
          %v2355 = vadd.f32 %v2323, %v2247
          %v2356 = vadd.f32 %v2324, %v2250
          %v2357 = vadd.f32 %v2325, %v2252
          %2358 = vst [vmem:[%s401] sm:$0xff] %v2326
          %2359 = vst [vmem:[%s401 + $0x8] sm:$0xff] %v2327
          %2360 = vst [vmem:[%s401 + $0x10] sm:$0xff] %v2328
          %2361 = vst [vmem:[%s401 + $0x18] sm:$0xff] %v2329
          %2362 = vst [vmem:[%s401 + $0x20] sm:$0xff] %v2330
          %2363 = vst [vmem:[%s401 + $0x28] sm:$0xff] %v2331
          %2364 = vst [vmem:[%s401 + $0x30] sm:$0xff] %v2332
          %2365 = vst [vmem:[%s401 + $0x38] sm:$0xff] %v2333
          %2366 = vst [vmem:[%s401 + $0x40] sm:$0xff] %v2334
          %2367 = vst [vmem:[%s401 + $0x48] sm:$0xff] %v2335
          %2368 = vst [vmem:[%s401 + $0x50] sm:$0xff] %v2336
          %2369 = vst [vmem:[%s401 + $0x58] sm:$0xff] %v2337
          %2370 = vst [vmem:[%s401 + $0x60] sm:$0xff] %v2338
          %2371 = vst [vmem:[%s401 + $0x68] sm:$0xff] %v2339
          %2372 = vst [vmem:[%s401 + $0x70] sm:$0xff] %v2340
          %2373 = vst [vmem:[%s401 + $0x78] sm:$0xff] %v2341
          %2374 = vst [vmem:[%s401 + $0x80] sm:$0xff] %v2342
          %2375 = vst [vmem:[%s401 + $0x88] sm:$0xff] %v2343
          %2376 = vst [vmem:[%s401 + $0x90] sm:$0xff] %v2344
          %2377 = vst [vmem:[%s401 + $0x98] sm:$0xff] %v2345
          %2378 = vst [vmem:[%s401 + $0xa0] sm:$0xff] %v2346
          %2379 = vst [vmem:[%s401 + $0xa8] sm:$0xff] %v2347
          %2380 = vst [vmem:[%s401 + $0xb0] sm:$0xff] %v2348
          %2381 = vst [vmem:[%s401 + $0xb8] sm:$0xff] %v2349
          %2382 = vst [vmem:[%s401 + $0xc0] sm:$0xff] %v2350
          %2383 = vst [vmem:[%s401 + $0xc8] sm:$0xff] %v2351
          %2384 = vst [vmem:[%s401 + $0xd0] sm:$0xff] %v2352
          %2385 = vst [vmem:[%s401 + $0xd8] sm:$0xff] %v2353
          %2386 = vst [vmem:[%s401 + $0xe0] sm:$0xff] %v2354
          %2387 = vst [vmem:[%s401 + $0xe8] sm:$0xff] %v2355
          %2388 = vst [vmem:[%s401 + $0xf0] sm:$0xff] %v2356
          %2389 = vst [vmem:[%s401 + $0xf8] sm:$0xff] %v2357
        $region64: #{tpu_custom_call.1} parent=55 // pred_fallthru
          _
        // Predicated region
        $region65: #{tpu_custom_call.1} parent=55 // pred_check
          %p2390 = pneg %p2254
        $region66: #{tpu_custom_call.1} parent=55 // pred_check_branch
          %2392 = sbr.rel (%p2390) target = $region68
        $region67: #{tpu_custom_call.1} parent=55 // pred_region
          %v2393 = vld [vmem:[%s401] sm:$0xff]
          %v2394 = vld [vmem:[%s401 + $0x8] sm:$0xff]
          %v2395 = vld [vmem:[%s401 + $0x10] sm:$0xff]
          %v2396 = vld [vmem:[%s401 + $0x18] sm:$0xff]
          %v2397 = vld [vmem:[%s401 + $0x20] sm:$0xff]
          %v2398 = vld [vmem:[%s401 + $0x28] sm:$0xff]
          %v2399 = vld [vmem:[%s401 + $0x30] sm:$0xff]
          %v2400 = vld [vmem:[%s401 + $0x38] sm:$0xff]
          %v2401 = vld [vmem:[%s401 + $0x40] sm:$0xff]
          %v2402 = vld [vmem:[%s401 + $0x48] sm:$0xff]
          %v2403 = vld [vmem:[%s401 + $0x50] sm:$0xff]
          %v2404 = vld [vmem:[%s401 + $0x58] sm:$0xff]
          %v2405 = vld [vmem:[%s401 + $0x60] sm:$0xff]
          %v2406 = vld [vmem:[%s401 + $0x68] sm:$0xff]
          %v2407 = vld [vmem:[%s401 + $0x70] sm:$0xff]
          %v2408 = vld [vmem:[%s401 + $0x78] sm:$0xff]
          %v2409 = vld [vmem:[%s401 + $0x80] sm:$0xff]
          %v2410 = vld [vmem:[%s401 + $0x88] sm:$0xff]
          %v2411 = vld [vmem:[%s401 + $0x90] sm:$0xff]
          %v2412 = vld [vmem:[%s401 + $0x98] sm:$0xff]
          %v2413 = vld [vmem:[%s401 + $0xa0] sm:$0xff]
          %v2414 = vld [vmem:[%s401 + $0xa8] sm:$0xff]
          %v2415 = vld [vmem:[%s401 + $0xb0] sm:$0xff]
          %v2416 = vld [vmem:[%s401 + $0xb8] sm:$0xff]
          %v2417 = vld [vmem:[%s401 + $0xc0] sm:$0xff]
          %v2418 = vld [vmem:[%s401 + $0xc8] sm:$0xff]
          %v2419 = vld [vmem:[%s401 + $0xd0] sm:$0xff]
          %v2420 = vld [vmem:[%s401 + $0xd8] sm:$0xff]
          %v2421 = vld [vmem:[%s401 + $0xe0] sm:$0xff]
          %v2422 = vld [vmem:[%s401 + $0xe8] sm:$0xff]
          %v2423 = vld [vmem:[%s401 + $0xf0] sm:$0xff]
          %v2424 = vld [vmem:[%s401 + $0xf8] sm:$0xff]
          %v2425 = vld [vmem:[%s6] sm:$0x1]
          %v2427 = vperm.slane %v2425, 0
          %v2429 = vadd.f32 %v2393, %v2427
          %v2430 = vadd.f32 %v2394, %v2427
          %v2431 = vadd.f32 %v2395, %v2427
          %v2432 = vadd.f32 %v2396, %v2427
          %v2433 = vadd.f32 %v2397, %v2427
          %v2434 = vadd.f32 %v2398, %v2427
          %v2435 = vadd.f32 %v2399, %v2427
          %v2436 = vadd.f32 %v2400, %v2427
          %v2437 = vadd.f32 %v2401, %v2427
          %v2438 = vadd.f32 %v2402, %v2427
          %v2439 = vadd.f32 %v2403, %v2427
          %v2440 = vadd.f32 %v2404, %v2427
          %v2441 = vadd.f32 %v2405, %v2427
          %v2442 = vadd.f32 %v2406, %v2427
          %v2443 = vadd.f32 %v2407, %v2427
          %v2444 = vadd.f32 %v2408, %v2427
          %v2445 = vadd.f32 %v2409, %v2427
          %v2446 = vadd.f32 %v2410, %v2427
          %v2447 = vadd.f32 %v2411, %v2427
          %v2448 = vadd.f32 %v2412, %v2427
          %v2449 = vadd.f32 %v2413, %v2427
          %v2450 = vadd.f32 %v2414, %v2427
          %v2451 = vadd.f32 %v2415, %v2427
          %v2452 = vadd.f32 %v2416, %v2427
          %v2453 = vadd.f32 %v2417, %v2427
          %v2454 = vadd.f32 %v2418, %v2427
          %v2455 = vadd.f32 %v2419, %v2427
          %v2456 = vadd.f32 %v2420, %v2427
          %v2457 = vadd.f32 %v2421, %v2427
          %v2458 = vadd.f32 %v2422, %v2427
          %v2459 = vadd.f32 %v2423, %v2427
          %v2460 = vadd.f32 %v2424, %v2427
          %v2461 = vld [vmem:[%s7] sm:$0x3]
          %v2463 = vsel %vm594, %v2461, 0
          %2465 = vmatpush.bf16.msra.mxu0 0
          %2466 = vmatpush.bf16.msra.mxu0 0
          %2467 = vmatpush.bf16.msra.mxu0 0
          %2468 = vmatpush.bf16.msra.mxu0 0
          %2469 = vmatpush.bf16.msra.mxu0 0
          %2470 = vmatpush.bf16.msra.mxu0 0
          %2471 = vmatpush.bf16.msra.mxu0 0
          %2472 = vmatpush.bf16.msra.mxu0 %v2463
          %2473 = vmatmul.bf16.gmra.mxu0 %v547
          %v2474 = vpop.f32.mrf.mxu0
          %v2475 = vadd.f32 0.0, %v2474
          %v2476 = vpop.f32.mrf.mxu0
          %v2477 = vadd.f32 0.0, %v2476
          %2478 = vmatmul.bf16.gmra.mxu0 %v550
          %v2479 = vpop.f32.mrf.mxu0
          %v2480 = vadd.f32 0.0, %v2479
          %v2481 = vpop.f32.mrf.mxu0
          %v2482 = vadd.f32 0.0, %v2481
          %2483 = vmatmul.bf16.gmra.mxu0 %v553
          %v2484 = vpop.f32.mrf.mxu0
          %v2485 = vadd.f32 0.0, %v2484
          %v2486 = vpop.f32.mrf.mxu0
          %v2487 = vadd.f32 0.0, %v2486
          %2488 = vmatmul.bf16.gmra.mxu0 %v556
          %v2489 = vpop.f32.mrf.mxu0
          %v2490 = vadd.f32 0.0, %v2489
          %v2491 = vpop.f32.mrf.mxu0
          %v2492 = vadd.f32 0.0, %v2491
          %2493 = vmatmul.bf16.gmra.mxu0 %v559
          %v2494 = vpop.f32.mrf.mxu0
          %v2495 = vadd.f32 0.0, %v2494
          %v2496 = vpop.f32.mrf.mxu0
          %v2497 = vadd.f32 0.0, %v2496
          %2498 = vmatmul.bf16.gmra.mxu0 %v562
          %v2499 = vpop.f32.mrf.mxu0
          %v2500 = vadd.f32 0.0, %v2499
          %v2501 = vpop.f32.mrf.mxu0
          %v2502 = vadd.f32 0.0, %v2501
          %2503 = vmatmul.bf16.gmra.mxu0 %v565
          %v2504 = vpop.f32.mrf.mxu0
          %v2505 = vadd.f32 0.0, %v2504
          %v2506 = vpop.f32.mrf.mxu0
          %v2507 = vadd.f32 0.0, %v2506
          %2508 = vmatmul.bf16.gmra.mxu0 %v568
          %v2509 = vpop.f32.mrf.mxu0
          %v2510 = vadd.f32 0.0, %v2509
          %v2511 = vpop.f32.mrf.mxu0
          %v2512 = vadd.f32 0.0, %v2511
          %2513 = vmatmul.bf16.gmra.mxu0 %v571
          %v2514 = vpop.f32.mrf.mxu0
          %v2515 = vadd.f32 0.0, %v2514
          %v2516 = vpop.f32.mrf.mxu0
          %v2517 = vadd.f32 0.0, %v2516
          %2518 = vmatmul.bf16.gmra.mxu0 %v574
          %v2519 = vpop.f32.mrf.mxu0
          %v2520 = vadd.f32 0.0, %v2519
          %v2521 = vpop.f32.mrf.mxu0
          %v2522 = vadd.f32 0.0, %v2521
          %2523 = vmatmul.bf16.gmra.mxu0 %v577
          %v2524 = vpop.f32.mrf.mxu0
          %v2525 = vadd.f32 0.0, %v2524
          %v2526 = vpop.f32.mrf.mxu0
          %v2527 = vadd.f32 0.0, %v2526
          %2528 = vmatmul.bf16.gmra.mxu0 %v580
          %v2529 = vpop.f32.mrf.mxu0
          %v2530 = vadd.f32 0.0, %v2529
          %v2531 = vpop.f32.mrf.mxu0
          %v2532 = vadd.f32 0.0, %v2531
          %2533 = vmatmul.bf16.gmra.mxu0 %v583
          %v2534 = vpop.f32.mrf.mxu0
          %v2535 = vadd.f32 0.0, %v2534
          %v2536 = vpop.f32.mrf.mxu0
          %v2537 = vadd.f32 0.0, %v2536
          %2538 = vmatmul.bf16.gmra.mxu0 %v586
          %v2539 = vpop.f32.mrf.mxu0
          %v2540 = vadd.f32 0.0, %v2539
          %v2541 = vpop.f32.mrf.mxu0
          %v2542 = vadd.f32 0.0, %v2541
          %2543 = vmatmul.bf16.gmra.mxu0 %v589
          %v2544 = vpop.f32.mrf.mxu0
          %v2545 = vadd.f32 0.0, %v2544
          %v2546 = vpop.f32.mrf.mxu0
          %v2547 = vadd.f32 0.0, %v2546
          %2548 = vmatmul.bf16.gmra.mxu0 %v592
          %v2549 = vpop.f32.mrf.mxu0
          %v2550 = vadd.f32 0.0, %v2549
          %v2551 = vpop.f32.mrf.mxu0
          %v2552 = vadd.f32 0.0, %v2551
          %2553 = vdwg.mxu0
          %v2554 = vadd.f32 %v2429, %v2475
          %v2555 = vadd.f32 %v2430, %v2477
          %v2556 = vadd.f32 %v2431, %v2480
          %v2557 = vadd.f32 %v2432, %v2482
          %v2558 = vadd.f32 %v2433, %v2485
          %v2559 = vadd.f32 %v2434, %v2487
          %v2560 = vadd.f32 %v2435, %v2490
          %v2561 = vadd.f32 %v2436, %v2492
          %v2562 = vadd.f32 %v2437, %v2495
          %v2563 = vadd.f32 %v2438, %v2497
          %v2564 = vadd.f32 %v2439, %v2500
          %v2565 = vadd.f32 %v2440, %v2502
          %v2566 = vadd.f32 %v2441, %v2505
          %v2567 = vadd.f32 %v2442, %v2507
          %v2568 = vadd.f32 %v2443, %v2510
          %v2569 = vadd.f32 %v2444, %v2512
          %v2570 = vadd.f32 %v2445, %v2515
          %v2571 = vadd.f32 %v2446, %v2517
          %v2572 = vadd.f32 %v2447, %v2520
          %v2573 = vadd.f32 %v2448, %v2522
          %v2574 = vadd.f32 %v2449, %v2525
          %v2575 = vadd.f32 %v2450, %v2527
          %v2576 = vadd.f32 %v2451, %v2530
          %v2577 = vadd.f32 %v2452, %v2532
          %v2578 = vadd.f32 %v2453, %v2535
          %v2579 = vadd.f32 %v2454, %v2537
          %v2580 = vadd.f32 %v2455, %v2540
          %v2581 = vadd.f32 %v2456, %v2542
          %v2582 = vadd.f32 %v2457, %v2545
          %v2583 = vadd.f32 %v2458, %v2547
          %v2584 = vadd.f32 %v2459, %v2550
          %v2585 = vadd.f32 %v2460, %v2552
          %v2586 = vld [vmem:[%s8] sm:$0x1]
          %v2588 = vperm.slane %v2586, 0
          %v2590 = vadd.f32 %v2554, %v2588
          %v2591 = vadd.f32 %v2555, %v2588
          %v2592 = vadd.f32 %v2556, %v2588
          %v2593 = vadd.f32 %v2557, %v2588
          %v2594 = vadd.f32 %v2558, %v2588
          %v2595 = vadd.f32 %v2559, %v2588
          %v2596 = vadd.f32 %v2560, %v2588
          %v2597 = vadd.f32 %v2561, %v2588
          %v2598 = vadd.f32 %v2562, %v2588
          %v2599 = vadd.f32 %v2563, %v2588
          %v2600 = vadd.f32 %v2564, %v2588
          %v2601 = vadd.f32 %v2565, %v2588
          %v2602 = vadd.f32 %v2566, %v2588
          %v2603 = vadd.f32 %v2567, %v2588
          %v2604 = vadd.f32 %v2568, %v2588
          %v2605 = vadd.f32 %v2569, %v2588
          %v2606 = vadd.f32 %v2570, %v2588
          %v2607 = vadd.f32 %v2571, %v2588
          %v2608 = vadd.f32 %v2572, %v2588
          %v2609 = vadd.f32 %v2573, %v2588
          %v2610 = vadd.f32 %v2574, %v2588
          %v2611 = vadd.f32 %v2575, %v2588
          %v2612 = vadd.f32 %v2576, %v2588
          %v2613 = vadd.f32 %v2577, %v2588
          %v2614 = vadd.f32 %v2578, %v2588
          %v2615 = vadd.f32 %v2579, %v2588
          %v2616 = vadd.f32 %v2580, %v2588
          %v2617 = vadd.f32 %v2581, %v2588
          %v2618 = vadd.f32 %v2582, %v2588
          %v2619 = vadd.f32 %v2583, %v2588
          %v2620 = vadd.f32 %v2584, %v2588
          %v2621 = vadd.f32 %v2585, %v2588
          %2622 = vst [vmem:[%s401] sm:$0xff] %v2590
          %2623 = vst [vmem:[%s401 + $0x8] sm:$0xff] %v2591
          %2624 = vst [vmem:[%s401 + $0x10] sm:$0xff] %v2592
          %2625 = vst [vmem:[%s401 + $0x18] sm:$0xff] %v2593
          %2626 = vst [vmem:[%s401 + $0x20] sm:$0xff] %v2594
          %2627 = vst [vmem:[%s401 + $0x28] sm:$0xff] %v2595
          %2628 = vst [vmem:[%s401 + $0x30] sm:$0xff] %v2596
          %2629 = vst [vmem:[%s401 + $0x38] sm:$0xff] %v2597
          %2630 = vst [vmem:[%s401 + $0x40] sm:$0xff] %v2598
          %2631 = vst [vmem:[%s401 + $0x48] sm:$0xff] %v2599
          %2632 = vst [vmem:[%s401 + $0x50] sm:$0xff] %v2600
          %2633 = vst [vmem:[%s401 + $0x58] sm:$0xff] %v2601
          %2634 = vst [vmem:[%s401 + $0x60] sm:$0xff] %v2602
          %2635 = vst [vmem:[%s401 + $0x68] sm:$0xff] %v2603
          %2636 = vst [vmem:[%s401 + $0x70] sm:$0xff] %v2604
          %2637 = vst [vmem:[%s401 + $0x78] sm:$0xff] %v2605
          %2638 = vst [vmem:[%s401 + $0x80] sm:$0xff] %v2606
          %2639 = vst [vmem:[%s401 + $0x88] sm:$0xff] %v2607
          %2640 = vst [vmem:[%s401 + $0x90] sm:$0xff] %v2608
          %2641 = vst [vmem:[%s401 + $0x98] sm:$0xff] %v2609
          %2642 = vst [vmem:[%s401 + $0xa0] sm:$0xff] %v2610
          %2643 = vst [vmem:[%s401 + $0xa8] sm:$0xff] %v2611
          %2644 = vst [vmem:[%s401 + $0xb0] sm:$0xff] %v2612
          %2645 = vst [vmem:[%s401 + $0xb8] sm:$0xff] %v2613
          %2646 = vst [vmem:[%s401 + $0xc0] sm:$0xff] %v2614
          %2647 = vst [vmem:[%s401 + $0xc8] sm:$0xff] %v2615
          %2648 = vst [vmem:[%s401 + $0xd0] sm:$0xff] %v2616
          %2649 = vst [vmem:[%s401 + $0xd8] sm:$0xff] %v2617
          %2650 = vst [vmem:[%s401 + $0xe0] sm:$0xff] %v2618
          %2651 = vst [vmem:[%s401 + $0xe8] sm:$0xff] %v2619
          %2652 = vst [vmem:[%s401 + $0xf0] sm:$0xff] %v2620
          %2653 = vst [vmem:[%s401 + $0xf8] sm:$0xff] %v2621
        $region68: #{tpu_custom_call.1} parent=55 // pred_fallthru
          _
        %s2654 = sand.u32 %s262, 1
        %s2655 = scalar_lea.sflag [#allocation4], %s2654
        %s2656 = sand.u32 %s262, 1
        %s2657 = smul.addr %s2656, 256
        %s2658 = scalar_lea.vmem [#allocation3], %s2657
        // Predicated region
        $region69: #{tpu_custom_call.1} parent=55 // pred_check
          %p2659 = pneg %p272
        $region70: #{tpu_custom_call.1} parent=55 // pred_check_branch
          %2661 = sbr.rel (%p2659) target = $region72
        $region71: #{tpu_custom_call.1} parent=55 // pred_region
          %2663 = vsyncadd %s2655, 0
          %s2664 = smul.addr %s27, 32
          %s2665 = smul.addr %s2664, 8
          %s2666 = scalar_lea.hbm %s9, %s2665
          %s2667 = sshll.u32 %s2658, 4
          %s2668 = int_to_ptr.vmem [resolvable:$true] %s2667
          %s2669 = sshll.u32 %s2666, 4
          %s2670 = int_to_ptr.hbm [resolvable:$true] %s2669
          %2675 = dma.vmem_to_hbm [thread:$0]  %s2668, 4096, %s2670, %s2655, 128, 128, 8
        $region72: #{tpu_custom_call.1} parent=55 // pred_fallthru
          _
      $region56: #{tpu_custom_call.1} parent=5 // pred_fallthru
        _
      %p2676 = scmp.le.s32.totalorder 2, %s18
      // Predicated region
      $region73: #{tpu_custom_call.1} parent=5 // pred_check
        %p2677 = pneg %p2676
      $region74: #{tpu_custom_call.1} parent=5 // pred_check_branch
        %2679 = sbr.rel (%p2677) target = $region76
      $region75: #{tpu_custom_call.1} parent=5 // pred_region
        %s2680 = ssub.s32 %s18, 2
        // Predicated region
        $region77: #{tpu_custom_call.1} parent=75 // pred_check
          %p2681 = pneg %p278
        $region78: #{tpu_custom_call.1} parent=75 // pred_check_branch
          %2683 = sbr.rel (%p2681) target = $region80
        $region79: #{tpu_custom_call.1} parent=75 // pred_region
          %s2684 = sand.u32 %s263, 1
          %s2685 = scalar_lea.sflag [#allocation4], %s2684
          %s2686 = sand.u32 %s263, 1
          %s2687 = smul.addr %s2686, 256
          %s2688 = scalar_lea.vmem [#allocation3], %s2687
          %2690 = dma.done %s2685, 4096
        $region80: #{tpu_custom_call.1} parent=75 // pred_fallthru
          _
      $region76: #{tpu_custom_call.1} parent=5 // pred_fallthru
        _
    $region6: #{tpu_custom_call.1} parent=1 // loop_footer
      %s22 = sadd.s32 1, %s18
    $region7: #{tpu_custom_call.1} parent=1 // loop_footer_branch
      %17 = sbr.rel target = $region3
    $region8: #{tpu_custom_call.1} parent=1 // loop_exit
      _
    %2691 = vsyncpa [#allocation4], 1
    %s2692 = scalar_lea.sflag [#allocation4], 1
    %2693 = vsyncpa %s2692, 1

</llo_original>
